<compile_context>
chip_gen: v5e
topology: v5e:2x2
jax: 0.10.0
libtpu: 0.0.40
codegen_flags: <defaults>
</compile_context>

<pallas_src>
import math
import random

import jax
import jax.numpy as jnp
from jax.experimental import pallas as pl
from jax.experimental.pallas import tpu as pltpu


def _cdiv(a, b):
    return -(-a // b)


# ----------------------------------------------------------------------------
# Kernel
# ----------------------------------------------------------------------------
def _phase_vocoder_kernel(re0_ref, im0_ref, re1_ref, im1_ref,
                          alpha_ref, padv_ref, tri_ref,
                          out_re_ref, out_im_ref,
                          carry_ref, prev_ref):
    re0 = re0_ref[0]          # (Fb, Tb)
    im0 = im0_ref[0]
    re1 = re1_ref[0]
    im1 = im1_ref[0]
    alphas = alpha_ref[...]   # (1, Tb)
    padv = padv_ref[...]      # (Fb, 1)

    Tb = re0.shape[1]
    two_pi = jnp.float32(2.0 * math.pi)
    inv_two_pi = jnp.float32(1.0 / (2.0 * math.pi))

    # ---- init carried state at the first T-block of each (b, f-block) slice --
    @pl.when(pl.program_id(2) == 0)
    def _():
        carry_ref[...] = jnp.zeros_like(carry_ref)
        # phase of the original first frame (time_steps[0] == 0 -> rs0[:, 0])
        prev_ref[...] = jnp.arctan2(im0[:, 0:1], re0[:, 0:1])

    # ---- single fused arctan2 for angle1 - angle0 ----------------------------
    # Guards reproduce torch's atan2(0, 0) == 0 convention for exactly-zero
    # frames (zero-padded tail frames and silent bins).
    zero1 = (re1 == 0.0) & (im1 == 0.0)
    zero0 = (re0 == 0.0) & (im0 == 0.0)
    dy = jnp.where(zero1, -im0, jnp.where(zero0, im1, im1 * re0 - re1 * im0))
    dx = jnp.where(zero1, re0, jnp.where(zero0, re1, re1 * re0 + im1 * im0))
    dphase = jnp.arctan2(dy, dx)

    # wrap (dphase - padv) to (-pi, pi] with a VPU-only round-to-nearest;
    # half-tie direction only shifts phase_acc by 2*pi, which cos/sin ignore.
    phase = dphase - padv
    phase = phase - two_pi * jnp.floor(phase * inv_two_pi + jnp.float32(0.5))
    phase = phase + padv

    # magnitude interpolation
    norm0 = jnp.sqrt(re0 * re0 + im0 * im0)
    norm1 = jnp.sqrt(re1 * re1 + im1 * im1)
    mag = alphas * norm1 + (1.0 - alphas) * norm0

    # ---- cumulative phase on the MXU -----------------------------------------
    # Reference: phase_cat = [prev, phase[:, :-1]]; phase_acc = cumsum(phase_cat)
    #  => phase_acc[:, t] = carry + prev + sum_{s < t} phase[:, s]
    # The exclusive prefix sum is phase @ U with U[s, t] = 1 iff s < t (strictly
    # upper triangular ones, a static resident input).  HIGHEST precision keeps
    # the f32 accumulation equivalent to the sequential cumsum.
    prefix = jnp.dot(phase, tri_ref[...],
                     preferred_element_type=jnp.float32,
                     precision=jax.lax.Precision.HIGHEST)
    phase_acc = prefix + carry_ref[...] + prev_ref[...]

    # carried state for the next T-block
    carry_ref[...] = phase_acc[:, Tb - 1:Tb]
    prev_ref[...] = phase[:, Tb - 1:Tb]

    out_re_ref[0] = mag * jnp.cos(phase_acc)
    out_im_ref[0] = mag * jnp.sin(phase_acc)


# ----------------------------------------------------------------------------
# Host-side helpers
# ----------------------------------------------------------------------------
def _gather_planes(x, rate, lane_pad=128):
    """Frame gather with static indices (rate is a host float).

    The stretched time axis is padded up to a multiple of `lane_pad`; padded
    columns index the zero frames appended by the phase vocoder and never
    influence valid output columns (they are sliced off afterwards).
    """
    _, _, frames, _ = x.shape
    T = int(math.ceil(frames / rate))
    Tpad = ((T + lane_pad - 1) // lane_pad) * lane_pad
    t_f = jnp.arange(Tpad, dtype=jnp.float32) * jnp.float32(rate)
    alphas = (t_f % 1.0).astype(jnp.float32)
    idx0 = jnp.minimum(jnp.floor(t_f).astype(jnp.int32), frames)  # pad cols -> zero frame
    idx1 = jnp.minimum(idx0 + 1, frames + 1)
    xr = jnp.pad(x[..., 0], ((0, 0), (0, 0), (0, 2)))
    xi = jnp.pad(x[..., 1], ((0, 0), (0, 0), (0, 2)))
    re0 = jnp.take(xr, idx0, axis=2)
    im0 = jnp.take(xi, idx0, axis=2)
    re1 = jnp.take(xr, idx1, axis=2)
    im1 = jnp.take(xi, idx1, axis=2)
    return re0, im0, re1, im1, alphas, T, Tpad


def _pick_f_block(F, B, f_block):
    """Frequency tile height.

    Full F when it fits, else f_block; if the number of parallel (B, F) blocks
    comes out odd (only possible when B is odd), try one extra near-equal block
    so both v7x TensorCores get the same amount of work.  v5e/v6e are single
    TensorCore and only pay a tiny extra grid-step cost.
    """
    fb = F if F <= f_block else f_block
    if (B * _cdiv(F, fb)) % 2 == 0 or F < 16:
        return fb
    n_even = _cdiv(F, fb) + 1
    cand = ((_cdiv(F, n_even) + 7) // 8) * 8
    if cand >= 8 and (B * _cdiv(F, cand)) % 2 == 0:
        return cand
    return fb


def phase_vocoder_pallas(spectrogram, rate, phase_advance, *,
                         f_block=256, t_block=512):
    if rate == 1.0:
        return spectrogram
    assert f_block % 8 == 0 and t_block % 128 == 0
    shape = spectrogram.shape
    F, frames = shape[-3], shape[-2]
    x = spectrogram.reshape((-1, F, frames, 2)).astype(jnp.float32)
    B = x.shape[0]

    re0, im0, re1, im1, alphas, T, Tpad = _gather_planes(x, rate)
    alphas2d = alphas.reshape(1, Tpad)
    padv = phase_advance.astype(jnp.float32).reshape(F, 1)

    Fb = _pick_f_block(F, B, f_block)      # full F, or a multiple of 8
    Tb = min(t_block, Tpad)                # always a multiple of 128
    grid = (B, _cdiv(F, Fb), _cdiv(Tpad, Tb))

    # strictly upper-triangular ones: (phase @ tri)[:, t] = sum_{s < t} phase[:, s]
    tri = jnp.triu(jnp.ones((Tb, Tb), jnp.float32), 1)

    plane = pl.BlockSpec((1, Fb, Tb), lambda b, f, t: (b, f, t))

    # Explicit VMEM budget: double-buffered blocks + resident triangular matrix
    # + an allowance for live full-tile temporaries.  Clamped below v7x's 64MiB
    # physical VMEM (32MiB scoped default elsewhere is also respected).
    block_bytes = (4 + 2) * 2 * Fb * Tb * 4 + 2 * Tb * Tb * 4
    temp_bytes = 8 * Fb * Tb * 4
    vmem_limit = int(min(56 * 1024 * 1024,
                         max(32 * 1024 * 1024, 1.25 * (block_bytes + temp_bytes))))

    out_re, out_im = pl.pallas_call(
        _phase_vocoder_kernel,
        out_shape=(jax.ShapeDtypeStruct((B, F, Tpad), jnp.float32),
                   jax.ShapeDtypeStruct((B, F, Tpad), jnp.float32)),
        grid_spec=pltpu.PrefetchScalarGridSpec(
            num_scalar_prefetch=0,
            grid=grid,
            in_specs=[plane, plane, plane, plane,
                      pl.BlockSpec((1, Tb), lambda b, f, t: (0, t)),
                      pl.BlockSpec((Fb, 1), lambda b, f, t: (f, 0)),
                      pl.BlockSpec((Tb, Tb), lambda b, f, t: (0, 0))],
            out_specs=[plane, plane],
            scratch_shapes=[pltpu.VMEM((Fb, 1), jnp.float32),   # cumsum carry
                            pltpu.VMEM((Fb, 1), jnp.float32)],  # previous phase column
        ),
        compiler_params=pltpu.CompilerParams(
            dimension_semantics=("parallel", "parallel", "arbitrary"),
            vmem_limit_bytes=vmem_limit),
        cost_estimate=pl.CostEstimate(
            flops=2 * B * F * Tpad * Tb + 30 * B * F * Tpad,
            transcendentals=5 * B * F * Tpad,
            bytes_accessed=6 * B * F * Tpad * 4),
    )(re0, im0, re1, im1, alphas2d, padv, tri)

    # Public layout must match the torch module: [..., F, T, 2].  Planar
    # outputs keep the kernel's stores lane-dense; this final relayout is the
    # interface cost (downstream consumers that accept planar re/im can skip it).
    out = jnp.stack([out_re[..., :T], out_im[..., :T]], axis=-1)
    return out.reshape(shape[:-3] + (F, T, 2))


class TimeStretchModulePallas:
    """JAX/Pallas port of the PyTorch TimeStretchModule."""

    def __init__(self, n_fft=1024, hop_length=None, max_rate=1.1, seed=0):
        if max_rate <= 1.0:
            raise ValueError("max_rate must be > 1.0")
        n_freq = n_fft // 2 + 1
        hop_length = hop_length or n_fft // 4
        self.max_rate = float(max_rate)
        self._rng = random.Random(seed)   # deterministic host-side rate sampling
        self.phase_advance = jnp.linspace(
            0.0, math.pi * hop_length, n_freq, dtype=jnp.float32).reshape(n_freq, 1)

    def _random_rate(self):
        return self.max_rate ** (2.0 * self._rng.random() - 1.0)

    def __call__(self, spectrogram, rate=None):
        if rate is None:
            rate = self._random_rate()
        if abs(rate - 1.0) < 0.001:
            return spectrogram
        return phase_vocoder_pallas(spectrogram, rate, self.phase_advance)


# ----------------------------------------------------------------------------
# Pure-JAX reference (mirrors the torch phase_vocoder) for checking.
# ----------------------------------------------------------------------------
def phase_vocoder_ref(spectrogram, rate, phase_advance):
    if rate == 1.0:
        return spectrogram
    shape = spectrogram.shape
    F, frames = shape[-3], shape[-2]
    x = spectrogram.reshape((-1, F, frames, 2)).astype(jnp.float32)
    T = int(math.ceil(frames / rate))
    time_steps = jnp.arange(T, dtype=jnp.float32) * jnp.float32(rate)
    alphas = time_steps % 1.0
    idx0 = jnp.floor(time_steps).astype(jnp.int32)
    idx1 = idx0 + 1
    phase_0 = jnp.arctan2(x[..., :1, 1], x[..., :1, 0])
    padded = jnp.pad(x, ((0, 0), (0, 0), (0, 2), (0, 0)))
    rs0 = jnp.take(padded, idx0, axis=2)
    rs1 = jnp.take(padded, idx1, axis=2)
    angle0 = jnp.arctan2(rs0[..., 1], rs0[..., 0])
    angle1 = jnp.arctan2(rs1[..., 1], rs1[..., 0])
    norm0 = jnp.sqrt(rs0[..., 0] ** 2 + rs0[..., 1] ** 2)
    norm1 = jnp.sqrt(rs1[..., 0] ** 2 + rs1[..., 1] ** 2)
    padv = phase_advance.astype(jnp.float32).reshape(F, 1)
    phase = angle1 - angle0 - padv
    phase = phase - 2 * math.pi * jnp.round(phase / (2 * math.pi))
    phase = phase + padv
    phase = jnp.concatenate([phase_0, phase[..., :-1]], axis=-1)
    phase_acc = jnp.cumsum(phase, axis=-1)
    mag = alphas * norm1 + (1 - alphas) * norm0
    out = jnp.stack([mag * jnp.cos(phase_acc), mag * jnp.sin(phase_acc)], axis=-1)
    return out.reshape(shape[:-3] + (F, T, 2))


if __name__ == "__main__":
    key = jax.random.PRNGKey(0)

    # Test 1: compress (rate > 1), single T-block path.
    # n_fft=126 -> 64 frequency bins, hop_length=4, 16 STFT frames, batch 2.
    module = TimeStretchModulePallas(n_fft=126, hop_length=4, max_rate=1.1, seed=0)
    spec = jax.random.normal(key, (2, 64, 16, 2), dtype=jnp.float32)
    rate = module._random_rate()                       # deterministic, ~1.068
    out = jax.block_until_ready(module(spec, rate=rate))
    ref = phase_vocoder_ref(spec, rate, module.phase_advance)
    assert out.shape == ref.shape, (out.shape, ref.shape)
    err1 = float(jnp.max(jnp.abs(out - ref)))
    assert err1 < 5e-3, err1

    # Test 2: stretch (rate < 1), small blocks to exercise the carried state
    # across multiple F- and T-blocks (including a partial F tail block).
    k2, _ = jax.random.split(key)
    spec2 = jax.random.normal(k2, (2, 65, 120, 2), dtype=jnp.float32)
    padv2 = jnp.linspace(0.0, math.pi * 1.0, 65, dtype=jnp.float32).reshape(65, 1)
    rate2 = 0.93
    out2 = jax.block_until_ready(
        phase_vocoder_pallas(spec2, rate2, padv2, f_block=32, t_block=128))
    ref2 = phase_vocoder_ref(spec2, rate2, padv2)
    assert out2.shape == ref2.shape, (out2.shape, ref2.shape)
    err2 = float(jnp.max(jnp.abs(out2 - ref2)))
    assert err2 < 2e-2, err2

    print("KERNEL_OK")
</pallas_src>

<mosaic_0001>
module attributes {stable_mosaic.version = 11 : i64} {
  func.func @_phase_vocoder_kernel(%arg0: i32, %arg1: i32, %arg2: i32, %arg3: memref<1x64x128xf32, #tpu.memory_space<vmem>>, %arg4: memref<1x64x128xf32, #tpu.memory_space<vmem>>, %arg5: memref<1x64x128xf32, #tpu.memory_space<vmem>>, %arg6: memref<1x64x128xf32, #tpu.memory_space<vmem>>, %arg7: memref<1x128xf32, #tpu.memory_space<vmem>>, %arg8: memref<64x1xf32, #tpu.memory_space<vmem>>, %arg9: memref<128x128xf32, #tpu.memory_space<vmem>>, %arg10: memref<1x64x128xf32, #tpu.memory_space<vmem>>, %arg11: memref<1x64x128xf32, #tpu.memory_space<vmem>>, %arg12: memref<64x1xf32, #tpu.memory_space<vmem>>, %arg13: memref<64x1xf32, #tpu.memory_space<vmem>>) attributes {dimension_semantics = [#tpu.dimension_semantics<parallel>, #tpu.dimension_semantics<parallel>, #tpu.dimension_semantics<arbitrary>], iteration_bounds = array<i64: 2, 1, 1>, scalar_prefetch = 0 : i64, scratch_operands = 2 : i64, tpu.core_type = #tpu.core_type<tc>, window_params = [{transform_indices = @transform_0, window_bounds = array<i64: 1, 64, 128>}, {transform_indices = @transform_1, window_bounds = array<i64: 1, 64, 128>}, {transform_indices = @transform_2, window_bounds = array<i64: 1, 64, 128>}, {transform_indices = @transform_3, window_bounds = array<i64: 1, 64, 128>}, {transform_indices = @transform_4, window_bounds = array<i64: 1, 128>}, {transform_indices = @transform_5, window_bounds = array<i64: 64, 1>}, {pipeline_mode = #tpu.pipeline_mode<synchronous>, transform_indices = @transform_6, window_bounds = array<i64: 128, 128>}, {transform_indices = @transform_7, window_bounds = array<i64: 1, 64, 128>}, {transform_indices = @transform_8, window_bounds = array<i64: 1, 64, 128>}]} {
    %c0 = arith.constant 0 : index
    %c0_0 = arith.constant 0 : index
    %c0_1 = arith.constant 0 : index
    %0 = vector.load %arg3[%c0, %c0_0, %c0_1] : memref<1x64x128xf32, #tpu.memory_space<vmem>>, vector<1x64x128xf32>
    %1 = vector.shape_cast %0 : vector<1x64x128xf32> to vector<64x128xf32>
    %c0_2 = arith.constant 0 : index
    %c0_3 = arith.constant 0 : index
    %c0_4 = arith.constant 0 : index
    %2 = vector.load %arg4[%c0_2, %c0_3, %c0_4] : memref<1x64x128xf32, #tpu.memory_space<vmem>>, vector<1x64x128xf32>
    %3 = vector.shape_cast %2 : vector<1x64x128xf32> to vector<64x128xf32>
    %c0_5 = arith.constant 0 : index
    %c0_6 = arith.constant 0 : index
    %c0_7 = arith.constant 0 : index
    %4 = vector.load %arg5[%c0_5, %c0_6, %c0_7] : memref<1x64x128xf32, #tpu.memory_space<vmem>>, vector<1x64x128xf32>
    %5 = vector.shape_cast %4 : vector<1x64x128xf32> to vector<64x128xf32>
    %c0_8 = arith.constant 0 : index
    %c0_9 = arith.constant 0 : index
    %c0_10 = arith.constant 0 : index
    %6 = vector.load %arg6[%c0_8, %c0_9, %c0_10] : memref<1x64x128xf32, #tpu.memory_space<vmem>>, vector<1x64x128xf32>
    %7 = vector.shape_cast %6 : vector<1x64x128xf32> to vector<64x128xf32>
    %c0_11 = arith.constant 0 : index
    %c0_12 = arith.constant 0 : index
    %8 = vector.load %arg7[%c0_11, %c0_12] : memref<1x128xf32, #tpu.memory_space<vmem>>, vector<1x128xf32>
    %c0_13 = arith.constant 0 : index
    %c0_14 = arith.constant 0 : index
    %9 = vector.load %arg8[%c0_13, %c0_14] : memref<64x1xf32, #tpu.memory_space<vmem>>, vector<64x1xf32>
    %c0_i32 = arith.constant 0 : i32
    %10 = arith.cmpi eq, %arg2, %c0_i32 : i32
    %11 = arith.extui %10 : i1 to i32
    %c0_i32_15 = arith.constant 0 : i32
    %12 = arith.cmpi ne, %11, %c0_i32_15 : i32
    scf.if %12 {
      %cst_41 = arith.constant 0.000000e+00 : f32
      %85 = vector.broadcast %cst_41 : f32 to vector<64x1xf32>
      %c0_42 = arith.constant 0 : index
      %c0_43 = arith.constant 0 : index
      %86 = vector.load %arg12[%c0_42, %c0_43] : memref<64x1xf32, #tpu.memory_space<vmem>>, vector<64x1xf32>
      tpu.vector_store %arg12[%c0_42, %c0_43], %85 {strides = array<i32>} : memref<64x1xf32, #tpu.memory_space<vmem>>, vector<64x1xf32>,
      %87 = vector.extract_strided_slice %3 {offsets = [0, 0], sizes = [64, 1], strides = [1, 1]} : vector<64x128xf32> to vector<64x1xf32>
      %88 = vector.extract_strided_slice %1 {offsets = [0, 0], sizes = [64, 1], strides = [1, 1]} : vector<64x128xf32> to vector<64x1xf32>
      %89 = math.atan2 %87, %88 : vector<64x1xf32>
      %c0_44 = arith.constant 0 : index
      %c0_45 = arith.constant 0 : index
      %90 = vector.load %arg13[%c0_44, %c0_45] : memref<64x1xf32, #tpu.memory_space<vmem>>, vector<64x1xf32>
      tpu.vector_store %arg13[%c0_44, %c0_45], %89 {strides = array<i32>} : memref<64x1xf32, #tpu.memory_space<vmem>>, vector<64x1xf32>,
    } else {
    }
    %cst = arith.constant 0.000000e+00 : f32
    %13 = vector.broadcast %cst : f32 to vector<64x128xf32>
    %14 = arith.cmpf oeq, %5, %13 : vector<64x128xf32>
    %cst_16 = arith.constant 0.000000e+00 : f32
    %15 = vector.broadcast %cst_16 : f32 to vector<64x128xf32>
    %16 = arith.cmpf oeq, %7, %15 : vector<64x128xf32>
    %17 = arith.andi %14, %16 : vector<64x128xi1>
    %cst_17 = arith.constant 0.000000e+00 : f32
    %18 = vector.broadcast %cst_17 : f32 to vector<64x128xf32>
    %19 = arith.cmpf oeq, %1, %18 : vector<64x128xf32>
    %cst_18 = arith.constant 0.000000e+00 : f32
    %20 = vector.broadcast %cst_18 : f32 to vector<64x128xf32>
    %21 = arith.cmpf oeq, %3, %20 : vector<64x128xf32>
    %22 = arith.andi %19, %21 : vector<64x128xi1>
    %cst_19 = arith.constant 0.000000e+00 : f32
    %23 = vector.broadcast %cst_19 : f32 to vector<64x128xf32>
    %24 = arith.subf %23, %3 : vector<64x128xf32>
    %25 = arith.mulf %7, %1 : vector<64x128xf32>
    %26 = arith.mulf %5, %3 : vector<64x128xf32>
    %27 = arith.subf %25, %26 : vector<64x128xf32>
    %28 = arith.select %22, %7, %27 : vector<64x128xi1>, vector<64x128xf32>
    %29 = arith.select %17, %24, %28 : vector<64x128xi1>, vector<64x128xf32>
    %30 = arith.mulf %5, %1 : vector<64x128xf32>
    %31 = arith.mulf %7, %3 : vector<64x128xf32>
    %32 = arith.addf %30, %31 : vector<64x128xf32>
    %33 = arith.select %22, %5, %32 : vector<64x128xi1>, vector<64x128xf32>
    %34 = arith.select %17, %1, %33 : vector<64x128xi1>, vector<64x128xf32>
    %35 = math.atan2 %29, %34 : vector<64x128xf32>
    %36 = vector.broadcast %9 : vector<64x1xf32> to vector<64x128xf32>
    %37 = arith.subf %35, %36 : vector<64x128xf32>
    %cst_20 = arith.constant 0.159154937 : f32
    %38 = vector.broadcast %cst_20 : f32 to vector<64x128xf32>
    %39 = arith.mulf %37, %38 : vector<64x128xf32>
    %cst_21 = arith.constant 5.000000e-01 : f32
    %40 = vector.broadcast %cst_21 : f32 to vector<64x128xf32>
    %41 = arith.addf %39, %40 : vector<64x128xf32>
    %42 = math.floor %41 : vector<64x128xf32>
    %cst_22 = arith.constant 6.28318548 : f32
    %43 = vector.broadcast %cst_22 : f32 to vector<64x128xf32>
    %44 = arith.mulf %43, %42 : vector<64x128xf32>
    %45 = arith.subf %37, %44 : vector<64x128xf32>
    %46 = vector.broadcast %9 : vector<64x1xf32> to vector<64x128xf32>
    %47 = arith.addf %45, %46 : vector<64x128xf32>
    %48 = arith.mulf %1, %1 : vector<64x128xf32>
    %49 = arith.mulf %3, %3 : vector<64x128xf32>
    %50 = arith.addf %48, %49 : vector<64x128xf32>
    %51 = math.sqrt %50 : vector<64x128xf32>
    %52 = arith.mulf %5, %5 : vector<64x128xf32>
    %53 = arith.mulf %7, %7 : vector<64x128xf32>
    %54 = arith.addf %52, %53 : vector<64x128xf32>
    %55 = math.sqrt %54 : vector<64x128xf32>
    %56 = vector.broadcast %8 : vector<1x128xf32> to vector<64x128xf32>
    %57 = arith.mulf %56, %55 : vector<64x128xf32>
    %cst_23 = arith.constant 1.000000e+00 : f32
    %58 = vector.broadcast %cst_23 : f32 to vector<1x128xf32>
    %59 = arith.subf %58, %8 : vector<1x128xf32>
    %60 = vector.broadcast %59 : vector<1x128xf32> to vector<64x128xf32>
    %61 = arith.mulf %60, %51 : vector<64x128xf32>
    %62 = arith.addf %57, %61 : vector<64x128xf32>
    %c0_24 = arith.constant 0 : index
    %c0_25 = arith.constant 0 : index
    %63 = vector.load %arg9[%c0_24, %c0_25] : memref<128x128xf32, #tpu.memory_space<vmem>>, vector<128x128xf32>
    %cst_26 = arith.constant dense<0.000000e+00> : vector<64x128xf32>
    %64 = tpu.matmul %47, %63, %cst_26 {dimension_numbers = #tpu.dot_dimension_numbers<[1], [0], [0], [1], [0, 0, 1, 1], [], []>, precision = #tpu.contract_precision<fp32>} : vector<64x128xf32>, vector<128x128xf32>, vector<64x128xf32> -> vector<64x128xf32>
    %c0_27 = arith.constant 0 : index
    %c0_28 = arith.constant 0 : index
    %65 = vector.load %arg12[%c0_27, %c0_28] : memref<64x1xf32, #tpu.memory_space<vmem>>, vector<64x1xf32>
    %66 = vector.broadcast %65 : vector<64x1xf32> to vector<64x128xf32>
    %67 = arith.addf %64, %66 : vector<64x128xf32>
    %c0_29 = arith.constant 0 : index
    %c0_30 = arith.constant 0 : index
    %68 = vector.load %arg13[%c0_29, %c0_30] : memref<64x1xf32, #tpu.memory_space<vmem>>, vector<64x1xf32>
    %69 = vector.broadcast %68 : vector<64x1xf32> to vector<64x128xf32>
    %70 = arith.addf %67, %69 : vector<64x128xf32>
    %71 = vector.extract_strided_slice %70 {offsets = [0, 127], sizes = [64, 1], strides = [1, 1]} : vector<64x128xf32> to vector<64x1xf32>
    %c0_31 = arith.constant 0 : index
    %c0_32 = arith.constant 0 : index
    %72 = vector.load %arg12[%c0_31, %c0_32] : memref<64x1xf32, #tpu.memory_space<vmem>>, vector<64x1xf32>
    tpu.vector_store %arg12[%c0_31, %c0_32], %71 {strides = array<i32>} : memref<64x1xf32, #tpu.memory_space<vmem>>, vector<64x1xf32>,
    %73 = vector.extract_strided_slice %47 {offsets = [0, 127], sizes = [64, 1], strides = [1, 1]} : vector<64x128xf32> to vector<64x1xf32>
    %c0_33 = arith.constant 0 : index
    %c0_34 = arith.constant 0 : index
    %74 = vector.load %arg13[%c0_33, %c0_34] : memref<64x1xf32, #tpu.memory_space<vmem>>, vector<64x1xf32>
    tpu.vector_store %arg13[%c0_33, %c0_34], %73 {strides = array<i32>} : memref<64x1xf32, #tpu.memory_space<vmem>>, vector<64x1xf32>,
    %75 = math.cos %70 : vector<64x128xf32>
    %76 = arith.mulf %62, %75 : vector<64x128xf32>
    %c0_35 = arith.constant 0 : index
    %c0_36 = arith.constant 0 : index
    %c0_37 = arith.constant 0 : index
    %77 = vector.load %arg10[%c0_35, %c0_36, %c0_37] : memref<1x64x128xf32, #tpu.memory_space<vmem>>, vector<1x64x128xf32>
    %78 = vector.shape_cast %77 : vector<1x64x128xf32> to vector<64x128xf32>
    %79 = vector.shape_cast %76 : vector<64x128xf32> to vector<1x64x128xf32>
    tpu.vector_store %arg10[%c0_35, %c0_36, %c0_37], %79 {strides = array<i32>} : memref<1x64x128xf32, #tpu.memory_space<vmem>>, vector<1x64x128xf32>,
    %80 = math.sin %70 : vector<64x128xf32>
    %81 = arith.mulf %62, %80 : vector<64x128xf32>
    %c0_38 = arith.constant 0 : index
    %c0_39 = arith.constant 0 : index
    %c0_40 = arith.constant 0 : index
    %82 = vector.load %arg11[%c0_38, %c0_39, %c0_40] : memref<1x64x128xf32, #tpu.memory_space<vmem>>, vector<1x64x128xf32>
    %83 = vector.shape_cast %82 : vector<1x64x128xf32> to vector<64x128xf32>
    %84 = vector.shape_cast %81 : vector<64x128xf32> to vector<1x64x128xf32>
    tpu.vector_store %arg11[%c0_38, %c0_39, %c0_40], %84 {strides = array<i32>} : memref<1x64x128xf32, #tpu.memory_space<vmem>>, vector<1x64x128xf32>,
    return
  }
  func.func @transform_0(%arg0: i32, %arg1: i32, %arg2: i32) -> (i32, i32, i32) {
    %c0_i32 = arith.constant 0 : i32
    return %arg0, %arg1, %arg2 : i32, i32, i32
  }
  func.func @transform_1(%arg0: i32, %arg1: i32, %arg2: i32) -> (i32, i32, i32) {
    %c0_i32 = arith.constant 0 : i32
    return %arg0, %arg1, %arg2 : i32, i32, i32
  }
  func.func @transform_2(%arg0: i32, %arg1: i32, %arg2: i32) -> (i32, i32, i32) {
    %c0_i32 = arith.constant 0 : i32
    return %arg0, %arg1, %arg2 : i32, i32, i32
  }
  func.func @transform_3(%arg0: i32, %arg1: i32, %arg2: i32) -> (i32, i32, i32) {
    %c0_i32 = arith.constant 0 : i32
    return %arg0, %arg1, %arg2 : i32, i32, i32
  }
  func.func @transform_4(%arg0: i32, %arg1: i32, %arg2: i32) -> (i32, i32) {
    %c0_i32 = arith.constant 0 : i32
    %c0_i32_0 = arith.constant 0 : i32
    return %c0_i32, %arg2 : i32, i32
  }
  func.func @transform_5(%arg0: i32, %arg1: i32, %arg2: i32) -> (i32, i32) {
    %c0_i32 = arith.constant 0 : i32
    %c0_i32_0 = arith.constant 0 : i32
    return %arg1, %c0_i32 : i32, i32
  }
  func.func @transform_6(%arg0: i32, %arg1: i32, %arg2: i32) -> (i32, i32) {
    %c0_i32 = arith.constant 0 : i32
    %c0_i32_0 = arith.constant 0 : i32
    %c0_i32_1 = arith.constant 0 : i32
    return %c0_i32, %c0_i32_0 : i32, i32
  }
  func.func @transform_7(%arg0: i32, %arg1: i32, %arg2: i32) -> (i32, i32, i32) {
    %c0_i32 = arith.constant 0 : i32
    return %arg0, %arg1, %arg2 : i32, i32, i32
  }
  func.func @transform_8(%arg0: i32, %arg1: i32, %arg2: i32) -> (i32, i32, i32) {
    %c0_i32 = arith.constant 0 : i32
    return %arg0, %arg1, %arg2 : i32, i32, i32
  }
}

</mosaic_0001>

<llo_original>
// kernel: tpu_custom_call.1
$region0: #{tpu_custom_call.1}
  #allocation0 [shape = 'u32[]', space=smem, size = 0x4, offset = 0x4, fixed_abs, tag = 'smem constant byte address 0x4 - core index']
  #allocation1 [shape = 'u32[72,128]{1,0:T(1,128)}', space=vmem, size = 0x9000, scoped, tag = 'internal scratch']
  #allocation2 [shape = 'f32[64,1]{1,0:T(8,128)}', space=vmem, size = 0x8000, scoped, tag = 'scratch operand']
  #allocation3 [shape = 'f32[64,1]{1,0:T(8,128)}', space=vmem, size = 0x8000, scoped, tag = 'scratch operand']
  %s0 = inlined_call_operand.hbm [shape: f32[2,64,128], index: 0, kind: input, shape index: {}]
  %s1 = inlined_call_operand.hbm [shape: f32[2,64,128], index: 1, kind: input, shape index: {}]
  %s2 = inlined_call_operand.hbm [shape: f32[2,64,128], index: 2, kind: input, shape index: {}]
  %s3 = inlined_call_operand.hbm [shape: f32[2,64,128], index: 3, kind: input, shape index: {}]
  %s4 = inlined_call_operand.vmem [shape: f32[1,128], index: 4, kind: input, shape index: {}]
  %s5 = inlined_call_operand.vmem [shape: f32[64,1], index: 5, kind: input, shape index: {}]
  %s6 = inlined_call_operand.hbm [shape: f32[128,128], index: 6, kind: input, shape index: {}]
  %s7 = inlined_call_operand.hbm [shape: f32[2,64,128], index: 7, kind: output, shape index: {0}]
  %s8 = inlined_call_operand.hbm [shape: f32[2,64,128], index: 8, kind: output, shape index: {1}]
  %9 = xla_tuple %s7, %s8
  %s10 = sld [smem:[#allocation0]]
  $region93: #{tpu_custom_call.1} parent=0
    _
  %s12 = ssub.s32 1, %s10
  %s13 = scalar_select 0, %s12, %s10
  $region1: #{tpu_custom_call.1} parent=0
    #allocation4 [shape = 'u8[65536]{0}', space=vmem, size = 0x10000, scoped, tag = 'input window, operand 0']
    #allocation5 [shape = 's32[2]{0}', space=sflag, size = 0x8, scoped, tag = 'scoped memory for tpu_custom_call.1']
    #allocation6 [shape = 's32[2]{0}', space=sflag, size = 0x8, scoped, tag = 'scoped memory for tpu_custom_call.1']
    #allocation7 [shape = 'u8[65536]{0}', space=vmem, size = 0x10000, scoped, tag = 'input window, operand 1']
    #allocation8 [shape = 's32[2]{0}', space=sflag, size = 0x8, scoped, tag = 'scoped memory for tpu_custom_call.1']
    #allocation9 [shape = 'u8[65536]{0}', space=vmem, size = 0x10000, scoped, tag = 'input window, operand 2']
    #allocation10 [shape = 'u8[65536]{0}', space=vmem, size = 0x10000, scoped, tag = 'input window, operand 3']
    #allocation11 [shape = 's32[2]{0}', space=sflag, size = 0x8, scoped, tag = 'scoped memory for tpu_custom_call.1']
    #allocation12 [shape = 'u8[65536]{0}', space=vmem, size = 0x10000, scoped, tag = 'input window, operand 6, single buffered']
    #allocation13 [shape = 'u8[65536]{0}', space=vmem, size = 0x10000, scoped, tag = 'output window, operand 0']
    #allocation14 [shape = 'u8[65536]{0}', space=vmem, size = 0x10000, scoped, tag = 'output window, operand 1']
    #allocation15 [shape = 's32[2]{0}', space=sflag, size = 0x8, scoped, tag = 'scoped memory for tpu_custom_call.1']
    %14 = vsyncpa [#allocation5], 0
    %s15 = scalar_lea.sflag [#allocation5], 1
    %16 = vsyncpa %s15, 0
    %17 = vsyncpa [#allocation8], 0
    %s18 = scalar_lea.sflag [#allocation8], 1
    %19 = vsyncpa %s18, 0
    %20 = vsyncpa [#allocation11], 0
    %s21 = scalar_lea.sflag [#allocation11], 1
    %22 = vsyncpa %s21, 0
    %23 = vsyncpa [#allocation6], 0
    %s24 = scalar_lea.sflag [#allocation6], 1
    %25 = vsyncpa %s24, 0
    %26 = vsyncpa [#allocation15], 0
    %s27 = scalar_lea.sflag [#allocation15], 1
    %28 = vsyncpa %s27, 0
    loop: start=0, step=1, limit=4
    $region2: #{tpu_custom_call.1} parent=1 // loop_pre_header
      _
    $region3: #{tpu_custom_call.1} parent=1 // loop_header
      %s30 = sphi 0, %s34
      %p31 = scmp.ge.s32.totalorder %s30, 4
      %s37 = sphi 0, %s56
      %s38 = sphi 0, %s52
      %s39 = sphi 0, %s48
      %s40 = sphi 0, %s37
      %s41 = sphi 0, %s38
      %s42 = sphi 0, %s39
      %s43 = sphi 0, %s40
      %s44 = sphi 0, %s41
      %s45 = sphi 0, %s42
      %s63 = sphi 0, %s65
      %s66 = sphi 0, %s63
      %s67 = sphi 0, %s66
      %s83 = sphi 0, %s67
      %s93 = sphi 0, %s95
      %s96 = sphi 0, %s93
      %s97 = sphi 0, %s96
      %s113 = sphi 0, %s97
      %s123 = sphi 0, %s125
      %s126 = sphi 0, %s123
      %s127 = sphi 0, %s126
      %s143 = sphi 0, %s127
      %s153 = sphi 0, %s155
      %s156 = sphi 0, %s153
      %s157 = sphi 0, %s156
      %s173 = sphi 0, %s157
      %s179 = sphi 0, %s181
      %s182 = sphi 0, %s179
      %s183 = sphi 0, %s182
      %s199 = sphi 0, %s183
      %s205 = sphi 0, %s207
      %s208 = sphi 0, %s205
      %s209 = sphi 0, %s208
      %s225 = sphi 0, %s209
      %s229 = sphi 0, %s229
      %s231 = sphi 0, %s229
      %s232 = sphi 0, %s231
      %s246 = sphi 0, %s232
      %s256 = sphi 0, %s258
      %s259 = sphi 0, %s256
      %s260 = sphi 0, %s259
      %s276 = sphi 0, %s260
      %s286 = sphi 0, %s288
      %s289 = sphi 0, %s286
      %s290 = sphi 0, %s289
      %s306 = sphi 0, %s290
    $region4: #{tpu_custom_call.1} parent=1 // loop_header_branch
      %33 = sbr.rel (%p31) target = $region8
    $region5: #{tpu_custom_call.1} parent=1 // loop_body
      %s35 = ssub.s32 %s30, 1
      %s36 = ssub.s32 %s30, 2
      %s46 = sadd.s32 1, %s39
      %p47 = scmp.ge.s32.totalorder %s46, 1
      %s48 = scalar_select %p47, 0, %s46
      %s49 = sadd.s32 1, %s38
      %s50 = scalar_select %p47, %s49, %s38
      %p51 = scmp.ge.s32.totalorder %s50, 1
      %s52 = scalar_select %p51, 0, %s50
      %s53 = sadd.s32 1, %s37
      %s54 = scalar_select %p51, %s53, %s37
      %p55 = scmp.ge.s32.totalorder %s54, 2
      %s56 = scalar_select %p55, 0, %s54
      %s57 = ssub.s32 %s37, %s56
      %s58 = ssub.s32 %s38, %s52
      %s59 = sor.u32 %s57, %s58
      %s60 = ssub.s32 %s39, %s48
      %s61 = sor.u32 %s59, %s60
      %p62 = scmp.eq.s32.totalorder %s61, 0
      %s64 = sadd.s32 %s63, 1
      %s65 = scalar_select %p62, %s63, %s64
      %p68 = pneg %p62
      %p69 = scmp.eq.s32.totalorder %s30, 1
      %p70 = por %p68, %p69
      %p71 = scmp.ne.s32.totalorder %s63, %s66
      %p72 = scmp.eq.s32.totalorder %s30, 0
      %p73 = por %p71, %p72
      %p74 = scmp.ne.s32.totalorder %s63, %s66
      %p75 = scmp.eq.s32.totalorder %s35, 1
      %p76 = por %p74, %p75
      %p77 = scmp.ne.s32.totalorder %s66, %s67
      %p78 = scmp.eq.s32.totalorder %s35, 0
      %p79 = por %p77, %p78
      %p80 = scmp.ne.s32.totalorder %s66, %s67
      %p81 = scmp.eq.s32.totalorder %s36, 1
      %p82 = por %p80, %p81
      %p84 = scmp.ne.s32.totalorder %s67, %s83
      %p85 = scmp.eq.s32.totalorder %s36, 0
      %p86 = por %p84, %p85
      %s87 = ssub.s32 %s37, %s56
      %s88 = ssub.s32 %s38, %s52
      %s89 = sor.u32 %s87, %s88
      %s90 = ssub.s32 %s39, %s48
      %s91 = sor.u32 %s89, %s90
      %p92 = scmp.eq.s32.totalorder %s91, 0
      %s94 = sadd.s32 %s93, 1
      %s95 = scalar_select %p92, %s93, %s94
      %p98 = pneg %p92
      %p99 = scmp.eq.s32.totalorder %s30, 1
      %p100 = por %p98, %p99
      %p101 = scmp.ne.s32.totalorder %s93, %s96
      %p102 = scmp.eq.s32.totalorder %s30, 0
      %p103 = por %p101, %p102
      %p104 = scmp.ne.s32.totalorder %s93, %s96
      %p105 = scmp.eq.s32.totalorder %s35, 1
      %p106 = por %p104, %p105
      %p107 = scmp.ne.s32.totalorder %s96, %s97
      %p108 = scmp.eq.s32.totalorder %s35, 0
      %p109 = por %p107, %p108
      %p110 = scmp.ne.s32.totalorder %s96, %s97
      %p111 = scmp.eq.s32.totalorder %s36, 1
      %p112 = por %p110, %p111
      %p114 = scmp.ne.s32.totalorder %s97, %s113
      %p115 = scmp.eq.s32.totalorder %s36, 0
      %p116 = por %p114, %p115
      %s117 = ssub.s32 %s37, %s56
      %s118 = ssub.s32 %s38, %s52
      %s119 = sor.u32 %s117, %s118
      %s120 = ssub.s32 %s39, %s48
      %s121 = sor.u32 %s119, %s120
      %p122 = scmp.eq.s32.totalorder %s121, 0
      %s124 = sadd.s32 %s123, 1
      %s125 = scalar_select %p122, %s123, %s124
      %p128 = pneg %p122
      %p129 = scmp.eq.s32.totalorder %s30, 1
      %p130 = por %p128, %p129
      %p131 = scmp.ne.s32.totalorder %s123, %s126
      %p132 = scmp.eq.s32.totalorder %s30, 0
      %p133 = por %p131, %p132
      %p134 = scmp.ne.s32.totalorder %s123, %s126
      %p135 = scmp.eq.s32.totalorder %s35, 1
      %p136 = por %p134, %p135
      %p137 = scmp.ne.s32.totalorder %s126, %s127
      %p138 = scmp.eq.s32.totalorder %s35, 0
      %p139 = por %p137, %p138
      %p140 = scmp.ne.s32.totalorder %s126, %s127
      %p141 = scmp.eq.s32.totalorder %s36, 1
      %p142 = por %p140, %p141
      %p144 = scmp.ne.s32.totalorder %s127, %s143
      %p145 = scmp.eq.s32.totalorder %s36, 0
      %p146 = por %p144, %p145
      %s147 = ssub.s32 %s37, %s56
      %s148 = ssub.s32 %s38, %s52
      %s149 = sor.u32 %s147, %s148
      %s150 = ssub.s32 %s39, %s48
      %s151 = sor.u32 %s149, %s150
      %p152 = scmp.eq.s32.totalorder %s151, 0
      %s154 = sadd.s32 %s153, 1
      %s155 = scalar_select %p152, %s153, %s154
      %p158 = pneg %p152
      %p159 = scmp.eq.s32.totalorder %s30, 1
      %p160 = por %p158, %p159
      %p161 = scmp.ne.s32.totalorder %s153, %s156
      %p162 = scmp.eq.s32.totalorder %s30, 0
      %p163 = por %p161, %p162
      %p164 = scmp.ne.s32.totalorder %s153, %s156
      %p165 = scmp.eq.s32.totalorder %s35, 1
      %p166 = por %p164, %p165
      %p167 = scmp.ne.s32.totalorder %s156, %s157
      %p168 = scmp.eq.s32.totalorder %s35, 0
      %p169 = por %p167, %p168
      %p170 = scmp.ne.s32.totalorder %s156, %s157
      %p171 = scmp.eq.s32.totalorder %s36, 1
      %p172 = por %p170, %p171
      %p174 = scmp.ne.s32.totalorder %s157, %s173
      %p175 = scmp.eq.s32.totalorder %s36, 0
      %p176 = por %p174, %p175
      %s177 = ssub.s32 %s39, %s48
      %p178 = scmp.eq.s32.totalorder %s177, 0
      %s180 = sadd.s32 %s179, 1
      %s181 = scalar_select %p178, %s179, %s180
      %p184 = pneg %p178
      %p185 = scmp.eq.s32.totalorder %s30, 1
      %p186 = por %p184, %p185
      %p187 = scmp.ne.s32.totalorder %s179, %s182
      %p188 = scmp.eq.s32.totalorder %s30, 0
      %p189 = por %p187, %p188
      %p190 = scmp.ne.s32.totalorder %s179, %s182
      %p191 = scmp.eq.s32.totalorder %s35, 1
      %p192 = por %p190, %p191
      %p193 = scmp.ne.s32.totalorder %s182, %s183
      %p194 = scmp.eq.s32.totalorder %s35, 0
      %p195 = por %p193, %p194
      %p196 = scmp.ne.s32.totalorder %s182, %s183
      %p197 = scmp.eq.s32.totalorder %s36, 1
      %p198 = por %p196, %p197
      %p200 = scmp.ne.s32.totalorder %s183, %s199
      %p201 = scmp.eq.s32.totalorder %s36, 0
      %p202 = por %p200, %p201
      %s203 = ssub.s32 %s38, %s52
      %p204 = scmp.eq.s32.totalorder %s203, 0
      %s206 = sadd.s32 %s205, 1
      %s207 = scalar_select %p204, %s205, %s206
      %p210 = pneg %p204
      %p211 = scmp.eq.s32.totalorder %s30, 1
      %p212 = por %p210, %p211
      %p213 = scmp.ne.s32.totalorder %s205, %s208
      %p214 = scmp.eq.s32.totalorder %s30, 0
      %p215 = por %p213, %p214
      %p216 = scmp.ne.s32.totalorder %s205, %s208
      %p217 = scmp.eq.s32.totalorder %s35, 1
      %p218 = por %p216, %p217
      %p219 = scmp.ne.s32.totalorder %s208, %s209
      %p220 = scmp.eq.s32.totalorder %s35, 0
      %p221 = por %p219, %p220
      %p222 = scmp.ne.s32.totalorder %s208, %s209
      %p223 = scmp.eq.s32.totalorder %s36, 1
      %p224 = por %p222, %p223
      %p226 = scmp.ne.s32.totalorder %s209, %s225
      %p227 = scmp.eq.s32.totalorder %s36, 0
      %p228 = por %p226, %p227
      %s230 = sadd.s32 %s229, 1
      %p233 = scmp.eq.s32.totalorder %s30, 1
      %p234 = scmp.ne.s32.totalorder %s229, %s231
      %p235 = scmp.eq.s32.totalorder %s30, 0
      %p236 = por %p234, %p235
      %p237 = scmp.ne.s32.totalorder %s229, %s231
      %p238 = scmp.eq.s32.totalorder %s35, 1
      %p239 = por %p237, %p238
      %p240 = scmp.ne.s32.totalorder %s231, %s232
      %p241 = scmp.eq.s32.totalorder %s35, 0
      %p242 = por %p240, %p241
      %p243 = scmp.ne.s32.totalorder %s231, %s232
      %p244 = scmp.eq.s32.totalorder %s36, 1
      %p245 = por %p243, %p244
      %p247 = scmp.ne.s32.totalorder %s232, %s246
      %p248 = scmp.eq.s32.totalorder %s36, 0
      %p249 = por %p247, %p248
      %s250 = ssub.s32 %s37, %s56
      %s251 = ssub.s32 %s38, %s52
      %s252 = sor.u32 %s250, %s251
      %s253 = ssub.s32 %s39, %s48
      %s254 = sor.u32 %s252, %s253
      %p255 = scmp.eq.s32.totalorder %s254, 0
      %s257 = sadd.s32 %s256, 1
      %s258 = scalar_select %p255, %s256, %s257
      %p261 = pneg %p255
      %p262 = scmp.eq.s32.totalorder %s30, 1
      %p263 = por %p261, %p262
      %p264 = scmp.ne.s32.totalorder %s256, %s259
      %p265 = scmp.eq.s32.totalorder %s30, 0
      %p266 = por %p264, %p265
      %p267 = scmp.ne.s32.totalorder %s256, %s259
      %p268 = scmp.eq.s32.totalorder %s35, 1
      %p269 = por %p267, %p268
      %p270 = scmp.ne.s32.totalorder %s259, %s260
      %p271 = scmp.eq.s32.totalorder %s35, 0
      %p272 = por %p270, %p271
      %p273 = scmp.ne.s32.totalorder %s259, %s260
      %p274 = scmp.eq.s32.totalorder %s36, 1
      %p275 = por %p273, %p274
      %p277 = scmp.ne.s32.totalorder %s260, %s276
      %p278 = scmp.eq.s32.totalorder %s36, 0
      %p279 = por %p277, %p278
      %s280 = ssub.s32 %s37, %s56
      %s281 = ssub.s32 %s38, %s52
      %s282 = sor.u32 %s280, %s281
      %s283 = ssub.s32 %s39, %s48
      %s284 = sor.u32 %s282, %s283
      %p285 = scmp.eq.s32.totalorder %s284, 0
      %s287 = sadd.s32 %s286, 1
      %s288 = scalar_select %p285, %s286, %s287
      %p291 = pneg %p285
      %p292 = scmp.eq.s32.totalorder %s30, 1
      %p293 = por %p291, %p292
      %p294 = scmp.ne.s32.totalorder %s286, %s289
      %p295 = scmp.eq.s32.totalorder %s30, 0
      %p296 = por %p294, %p295
      %p297 = scmp.ne.s32.totalorder %s286, %s289
      %p298 = scmp.eq.s32.totalorder %s35, 1
      %p299 = por %p297, %p298
      %p300 = scmp.ne.s32.totalorder %s289, %s290
      %p301 = scmp.eq.s32.totalorder %s35, 0
      %p302 = por %p300, %p301
      %p303 = scmp.ne.s32.totalorder %s289, %s290
      %p304 = scmp.eq.s32.totalorder %s36, 1
      %p305 = por %p303, %p304
      %p307 = scmp.ne.s32.totalorder %s290, %s306
      %p308 = scmp.eq.s32.totalorder %s36, 0
      %p309 = por %p307, %p308
      %p310 = scmp.le.s32.totalorder 1, %s30
      %p311 = scmp.lt.s32.totalorder %s30, 3
      %p312 = pnand %p310, %p311
      %p313 = pneg %p312
      // Predicated region
      $region9: #{tpu_custom_call.1} parent=5 // pred_check
        _
      $region10: #{tpu_custom_call.1} parent=5 // pred_check_branch
        %315 = sbr.rel (%p312) target = $region12
      $region11: #{tpu_custom_call.1} parent=5 // pred_region
        %s316 = ssub.s32 %s30, 1
        // Predicated region
        $region13: #{tpu_custom_call.1} parent=11 // pred_check
          %p317 = pneg %p195
        $region14: #{tpu_custom_call.1} parent=11 // pred_check_branch
          %319 = sbr.rel (%p317) target = $region16
        $region15: #{tpu_custom_call.1} parent=11 // pred_region
          %p320 = scmp.lt.s32.totalorder %s42, 0
          %s321 = scalar_select %p320, %s42, 0
          %s322 = scalar_lea.vmem %s4, %s321
        $region16: #{tpu_custom_call.1} parent=11 // pred_fallthru
          _
        // Predicated region
        $region17: #{tpu_custom_call.1} parent=11 // pred_check
          %p323 = pneg %p221
        $region18: #{tpu_custom_call.1} parent=11 // pred_check_branch
          %325 = sbr.rel (%p323) target = $region20
        $region19: #{tpu_custom_call.1} parent=11 // pred_region
          %s326 = smul.u32 8, %s41
          %p327 = scmp.lt.s32.totalorder %s326, 7
          %s328 = scalar_select %p327, %s326, 7
          %s329 = smul.addr %s328, 8
          %s330 = scalar_lea.vmem %s5, %s329
          %s331 = smul.u32 8, %s41
        $region20: #{tpu_custom_call.1} parent=11 // pred_fallthru
          _
        // Predicated region
        $region21: #{tpu_custom_call.1} parent=11 // pred_check
          %p332 = pneg %p242
        $region22: #{tpu_custom_call.1} parent=11 // pred_check_branch
          %334 = sbr.rel (%p332) target = $region24
        $region23: #{tpu_custom_call.1} parent=11 // pred_region
          %336 = vsyncadd [#allocation11], 0
          %s337 = sshll.u32 %s6, 4
          %s338 = int_to_ptr.hbm [resolvable:$true] %s337
          %s339 = sshll.u32 [#allocation12], 4
          %s340 = int_to_ptr.vmem [resolvable:$true] %s339
          %345 = dma.hbm_to_vmem [thread:$0]  %s338, 2048, %s340, [#allocation11], 128, 128, 8
        $region24: #{tpu_custom_call.1} parent=11 // pred_fallthru
          _
      $region12: #{tpu_custom_call.1} parent=5 // pred_fallthru
        _
      %p346 = scmp.lt.s32.totalorder %s30, 2
      // Predicated region
      $region25: #{tpu_custom_call.1} parent=5 // pred_check
        %p347 = pneg %p346
      $region26: #{tpu_custom_call.1} parent=5 // pred_check_branch
        %349 = sbr.rel (%p347) target = $region28
      $region27: #{tpu_custom_call.1} parent=5 // pred_region
        // Predicated region
        $region29: #{tpu_custom_call.1} parent=27 // pred_check
          %p350 = pneg %p73
        $region30: #{tpu_custom_call.1} parent=27 // pred_check_branch
          %352 = sbr.rel (%p350) target = $region32
        $region31: #{tpu_custom_call.1} parent=27 // pred_region
          %s353 = sand.u32 %s63, 1
          %s354 = scalar_lea.sflag [#allocation5], %s353
          %s355 = sand.u32 %s63, 1
          %s356 = smul.addr %s355, 64
          %s357 = scalar_lea.vmem [#allocation4], %s356
          %s358 = smul.u32 8, %s38
          %360 = vsyncadd %s354, 0
          %s361 = sadd.s32 %s39, %s358
          %s362 = smul.addr %s37, 8
          %s363 = sadd.s32 %s361, %s362
          %s364 = smul.addr %s363, 8
          %s365 = scalar_lea.hbm %s0, %s364
          %s366 = sshll.u32 %s365, 4
          %s367 = int_to_ptr.hbm [resolvable:$true] %s366
          %s368 = sshll.u32 %s357, 4
          %s369 = int_to_ptr.vmem [resolvable:$true] %s368
          %374 = dma.hbm_to_vmem [thread:$0]  %s367, 1024, %s369, %s354, 128, 128, 8
        $region32: #{tpu_custom_call.1} parent=27 // pred_fallthru
          _
        // Predicated region
        $region33: #{tpu_custom_call.1} parent=27 // pred_check
          %p375 = pneg %p103
        $region34: #{tpu_custom_call.1} parent=27 // pred_check_branch
          %377 = sbr.rel (%p375) target = $region36
        $region35: #{tpu_custom_call.1} parent=27 // pred_region
          %s378 = sand.u32 %s30, 1
          %s379 = scalar_lea.sflag [#allocation8], %s378
          %s380 = sand.u32 %s93, 1
          %s381 = smul.addr %s380, 64
          %s382 = scalar_lea.vmem [#allocation7], %s381
          %s383 = smul.u32 8, %s38
          %385 = vsyncadd %s379, 0
          %s386 = sadd.s32 %s39, %s383
          %s387 = smul.addr %s37, 8
          %s388 = sadd.s32 %s386, %s387
          %s389 = smul.addr %s388, 8
          %s390 = scalar_lea.hbm %s1, %s389
          %s391 = sshll.u32 %s390, 4
          %s392 = int_to_ptr.hbm [resolvable:$true] %s391
          %s393 = sshll.u32 %s382, 4
          %s394 = int_to_ptr.vmem [resolvable:$true] %s393
          %399 = dma.hbm_to_vmem [thread:$0]  %s392, 1024, %s394, %s379, 128, 128, 8
        $region36: #{tpu_custom_call.1} parent=27 // pred_fallthru
          _
        // Predicated region
        $region37: #{tpu_custom_call.1} parent=27 // pred_check
          %p400 = pneg %p133
        $region38: #{tpu_custom_call.1} parent=27 // pred_check_branch
          %402 = sbr.rel (%p400) target = $region40
        $region39: #{tpu_custom_call.1} parent=27 // pred_region
          %s403 = sand.u32 %s30, 1
          %s404 = scalar_lea.sflag [#allocation8], %s403
          %s405 = sand.u32 %s123, 1
          %s406 = smul.addr %s405, 64
          %s407 = scalar_lea.vmem [#allocation9], %s406
          %s408 = smul.u32 8, %s38
          %410 = vsyncadd %s404, 0
          %s411 = sadd.s32 %s39, %s408
          %s412 = smul.addr %s37, 8
          %s413 = sadd.s32 %s411, %s412
          %s414 = smul.addr %s413, 8
          %s415 = scalar_lea.hbm %s2, %s414
          %s416 = sshll.u32 %s415, 4
          %s417 = int_to_ptr.hbm [resolvable:$true] %s416
          %s418 = sshll.u32 %s407, 4
          %s419 = int_to_ptr.vmem [resolvable:$true] %s418
          %424 = dma.hbm_to_vmem [thread:$0]  %s417, 1024, %s419, %s404, 128, 128, 8
        $region40: #{tpu_custom_call.1} parent=27 // pred_fallthru
          _
        // Predicated region
        $region41: #{tpu_custom_call.1} parent=27 // pred_check
          %p425 = pneg %p163
        $region42: #{tpu_custom_call.1} parent=27 // pred_check_branch
          %427 = sbr.rel (%p425) target = $region44
        $region43: #{tpu_custom_call.1} parent=27 // pred_region
          %s428 = sand.u32 %s30, 1
          %s429 = scalar_lea.sflag [#allocation11], %s428
          %s430 = sand.u32 %s153, 1
          %s431 = smul.addr %s430, 64
          %s432 = scalar_lea.vmem [#allocation10], %s431
          %s433 = smul.u32 8, %s38
          %435 = vsyncadd %s429, 0
          %s436 = sadd.s32 %s39, %s433
          %s437 = smul.addr %s37, 8
          %s438 = sadd.s32 %s436, %s437
          %s439 = smul.addr %s438, 8
          %s440 = scalar_lea.hbm %s3, %s439
          %s441 = sshll.u32 %s440, 4
          %s442 = int_to_ptr.hbm [resolvable:$true] %s441
          %s443 = sshll.u32 %s432, 4
          %s444 = int_to_ptr.vmem [resolvable:$true] %s443
          %449 = dma.hbm_to_vmem [thread:$0]  %s442, 1024, %s444, %s429, 128, 128, 8
        $region44: #{tpu_custom_call.1} parent=27 // pred_fallthru
          _
      $region28: #{tpu_custom_call.1} parent=5 // pred_fallthru
        _
      %p450 = scmp.le.s32.totalorder 1, %s30
      %p451 = scmp.lt.s32.totalorder %s30, 3
      %p452 = pnand %p450, %p451
      %p453 = pneg %p452
      // Predicated region
      $region45: #{tpu_custom_call.1} parent=5 // pred_check
        _
      $region46: #{tpu_custom_call.1} parent=5 // pred_check_branch
        %455 = sbr.rel (%p452) target = $region48
      $region47: #{tpu_custom_call.1} parent=5 // pred_region
        %s456 = ssub.s32 %s30, 1
        %s457 = sand.u32 %s66, 1
        %s458 = scalar_lea.sflag [#allocation5], %s457
        %s459 = sand.u32 %s66, 1
        %s460 = smul.addr %s459, 64
        %s461 = scalar_lea.vmem [#allocation4], %s460
        // Predicated region
        $region49: #{tpu_custom_call.1} parent=47 // pred_check
          %p462 = pneg %p79
        $region50: #{tpu_custom_call.1} parent=47 // pred_check_branch
          %464 = sbr.rel (%p462) target = $region52
        $region51: #{tpu_custom_call.1} parent=47 // pred_region
          %466 = dma.done %s458, 1024
        $region52: #{tpu_custom_call.1} parent=47 // pred_fallthru
          _
        %s467 = sand.u32 %s35, 1
        %s468 = scalar_lea.sflag [#allocation8], %s467
        %s469 = sand.u32 %s96, 1
        %s470 = smul.addr %s469, 64
        %s471 = scalar_lea.vmem [#allocation7], %s470
        // Predicated region
        $region53: #{tpu_custom_call.1} parent=47 // pred_check
          %p472 = pneg %p109
        $region54: #{tpu_custom_call.1} parent=47 // pred_check_branch
          %474 = sbr.rel (%p472) target = $region56
        $region55: #{tpu_custom_call.1} parent=47 // pred_region
          %476 = dma.done %s468, 1024
        $region56: #{tpu_custom_call.1} parent=47 // pred_fallthru
          _
        %s477 = sand.u32 %s35, 1
        %s478 = scalar_lea.sflag [#allocation8], %s477
        %s479 = sand.u32 %s126, 1
        %s480 = smul.addr %s479, 64
        %s481 = scalar_lea.vmem [#allocation9], %s480
        // Predicated region
        $region57: #{tpu_custom_call.1} parent=47 // pred_check
          %p482 = pneg %p139
        $region58: #{tpu_custom_call.1} parent=47 // pred_check_branch
          %484 = sbr.rel (%p482) target = $region60
        $region59: #{tpu_custom_call.1} parent=47 // pred_region
          %486 = dma.done %s478, 1024
        $region60: #{tpu_custom_call.1} parent=47 // pred_fallthru
          _
        %s487 = sand.u32 %s35, 1
        %s488 = scalar_lea.sflag [#allocation11], %s487
        %s489 = sand.u32 %s156, 1
        %s490 = smul.addr %s489, 64
        %s491 = scalar_lea.vmem [#allocation10], %s490
        // Predicated region
        $region61: #{tpu_custom_call.1} parent=47 // pred_check
          %p492 = pneg %p169
        $region62: #{tpu_custom_call.1} parent=47 // pred_check_branch
          %494 = sbr.rel (%p492) target = $region64
        $region63: #{tpu_custom_call.1} parent=47 // pred_region
          %496 = dma.done %s488, 1024
        $region64: #{tpu_custom_call.1} parent=47 // pred_fallthru
          _
        // Predicated region
        $region65: #{tpu_custom_call.1} parent=47 // pred_check
          %p497 = pneg %p242
        $region66: #{tpu_custom_call.1} parent=47 // pred_check_branch
          %499 = sbr.rel (%p497) target = $region68
        $region67: #{tpu_custom_call.1} parent=47 // pred_region
          %501 = dma.done [#allocation11], 2048
        $region68: #{tpu_custom_call.1} parent=47 // pred_fallthru
          _
        %s502 = sand.u32 %s66, 1
        %s503 = scalar_lea.sflag [#allocation5], %s502
        %s504 = sand.u32 %s66, 1
        %s505 = smul.addr %s504, 64
        %s506 = scalar_lea.vmem [#allocation4], %s505
        %p507 = pneg %p79
        %p508 = pneg %p76
        %s509 = sand.u32 %s35, 1
        %s510 = scalar_lea.sflag [#allocation8], %s509
        %s511 = sand.u32 %s96, 1
        %s512 = smul.addr %s511, 64
        %s513 = scalar_lea.vmem [#allocation7], %s512
        %p514 = pneg %p109
        %p515 = pneg %p106
        %s516 = sand.u32 %s35, 1
        %s517 = scalar_lea.sflag [#allocation8], %s516
        %s518 = sand.u32 %s126, 1
        %s519 = smul.addr %s518, 64
        %s520 = scalar_lea.vmem [#allocation9], %s519
        %p521 = pneg %p139
        %p522 = pneg %p136
        %s523 = sand.u32 %s35, 1
        %s524 = scalar_lea.sflag [#allocation11], %s523
        %s525 = sand.u32 %s156, 1
        %s526 = smul.addr %s525, 64
        %s527 = scalar_lea.vmem [#allocation10], %s526
        %p528 = pneg %p169
        %p529 = pneg %p166
        %p530 = scmp.lt.s32.totalorder %s42, 0
        %s531 = scalar_select %p530, %s42, 0
        %s532 = scalar_lea.vmem %s4, %s531
        %p533 = pneg %p195
        %p534 = pneg %p192
        %s535 = smul.u32 8, %s41
        %p536 = scmp.lt.s32.totalorder %s535, 7
        %s537 = scalar_select %p536, %s535, 7
        %s538 = smul.addr %s537, 8
        %s539 = scalar_lea.vmem %s5, %s538
        %p540 = pneg %p221
        %p541 = pneg %p218
        %p542 = pneg %p242
        %p543 = pneg %p239
        %p544 = pneg %p272
        %p545 = pneg %p269
        %s546 = sand.u32 %s259, 1
        %s547 = scalar_lea.sflag [#allocation6], %s546
        %s548 = sand.u32 %s259, 1
        %s549 = smul.addr %s548, 64
        %s550 = scalar_lea.vmem [#allocation13], %s549
        %p551 = pneg %p302
        %p552 = pneg %p299
        %s553 = sand.u32 %s289, 1
        %s554 = scalar_lea.sflag [#allocation15], %s553
        %s555 = sand.u32 %s289, 1
        %s556 = smul.addr %s555, 64
        %s557 = scalar_lea.vmem [#allocation14], %s556
        %s558 = smul.u32 8, %s41
        %s559 = smul.u32 8, %s41
        %s560 = smul.u32 8, %s41
        %s561 = smul.u32 8, %s41
        %p562 = scmp.lt.s32.totalorder %s42, 0
        %s563 = scalar_select %p562, %s42, 0
        %s564 = scalar_lea.vmem %s4, %s563
        %s565 = smul.u32 8, %s41
        %p566 = scmp.lt.s32.totalorder %s565, 7
        %s567 = scalar_select %p566, %s565, 7
        %s568 = smul.addr %s567, 8
        %s569 = scalar_lea.vmem %s5, %s568
        %s570 = smul.u32 8, %s41
        %s571 = smul.u32 8, %s41
        %s572 = smul.u32 8, %s41
        %v573 = vld [vmem:[%s461] sm:$0xff]
        %v574 = vld [vmem:[%s461 + $0x8] sm:$0xff]
        %v575 = vld [vmem:[%s461 + $0x10] sm:$0xff]
        %v576 = vld [vmem:[%s461 + $0x18] sm:$0xff]
        %v577 = vld [vmem:[%s461 + $0x20] sm:$0xff]
        %v578 = vld [vmem:[%s461 + $0x28] sm:$0xff]
        %v579 = vld [vmem:[%s461 + $0x30] sm:$0xff]
        %v580 = vld [vmem:[%s461 + $0x38] sm:$0xff]
        %v581 = vld [vmem:[%s471] sm:$0xff]
        %v582 = vld [vmem:[%s471 + $0x8] sm:$0xff]
        %v583 = vld [vmem:[%s471 + $0x10] sm:$0xff]
        %v584 = vld [vmem:[%s471 + $0x18] sm:$0xff]
        %v585 = vld [vmem:[%s471 + $0x20] sm:$0xff]
        %v586 = vld [vmem:[%s471 + $0x28] sm:$0xff]
        %v587 = vld [vmem:[%s471 + $0x30] sm:$0xff]
        %v588 = vld [vmem:[%s471 + $0x38] sm:$0xff]
        %v589 = vld [vmem:[%s481] sm:$0xff]
        %v590 = vld [vmem:[%s481 + $0x8] sm:$0xff]
        %v591 = vld [vmem:[%s481 + $0x10] sm:$0xff]
        %v592 = vld [vmem:[%s481 + $0x18] sm:$0xff]
        %v593 = vld [vmem:[%s481 + $0x20] sm:$0xff]
        %v594 = vld [vmem:[%s481 + $0x28] sm:$0xff]
        %v595 = vld [vmem:[%s481 + $0x30] sm:$0xff]
        %v596 = vld [vmem:[%s481 + $0x38] sm:$0xff]
        %v597 = vld [vmem:[%s491] sm:$0xff]
        %v598 = vld [vmem:[%s491 + $0x8] sm:$0xff]
        %v599 = vld [vmem:[%s491 + $0x10] sm:$0xff]
        %v600 = vld [vmem:[%s491 + $0x18] sm:$0xff]
        %v601 = vld [vmem:[%s491 + $0x20] sm:$0xff]
        %v602 = vld [vmem:[%s491 + $0x28] sm:$0xff]
        %v603 = vld [vmem:[%s491 + $0x30] sm:$0xff]
        %v604 = vld [vmem:[%s491 + $0x38] sm:$0xff]
        %v605 = vld [vmem:[%s564] sm:$0x1]
        %v606 = vld [vmem:[%s569] sm:$0xff]
        %v607 = vld [vmem:[%s569 + $0x8] sm:$0xff]
        %v608 = vld [vmem:[%s569 + $0x10] sm:$0xff]
        %v609 = vld [vmem:[%s569 + $0x18] sm:$0xff]
        %v610 = vld [vmem:[%s569 + $0x20] sm:$0xff]
        %v611 = vld [vmem:[%s569 + $0x28] sm:$0xff]
        %v612 = vld [vmem:[%s569 + $0x30] sm:$0xff]
        %v613 = vld [vmem:[%s569 + $0x38] sm:$0xff]
        %p614 = scmp.eq.s32.totalorder %s42, 0
        // Predicated region
        $region69: #{tpu_custom_call.1} parent=47 // pred_check
          %p615 = pneg %p614
        $region70: #{tpu_custom_call.1} parent=47 // pred_check_branch
          %617 = sbr.rel (%p615) target = $region72
        $region71: #{tpu_custom_call.1} parent=47 // pred_region
          %vm618 = vcmask 7168
          %619 = vst.msk [vmem:[#allocation2] sm:$0xff] %vm618, 0.0
          %620 = vst.msk [vmem:[#allocation2 + $0x8] sm:$0xff] %vm618, 0.0
          %621 = vst.msk [vmem:[#allocation2 + $0x10] sm:$0xff] %vm618, 0.0
          %622 = vst.msk [vmem:[#allocation2 + $0x18] sm:$0xff] %vm618, 0.0
          %623 = vst.msk [vmem:[#allocation2 + $0x20] sm:$0xff] %vm618, 0.0
          %624 = vst.msk [vmem:[#allocation2 + $0x28] sm:$0xff] %vm618, 0.0
          %625 = vst.msk [vmem:[#allocation2 + $0x30] sm:$0xff] %vm618, 0.0
          %626 = vst.msk [vmem:[#allocation2 + $0x38] sm:$0xff] %vm618, 0.0
          %v627 = vand.u32 2147483647, %v573
          %v628 = vand.u32 2147483647, %v581
          %v629 = vmin.f32 %v627, %v628
          %v630 = vmax.f32 %v627, %v628
          %v631 = vrcp.pop %v630
          %v632 = vmul.f32 %v630, %v631
          %v633 = vsub.f32 1.0, %v632
          %v634 = vmul.f32 %v631, %v633
          %v635 = vadd.f32 %v631, %v634
          %vm636 = vweird.f32 %v630
          %vm637 = vweird.f32 %v631
          %vm638 = vmor %vm636, %vm637
          %v639 = vsel %vm638, %v631, %v635
          %v640 = vand.u32 2147483647, %v630
          %vm641 = vcmp.eq.f32.partialorder %v640, 8.507059e+37
          %v642 = vand.u32 %v630, 2147483648
          %v643 = vor.u32 1.1754944e-38, %v642
          %v644 = vsel %vm641, %v643, %v639
          %v645 = vmul.f32 %v629, %v644
          %v646 = vmul.f32 %v645, %v645
          %v647 = vmul.f32 0.002785687, %v646
          %v648 = vadd.f32 %v647, -0.015866
          %v649 = vmul.f32 %v648, %v646
          %v650 = vadd.f32 %v649, 0.04247222
          %v651 = vmul.f32 %v650, %v646
          %v652 = vadd.f32 %v651, -0.074975304
          %v653 = vmul.f32 %v652, %v646
          %v654 = vadd.f32 %v653, 0.1064488
          %v655 = vmul.f32 %v654, %v646
          %v656 = vadd.f32 %v655, -0.14207031
          %v657 = vmul.f32 %v656, %v646
          %v658 = vadd.f32 %v657, 0.19993454
          %v659 = vmul.f32 %v658, %v646
          %v660 = vadd.f32 %v659, -0.33333147
          %v661 = vmul.f32 %v660, %v646
          %v662 = vmul.f32 %v661, %v645
          %v663 = vadd.f32 %v662, %v645
          %vm664 = vcmp.gt.f32.partialorder %v628, %v627
          %v665 = vsub.f32 1.5707964, %v663
          %v666 = vsel %vm664, %v665, %v663
          %vm667 = vcmp.lt.f32.partialorder %v573, 0.0
          %v668 = vsub.f32 3.1415927, %v666
          %v669 = vsel %vm667, %v668, %v666
          %vm670 = vcmp.lt.s32.totalorder %v573, 0
          %v671 = vsel %vm670, 3.1415927, 0.0
          %vm672 = vcmp.eq.f32.partialorder %v581, 0.0
          %v673 = vsel %vm672, %v671, %v669
          %vm674 = vcmp.ne.f32.partialorder %v573, %v573
          %vm675 = vcmp.ne.f32.partialorder %v581, %v581
          %vm676 = vmor %vm674, %vm675
          %v677 = vsel %vm676, nan, %v673
          %vm678 = vcmp.lt.f32.partialorder %v573, 0.0
          %v679 = vsel %vm678, 2.3561945, 0.7853982
          %vm680 = vcmp.eq.s32.totalorder %v627, inf
          %vm681 = vcmp.eq.s32.totalorder %v628, inf
          %vm682 = vmand %vm680, %vm681
          %v683 = vsel %vm682, %v679, %v677
          %v684 = vand.u32 2147483647, %v683
          %v685 = vand.u32 %v581, 2147483648
          %v686 = vor.u32 %v684, %v685
          %v687 = vand.u32 2147483647, %v574
          %v688 = vand.u32 2147483647, %v582
          %v689 = vmin.f32 %v687, %v688
          %v690 = vmax.f32 %v687, %v688
          %v691 = vrcp.pop %v690
          %v692 = vmul.f32 %v690, %v691
          %v693 = vsub.f32 1.0, %v692
          %v694 = vmul.f32 %v691, %v693
          %v695 = vadd.f32 %v691, %v694
          %vm696 = vweird.f32 %v690
          %vm697 = vweird.f32 %v691
          %vm698 = vmor %vm696, %vm697
          %v699 = vsel %vm698, %v691, %v695
          %v700 = vand.u32 2147483647, %v690
          %vm701 = vcmp.eq.f32.partialorder %v700, 8.507059e+37
          %v702 = vand.u32 %v690, 2147483648
          %v703 = vor.u32 1.1754944e-38, %v702
          %v704 = vsel %vm701, %v703, %v699
          %v705 = vmul.f32 %v689, %v704
          %v706 = vmul.f32 %v705, %v705
          %v707 = vmul.f32 0.002785687, %v706
          %v708 = vadd.f32 %v707, -0.015866
          %v709 = vmul.f32 %v708, %v706
          %v710 = vadd.f32 %v709, 0.04247222
          %v711 = vmul.f32 %v710, %v706
          %v712 = vadd.f32 %v711, -0.074975304
          %v713 = vmul.f32 %v712, %v706
          %v714 = vadd.f32 %v713, 0.1064488
          %v715 = vmul.f32 %v714, %v706
          %v716 = vadd.f32 %v715, -0.14207031
          %v717 = vmul.f32 %v716, %v706
          %v718 = vadd.f32 %v717, 0.19993454
          %v719 = vmul.f32 %v718, %v706
          %v720 = vadd.f32 %v719, -0.33333147
          %v721 = vmul.f32 %v720, %v706
          %v722 = vmul.f32 %v721, %v705
          %v723 = vadd.f32 %v722, %v705
          %vm724 = vcmp.gt.f32.partialorder %v688, %v687
          %v725 = vsub.f32 1.5707964, %v723
          %v726 = vsel %vm724, %v725, %v723
          %vm727 = vcmp.lt.f32.partialorder %v574, 0.0
          %v728 = vsub.f32 3.1415927, %v726
          %v729 = vsel %vm727, %v728, %v726
          %vm730 = vcmp.lt.s32.totalorder %v574, 0
          %v731 = vsel %vm730, 3.1415927, 0.0
          %vm732 = vcmp.eq.f32.partialorder %v582, 0.0
          %v733 = vsel %vm732, %v731, %v729
          %vm734 = vcmp.ne.f32.partialorder %v574, %v574
          %vm735 = vcmp.ne.f32.partialorder %v582, %v582
          %vm736 = vmor %vm734, %vm735
          %v737 = vsel %vm736, nan, %v733
          %vm738 = vcmp.lt.f32.partialorder %v574, 0.0
          %v739 = vsel %vm738, 2.3561945, 0.7853982
          %vm740 = vcmp.eq.s32.totalorder %v687, inf
          %vm741 = vcmp.eq.s32.totalorder %v688, inf
          %vm742 = vmand %vm740, %vm741
          %v743 = vsel %vm742, %v739, %v737
          %v744 = vand.u32 2147483647, %v743
          %v745 = vand.u32 %v582, 2147483648
          %v746 = vor.u32 %v744, %v745
          %v747 = vand.u32 2147483647, %v575
          %v748 = vand.u32 2147483647, %v583
          %v749 = vmin.f32 %v747, %v748
          %v750 = vmax.f32 %v747, %v748
          %v751 = vrcp.pop %v750
          %v752 = vmul.f32 %v750, %v751
          %v753 = vsub.f32 1.0, %v752
          %v754 = vmul.f32 %v751, %v753
          %v755 = vadd.f32 %v751, %v754
          %vm756 = vweird.f32 %v750
          %vm757 = vweird.f32 %v751
          %vm758 = vmor %vm756, %vm757
          %v759 = vsel %vm758, %v751, %v755
          %v760 = vand.u32 2147483647, %v750
          %vm761 = vcmp.eq.f32.partialorder %v760, 8.507059e+37
          %v762 = vand.u32 %v750, 2147483648
          %v763 = vor.u32 1.1754944e-38, %v762
          %v764 = vsel %vm761, %v763, %v759
          %v765 = vmul.f32 %v749, %v764
          %v766 = vmul.f32 %v765, %v765
          %v767 = vmul.f32 0.002785687, %v766
          %v768 = vadd.f32 %v767, -0.015866
          %v769 = vmul.f32 %v768, %v766
          %v770 = vadd.f32 %v769, 0.04247222
          %v771 = vmul.f32 %v770, %v766
          %v772 = vadd.f32 %v771, -0.074975304
          %v773 = vmul.f32 %v772, %v766
          %v774 = vadd.f32 %v773, 0.1064488
          %v775 = vmul.f32 %v774, %v766
          %v776 = vadd.f32 %v775, -0.14207031
          %v777 = vmul.f32 %v776, %v766
          %v778 = vadd.f32 %v777, 0.19993454
          %v779 = vmul.f32 %v778, %v766
          %v780 = vadd.f32 %v779, -0.33333147
          %v781 = vmul.f32 %v780, %v766
          %v782 = vmul.f32 %v781, %v765
          %v783 = vadd.f32 %v782, %v765
          %vm784 = vcmp.gt.f32.partialorder %v748, %v747
          %v785 = vsub.f32 1.5707964, %v783
          %v786 = vsel %vm784, %v785, %v783
          %vm787 = vcmp.lt.f32.partialorder %v575, 0.0
          %v788 = vsub.f32 3.1415927, %v786
          %v789 = vsel %vm787, %v788, %v786
          %vm790 = vcmp.lt.s32.totalorder %v575, 0
          %v791 = vsel %vm790, 3.1415927, 0.0
          %vm792 = vcmp.eq.f32.partialorder %v583, 0.0
          %v793 = vsel %vm792, %v791, %v789
          %vm794 = vcmp.ne.f32.partialorder %v575, %v575
          %vm795 = vcmp.ne.f32.partialorder %v583, %v583
          %vm796 = vmor %vm794, %vm795
          %v797 = vsel %vm796, nan, %v793
          %vm798 = vcmp.lt.f32.partialorder %v575, 0.0
          %v799 = vsel %vm798, 2.3561945, 0.7853982
          %vm800 = vcmp.eq.s32.totalorder %v747, inf
          %vm801 = vcmp.eq.s32.totalorder %v748, inf
          %vm802 = vmand %vm800, %vm801
          %v803 = vsel %vm802, %v799, %v797
          %v804 = vand.u32 2147483647, %v803
          %v805 = vand.u32 %v583, 2147483648
          %v806 = vor.u32 %v804, %v805
          %v807 = vand.u32 2147483647, %v576
          %v808 = vand.u32 2147483647, %v584
          %v809 = vmin.f32 %v807, %v808
          %v810 = vmax.f32 %v807, %v808
          %v811 = vrcp.pop %v810
          %v812 = vmul.f32 %v810, %v811
          %v813 = vsub.f32 1.0, %v812
          %v814 = vmul.f32 %v811, %v813
          %v815 = vadd.f32 %v811, %v814
          %vm816 = vweird.f32 %v810
          %vm817 = vweird.f32 %v811
          %vm818 = vmor %vm816, %vm817
          %v819 = vsel %vm818, %v811, %v815
          %v820 = vand.u32 2147483647, %v810
          %vm821 = vcmp.eq.f32.partialorder %v820, 8.507059e+37
          %v822 = vand.u32 %v810, 2147483648
          %v823 = vor.u32 1.1754944e-38, %v822
          %v824 = vsel %vm821, %v823, %v819
          %v825 = vmul.f32 %v809, %v824
          %v826 = vmul.f32 %v825, %v825
          %v827 = vmul.f32 0.002785687, %v826
          %v828 = vadd.f32 %v827, -0.015866
          %v829 = vmul.f32 %v828, %v826
          %v830 = vadd.f32 %v829, 0.04247222
          %v831 = vmul.f32 %v830, %v826
          %v832 = vadd.f32 %v831, -0.074975304
          %v833 = vmul.f32 %v832, %v826
          %v834 = vadd.f32 %v833, 0.1064488
          %v835 = vmul.f32 %v834, %v826
          %v836 = vadd.f32 %v835, -0.14207031
          %v837 = vmul.f32 %v836, %v826
          %v838 = vadd.f32 %v837, 0.19993454
          %v839 = vmul.f32 %v838, %v826
          %v840 = vadd.f32 %v839, -0.33333147
          %v841 = vmul.f32 %v840, %v826
          %v842 = vmul.f32 %v841, %v825
          %v843 = vadd.f32 %v842, %v825
          %vm844 = vcmp.gt.f32.partialorder %v808, %v807
          %v845 = vsub.f32 1.5707964, %v843
          %v846 = vsel %vm844, %v845, %v843
          %vm847 = vcmp.lt.f32.partialorder %v576, 0.0
          %v848 = vsub.f32 3.1415927, %v846
          %v849 = vsel %vm847, %v848, %v846
          %vm850 = vcmp.lt.s32.totalorder %v576, 0
          %v851 = vsel %vm850, 3.1415927, 0.0
          %vm852 = vcmp.eq.f32.partialorder %v584, 0.0
          %v853 = vsel %vm852, %v851, %v849
          %vm854 = vcmp.ne.f32.partialorder %v576, %v576
          %vm855 = vcmp.ne.f32.partialorder %v584, %v584
          %vm856 = vmor %vm854, %vm855
          %v857 = vsel %vm856, nan, %v853
          %vm858 = vcmp.lt.f32.partialorder %v576, 0.0
          %v859 = vsel %vm858, 2.3561945, 0.7853982
          %vm860 = vcmp.eq.s32.totalorder %v807, inf
          %vm861 = vcmp.eq.s32.totalorder %v808, inf
          %vm862 = vmand %vm860, %vm861
          %v863 = vsel %vm862, %v859, %v857
          %v864 = vand.u32 2147483647, %v863
          %v865 = vand.u32 %v584, 2147483648
          %v866 = vor.u32 %v864, %v865
          %v867 = vand.u32 2147483647, %v577
          %v868 = vand.u32 2147483647, %v585
          %v869 = vmin.f32 %v867, %v868
          %v870 = vmax.f32 %v867, %v868
          %v871 = vrcp.pop %v870
          %v872 = vmul.f32 %v870, %v871
          %v873 = vsub.f32 1.0, %v872
          %v874 = vmul.f32 %v871, %v873
          %v875 = vadd.f32 %v871, %v874
          %vm876 = vweird.f32 %v870
          %vm877 = vweird.f32 %v871
          %vm878 = vmor %vm876, %vm877
          %v879 = vsel %vm878, %v871, %v875
          %v880 = vand.u32 2147483647, %v870
          %vm881 = vcmp.eq.f32.partialorder %v880, 8.507059e+37
          %v882 = vand.u32 %v870, 2147483648
          %v883 = vor.u32 1.1754944e-38, %v882
          %v884 = vsel %vm881, %v883, %v879
          %v885 = vmul.f32 %v869, %v884
          %v886 = vmul.f32 %v885, %v885
          %v887 = vmul.f32 0.002785687, %v886
          %v888 = vadd.f32 %v887, -0.015866
          %v889 = vmul.f32 %v888, %v886
          %v890 = vadd.f32 %v889, 0.04247222
          %v891 = vmul.f32 %v890, %v886
          %v892 = vadd.f32 %v891, -0.074975304
          %v893 = vmul.f32 %v892, %v886
          %v894 = vadd.f32 %v893, 0.1064488
          %v895 = vmul.f32 %v894, %v886
          %v896 = vadd.f32 %v895, -0.14207031
          %v897 = vmul.f32 %v896, %v886
          %v898 = vadd.f32 %v897, 0.19993454
          %v899 = vmul.f32 %v898, %v886
          %v900 = vadd.f32 %v899, -0.33333147
          %v901 = vmul.f32 %v900, %v886
          %v902 = vmul.f32 %v901, %v885
          %v903 = vadd.f32 %v902, %v885
          %vm904 = vcmp.gt.f32.partialorder %v868, %v867
          %v905 = vsub.f32 1.5707964, %v903
          %v906 = vsel %vm904, %v905, %v903
          %vm907 = vcmp.lt.f32.partialorder %v577, 0.0
          %v908 = vsub.f32 3.1415927, %v906
          %v909 = vsel %vm907, %v908, %v906
          %vm910 = vcmp.lt.s32.totalorder %v577, 0
          %v911 = vsel %vm910, 3.1415927, 0.0
          %vm912 = vcmp.eq.f32.partialorder %v585, 0.0
          %v913 = vsel %vm912, %v911, %v909
          %vm914 = vcmp.ne.f32.partialorder %v577, %v577
          %vm915 = vcmp.ne.f32.partialorder %v585, %v585
          %vm916 = vmor %vm914, %vm915
          %v917 = vsel %vm916, nan, %v913
          %vm918 = vcmp.lt.f32.partialorder %v577, 0.0
          %v919 = vsel %vm918, 2.3561945, 0.7853982
          %vm920 = vcmp.eq.s32.totalorder %v867, inf
          %vm921 = vcmp.eq.s32.totalorder %v868, inf
          %vm922 = vmand %vm920, %vm921
          %v923 = vsel %vm922, %v919, %v917
          %v924 = vand.u32 2147483647, %v923
          %v925 = vand.u32 %v585, 2147483648
          %v926 = vor.u32 %v924, %v925
          %v927 = vand.u32 2147483647, %v578
          %v928 = vand.u32 2147483647, %v586
          %v929 = vmin.f32 %v927, %v928
          %v930 = vmax.f32 %v927, %v928
          %v931 = vrcp.pop %v930
          %v932 = vmul.f32 %v930, %v931
          %v933 = vsub.f32 1.0, %v932
          %v934 = vmul.f32 %v931, %v933
          %v935 = vadd.f32 %v931, %v934
          %vm936 = vweird.f32 %v930
          %vm937 = vweird.f32 %v931
          %vm938 = vmor %vm936, %vm937
          %v939 = vsel %vm938, %v931, %v935
          %v940 = vand.u32 2147483647, %v930
          %vm941 = vcmp.eq.f32.partialorder %v940, 8.507059e+37
          %v942 = vand.u32 %v930, 2147483648
          %v943 = vor.u32 1.1754944e-38, %v942
          %v944 = vsel %vm941, %v943, %v939
          %v945 = vmul.f32 %v929, %v944
          %v946 = vmul.f32 %v945, %v945
          %v947 = vmul.f32 0.002785687, %v946
          %v948 = vadd.f32 %v947, -0.015866
          %v949 = vmul.f32 %v948, %v946
          %v950 = vadd.f32 %v949, 0.04247222
          %v951 = vmul.f32 %v950, %v946
          %v952 = vadd.f32 %v951, -0.074975304
          %v953 = vmul.f32 %v952, %v946
          %v954 = vadd.f32 %v953, 0.1064488
          %v955 = vmul.f32 %v954, %v946
          %v956 = vadd.f32 %v955, -0.14207031
          %v957 = vmul.f32 %v956, %v946
          %v958 = vadd.f32 %v957, 0.19993454
          %v959 = vmul.f32 %v958, %v946
          %v960 = vadd.f32 %v959, -0.33333147
          %v961 = vmul.f32 %v960, %v946
          %v962 = vmul.f32 %v961, %v945
          %v963 = vadd.f32 %v962, %v945
          %vm964 = vcmp.gt.f32.partialorder %v928, %v927
          %v965 = vsub.f32 1.5707964, %v963
          %v966 = vsel %vm964, %v965, %v963
          %vm967 = vcmp.lt.f32.partialorder %v578, 0.0
          %v968 = vsub.f32 3.1415927, %v966
          %v969 = vsel %vm967, %v968, %v966
          %vm970 = vcmp.lt.s32.totalorder %v578, 0
          %v971 = vsel %vm970, 3.1415927, 0.0
          %vm972 = vcmp.eq.f32.partialorder %v586, 0.0
          %v973 = vsel %vm972, %v971, %v969
          %vm974 = vcmp.ne.f32.partialorder %v578, %v578
          %vm975 = vcmp.ne.f32.partialorder %v586, %v586
          %vm976 = vmor %vm974, %vm975
          %v977 = vsel %vm976, nan, %v973
          %vm978 = vcmp.lt.f32.partialorder %v578, 0.0
          %v979 = vsel %vm978, 2.3561945, 0.7853982
          %vm980 = vcmp.eq.s32.totalorder %v927, inf
          %vm981 = vcmp.eq.s32.totalorder %v928, inf
          %vm982 = vmand %vm980, %vm981
          %v983 = vsel %vm982, %v979, %v977
          %v984 = vand.u32 2147483647, %v983
          %v985 = vand.u32 %v586, 2147483648
          %v986 = vor.u32 %v984, %v985
          %v987 = vand.u32 2147483647, %v579
          %v988 = vand.u32 2147483647, %v587
          %v989 = vmin.f32 %v987, %v988
          %v990 = vmax.f32 %v987, %v988
          %v991 = vrcp.pop %v990
          %v992 = vmul.f32 %v990, %v991
          %v993 = vsub.f32 1.0, %v992
          %v994 = vmul.f32 %v991, %v993
          %v995 = vadd.f32 %v991, %v994
          %vm996 = vweird.f32 %v990
          %vm997 = vweird.f32 %v991
          %vm998 = vmor %vm996, %vm997
          %v999 = vsel %vm998, %v991, %v995
          %v1000 = vand.u32 2147483647, %v990
          %vm1001 = vcmp.eq.f32.partialorder %v1000, 8.507059e+37
          %v1002 = vand.u32 %v990, 2147483648
          %v1003 = vor.u32 1.1754944e-38, %v1002
          %v1004 = vsel %vm1001, %v1003, %v999
          %v1005 = vmul.f32 %v989, %v1004
          %v1006 = vmul.f32 %v1005, %v1005
          %v1007 = vmul.f32 0.002785687, %v1006
          %v1008 = vadd.f32 %v1007, -0.015866
          %v1009 = vmul.f32 %v1008, %v1006
          %v1010 = vadd.f32 %v1009, 0.04247222
          %v1011 = vmul.f32 %v1010, %v1006
          %v1012 = vadd.f32 %v1011, -0.074975304
          %v1013 = vmul.f32 %v1012, %v1006
          %v1014 = vadd.f32 %v1013, 0.1064488
          %v1015 = vmul.f32 %v1014, %v1006
          %v1016 = vadd.f32 %v1015, -0.14207031
          %v1017 = vmul.f32 %v1016, %v1006
          %v1018 = vadd.f32 %v1017, 0.19993454
          %v1019 = vmul.f32 %v1018, %v1006
          %v1020 = vadd.f32 %v1019, -0.33333147
          %v1021 = vmul.f32 %v1020, %v1006
          %v1022 = vmul.f32 %v1021, %v1005
          %v1023 = vadd.f32 %v1022, %v1005
          %vm1024 = vcmp.gt.f32.partialorder %v988, %v987
          %v1025 = vsub.f32 1.5707964, %v1023
          %v1026 = vsel %vm1024, %v1025, %v1023
          %vm1027 = vcmp.lt.f32.partialorder %v579, 0.0
          %v1028 = vsub.f32 3.1415927, %v1026
          %v1029 = vsel %vm1027, %v1028, %v1026
          %vm1030 = vcmp.lt.s32.totalorder %v579, 0
          %v1031 = vsel %vm1030, 3.1415927, 0.0
          %vm1032 = vcmp.eq.f32.partialorder %v587, 0.0
          %v1033 = vsel %vm1032, %v1031, %v1029
          %vm1034 = vcmp.ne.f32.partialorder %v579, %v579
          %vm1035 = vcmp.ne.f32.partialorder %v587, %v587
          %vm1036 = vmor %vm1034, %vm1035
          %v1037 = vsel %vm1036, nan, %v1033
          %vm1038 = vcmp.lt.f32.partialorder %v579, 0.0
          %v1039 = vsel %vm1038, 2.3561945, 0.7853982
          %vm1040 = vcmp.eq.s32.totalorder %v987, inf
          %vm1041 = vcmp.eq.s32.totalorder %v988, inf
          %vm1042 = vmand %vm1040, %vm1041
          %v1043 = vsel %vm1042, %v1039, %v1037
          %v1044 = vand.u32 2147483647, %v1043
          %v1045 = vand.u32 %v587, 2147483648
          %v1046 = vor.u32 %v1044, %v1045
          %v1047 = vand.u32 2147483647, %v580
          %v1048 = vand.u32 2147483647, %v588
          %v1049 = vmin.f32 %v1047, %v1048
          %v1050 = vmax.f32 %v1047, %v1048
          %v1051 = vrcp.pop %v1050
          %v1052 = vmul.f32 %v1050, %v1051
          %v1053 = vsub.f32 1.0, %v1052
          %v1054 = vmul.f32 %v1051, %v1053
          %v1055 = vadd.f32 %v1051, %v1054
          %vm1056 = vweird.f32 %v1050
          %vm1057 = vweird.f32 %v1051
          %vm1058 = vmor %vm1056, %vm1057
          %v1059 = vsel %vm1058, %v1051, %v1055
          %v1060 = vand.u32 2147483647, %v1050
          %vm1061 = vcmp.eq.f32.partialorder %v1060, 8.507059e+37
          %v1062 = vand.u32 %v1050, 2147483648
          %v1063 = vor.u32 1.1754944e-38, %v1062
          %v1064 = vsel %vm1061, %v1063, %v1059
          %v1065 = vmul.f32 %v1049, %v1064
          %v1066 = vmul.f32 %v1065, %v1065
          %v1067 = vmul.f32 0.002785687, %v1066
          %v1068 = vadd.f32 %v1067, -0.015866
          %v1069 = vmul.f32 %v1068, %v1066
          %v1070 = vadd.f32 %v1069, 0.04247222
          %v1071 = vmul.f32 %v1070, %v1066
          %v1072 = vadd.f32 %v1071, -0.074975304
          %v1073 = vmul.f32 %v1072, %v1066
          %v1074 = vadd.f32 %v1073, 0.1064488
          %v1075 = vmul.f32 %v1074, %v1066
          %v1076 = vadd.f32 %v1075, -0.14207031
          %v1077 = vmul.f32 %v1076, %v1066
          %v1078 = vadd.f32 %v1077, 0.19993454
          %v1079 = vmul.f32 %v1078, %v1066
          %v1080 = vadd.f32 %v1079, -0.33333147
          %v1081 = vmul.f32 %v1080, %v1066
          %v1082 = vmul.f32 %v1081, %v1065
          %v1083 = vadd.f32 %v1082, %v1065
          %vm1084 = vcmp.gt.f32.partialorder %v1048, %v1047
          %v1085 = vsub.f32 1.5707964, %v1083
          %v1086 = vsel %vm1084, %v1085, %v1083
          %vm1087 = vcmp.lt.f32.partialorder %v580, 0.0
          %v1088 = vsub.f32 3.1415927, %v1086
          %v1089 = vsel %vm1087, %v1088, %v1086
          %vm1090 = vcmp.lt.s32.totalorder %v580, 0
          %v1091 = vsel %vm1090, 3.1415927, 0.0
          %vm1092 = vcmp.eq.f32.partialorder %v588, 0.0
          %v1093 = vsel %vm1092, %v1091, %v1089
          %vm1094 = vcmp.ne.f32.partialorder %v580, %v580
          %vm1095 = vcmp.ne.f32.partialorder %v588, %v588
          %vm1096 = vmor %vm1094, %vm1095
          %v1097 = vsel %vm1096, nan, %v1093
          %vm1098 = vcmp.lt.f32.partialorder %v580, 0.0
          %v1099 = vsel %vm1098, 2.3561945, 0.7853982
          %vm1100 = vcmp.eq.s32.totalorder %v1047, inf
          %vm1101 = vcmp.eq.s32.totalorder %v1048, inf
          %vm1102 = vmand %vm1100, %vm1101
          %v1103 = vsel %vm1102, %v1099, %v1097
          %v1104 = vand.u32 2147483647, %v1103
          %v1105 = vand.u32 %v588, 2147483648
          %v1106 = vor.u32 %v1104, %v1105
          %1107 = vst.msk [vmem:[#allocation3] sm:$0xff] %vm618, %v686
          %1108 = vst.msk [vmem:[#allocation3 + $0x8] sm:$0xff] %vm618, %v746
          %1109 = vst.msk [vmem:[#allocation3 + $0x10] sm:$0xff] %vm618, %v806
          %1110 = vst.msk [vmem:[#allocation3 + $0x18] sm:$0xff] %vm618, %v866
          %1111 = vst.msk [vmem:[#allocation3 + $0x20] sm:$0xff] %vm618, %v926
          %1112 = vst.msk [vmem:[#allocation3 + $0x28] sm:$0xff] %vm618, %v986
          %1113 = vst.msk [vmem:[#allocation3 + $0x30] sm:$0xff] %vm618, %v1046
          %1114 = vst.msk [vmem:[#allocation3 + $0x38] sm:$0xff] %vm618, %v1106
        $region72: #{tpu_custom_call.1} parent=47 // pred_fallthru
          _
        %vm1115 = vcmp.eq.f32.partialorder %v589, 0.0
        %vm1116 = vcmp.eq.f32.partialorder %v590, 0.0
        %vm1117 = vcmp.eq.f32.partialorder %v591, 0.0
        %vm1118 = vcmp.eq.f32.partialorder %v592, 0.0
        %vm1119 = vcmp.eq.f32.partialorder %v593, 0.0
        %vm1120 = vcmp.eq.f32.partialorder %v594, 0.0
        %vm1121 = vcmp.eq.f32.partialorder %v595, 0.0
        %vm1122 = vcmp.eq.f32.partialorder %v596, 0.0
        %vm1123 = vcmp.eq.f32.partialorder %v597, 0.0
        %vm1124 = vcmp.eq.f32.partialorder %v598, 0.0
        %vm1125 = vcmp.eq.f32.partialorder %v599, 0.0
        %vm1126 = vcmp.eq.f32.partialorder %v600, 0.0
        %vm1127 = vcmp.eq.f32.partialorder %v601, 0.0
        %vm1128 = vcmp.eq.f32.partialorder %v602, 0.0
        %vm1129 = vcmp.eq.f32.partialorder %v603, 0.0
        %vm1130 = vcmp.eq.f32.partialorder %v604, 0.0
        %vm1131 = vmand %vm1115, %vm1123
        %vm1132 = vmand %vm1116, %vm1124
        %vm1133 = vmand %vm1117, %vm1125
        %vm1134 = vmand %vm1118, %vm1126
        %vm1135 = vmand %vm1119, %vm1127
        %vm1136 = vmand %vm1120, %vm1128
        %vm1137 = vmand %vm1121, %vm1129
        %vm1138 = vmand %vm1122, %vm1130
        %vm1139 = vcmp.eq.f32.partialorder %v573, 0.0
        %vm1140 = vcmp.eq.f32.partialorder %v574, 0.0
        %vm1141 = vcmp.eq.f32.partialorder %v575, 0.0
        %vm1142 = vcmp.eq.f32.partialorder %v576, 0.0
        %vm1143 = vcmp.eq.f32.partialorder %v577, 0.0
        %vm1144 = vcmp.eq.f32.partialorder %v578, 0.0
        %vm1145 = vcmp.eq.f32.partialorder %v579, 0.0
        %vm1146 = vcmp.eq.f32.partialorder %v580, 0.0
        %vm1147 = vcmp.eq.f32.partialorder %v581, 0.0
        %vm1148 = vcmp.eq.f32.partialorder %v582, 0.0
        %vm1149 = vcmp.eq.f32.partialorder %v583, 0.0
        %vm1150 = vcmp.eq.f32.partialorder %v584, 0.0
        %vm1151 = vcmp.eq.f32.partialorder %v585, 0.0
        %vm1152 = vcmp.eq.f32.partialorder %v586, 0.0
        %vm1153 = vcmp.eq.f32.partialorder %v587, 0.0
        %vm1154 = vcmp.eq.f32.partialorder %v588, 0.0
        %vm1155 = vmand %vm1139, %vm1147
        %vm1156 = vmand %vm1140, %vm1148
        %vm1157 = vmand %vm1141, %vm1149
        %vm1158 = vmand %vm1142, %vm1150
        %vm1159 = vmand %vm1143, %vm1151
        %vm1160 = vmand %vm1144, %vm1152
        %vm1161 = vmand %vm1145, %vm1153
        %vm1162 = vmand %vm1146, %vm1154
        %v1163 = vsub.f32 0.0, %v581
        %v1164 = vsub.f32 0.0, %v582
        %v1165 = vsub.f32 0.0, %v583
        %v1166 = vsub.f32 0.0, %v584
        %v1167 = vsub.f32 0.0, %v585
        %v1168 = vsub.f32 0.0, %v586
        %v1169 = vsub.f32 0.0, %v587
        %v1170 = vsub.f32 0.0, %v588
        %v1171 = vmul.f32 %v597, %v573
        %v1172 = vmul.f32 %v598, %v574
        %v1173 = vmul.f32 %v599, %v575
        %v1174 = vmul.f32 %v600, %v576
        %v1175 = vmul.f32 %v601, %v577
        %v1176 = vmul.f32 %v602, %v578
        %v1177 = vmul.f32 %v603, %v579
        %v1178 = vmul.f32 %v604, %v580
        %v1179 = vmul.f32 %v589, %v581
        %v1180 = vmul.f32 %v590, %v582
        %v1181 = vmul.f32 %v591, %v583
        %v1182 = vmul.f32 %v592, %v584
        %v1183 = vmul.f32 %v593, %v585
        %v1184 = vmul.f32 %v594, %v586
        %v1185 = vmul.f32 %v595, %v587
        %v1186 = vmul.f32 %v596, %v588
        %v1187 = vsub.f32 %v1171, %v1179
        %v1188 = vsub.f32 %v1172, %v1180
        %v1189 = vsub.f32 %v1173, %v1181
        %v1190 = vsub.f32 %v1174, %v1182
        %v1191 = vsub.f32 %v1175, %v1183
        %v1192 = vsub.f32 %v1176, %v1184
        %v1193 = vsub.f32 %v1177, %v1185
        %v1194 = vsub.f32 %v1178, %v1186
        %v1195 = vsel %vm1155, %v597, %v1187
        %v1196 = vsel %vm1156, %v598, %v1188
        %v1197 = vsel %vm1157, %v599, %v1189
        %v1198 = vsel %vm1158, %v600, %v1190
        %v1199 = vsel %vm1159, %v601, %v1191
        %v1200 = vsel %vm1160, %v602, %v1192
        %v1201 = vsel %vm1161, %v603, %v1193
        %v1202 = vsel %vm1162, %v604, %v1194
        %v1203 = vsel %vm1131, %v1163, %v1195
        %v1204 = vsel %vm1132, %v1164, %v1196
        %v1205 = vsel %vm1133, %v1165, %v1197
        %v1206 = vsel %vm1134, %v1166, %v1198
        %v1207 = vsel %vm1135, %v1167, %v1199
        %v1208 = vsel %vm1136, %v1168, %v1200
        %v1209 = vsel %vm1137, %v1169, %v1201
        %v1210 = vsel %vm1138, %v1170, %v1202
        %v1211 = vmul.f32 %v589, %v573
        %v1212 = vmul.f32 %v590, %v574
        %v1213 = vmul.f32 %v591, %v575
        %v1214 = vmul.f32 %v592, %v576
        %v1215 = vmul.f32 %v593, %v577
        %v1216 = vmul.f32 %v594, %v578
        %v1217 = vmul.f32 %v595, %v579
        %v1218 = vmul.f32 %v596, %v580
        %v1219 = vmul.f32 %v597, %v581
        %v1220 = vmul.f32 %v598, %v582
        %v1221 = vmul.f32 %v599, %v583
        %v1222 = vmul.f32 %v600, %v584
        %v1223 = vmul.f32 %v601, %v585
        %v1224 = vmul.f32 %v602, %v586
        %v1225 = vmul.f32 %v603, %v587
        %v1226 = vmul.f32 %v604, %v588
        %v1227 = vadd.f32 %v1211, %v1219
        %v1228 = vadd.f32 %v1212, %v1220
        %v1229 = vadd.f32 %v1213, %v1221
        %v1230 = vadd.f32 %v1214, %v1222
        %v1231 = vadd.f32 %v1215, %v1223
        %v1232 = vadd.f32 %v1216, %v1224
        %v1233 = vadd.f32 %v1217, %v1225
        %v1234 = vadd.f32 %v1218, %v1226
        %v1235 = vsel %vm1155, %v589, %v1227
        %v1236 = vsel %vm1156, %v590, %v1228
        %v1237 = vsel %vm1157, %v591, %v1229
        %v1238 = vsel %vm1158, %v592, %v1230
        %v1239 = vsel %vm1159, %v593, %v1231
        %v1240 = vsel %vm1160, %v594, %v1232
        %v1241 = vsel %vm1161, %v595, %v1233
        %v1242 = vsel %vm1162, %v596, %v1234
        %v1243 = vsel %vm1131, %v573, %v1235
        %v1244 = vsel %vm1132, %v574, %v1236
        %v1245 = vsel %vm1133, %v575, %v1237
        %v1246 = vsel %vm1134, %v576, %v1238
        %v1247 = vsel %vm1135, %v577, %v1239
        %v1248 = vsel %vm1136, %v578, %v1240
        %v1249 = vsel %vm1137, %v579, %v1241
        %v1250 = vsel %vm1138, %v580, %v1242
        %v1251 = vand.u32 2147483647, %v1243
        %v1252 = vand.u32 2147483647, %v1203
        %v1253 = vmin.f32 %v1251, %v1252
        %v1254 = vmax.f32 %v1251, %v1252
        %v1255 = vrcp.pop %v1254
        %v1256 = vmul.f32 %v1254, %v1255
        %v1257 = vsub.f32 1.0, %v1256
        %v1258 = vmul.f32 %v1255, %v1257
        %v1259 = vadd.f32 %v1255, %v1258
        %vm1260 = vweird.f32 %v1254
        %vm1261 = vweird.f32 %v1255
        %vm1262 = vmor %vm1260, %vm1261
        %v1263 = vsel %vm1262, %v1255, %v1259
        %v1264 = vand.u32 2147483647, %v1254
        %vm1265 = vcmp.eq.f32.partialorder %v1264, 8.507059e+37
        %v1266 = vand.u32 %v1254, 2147483648
        %v1267 = vor.u32 1.1754944e-38, %v1266
        %v1268 = vsel %vm1265, %v1267, %v1263
        %v1269 = vmul.f32 %v1253, %v1268
        %v1270 = vmul.f32 %v1269, %v1269
        %v1271 = vmul.f32 0.002785687, %v1270
        %v1272 = vadd.f32 %v1271, -0.015866
        %v1273 = vmul.f32 %v1272, %v1270
        %v1274 = vadd.f32 %v1273, 0.04247222
        %v1275 = vmul.f32 %v1274, %v1270
        %v1276 = vadd.f32 %v1275, -0.074975304
        %v1277 = vmul.f32 %v1276, %v1270
        %v1278 = vadd.f32 %v1277, 0.1064488
        %v1279 = vmul.f32 %v1278, %v1270
        %v1280 = vadd.f32 %v1279, -0.14207031
        %v1281 = vmul.f32 %v1280, %v1270
        %v1282 = vadd.f32 %v1281, 0.19993454
        %v1283 = vmul.f32 %v1282, %v1270
        %v1284 = vadd.f32 %v1283, -0.33333147
        %v1285 = vmul.f32 %v1284, %v1270
        %v1286 = vmul.f32 %v1285, %v1269
        %v1287 = vadd.f32 %v1286, %v1269
        %vm1288 = vcmp.gt.f32.partialorder %v1252, %v1251
        %v1289 = vsub.f32 1.5707964, %v1287
        %v1290 = vsel %vm1288, %v1289, %v1287
        %vm1291 = vcmp.lt.f32.partialorder %v1243, 0.0
        %v1292 = vsub.f32 3.1415927, %v1290
        %v1293 = vsel %vm1291, %v1292, %v1290
        %vm1294 = vcmp.lt.s32.totalorder %v1243, 0
        %v1295 = vsel %vm1294, 3.1415927, 0.0
        %vm1296 = vcmp.eq.f32.partialorder %v1203, 0.0
        %v1297 = vsel %vm1296, %v1295, %v1293
        %vm1298 = vcmp.ne.f32.partialorder %v1243, %v1243
        %vm1299 = vcmp.ne.f32.partialorder %v1203, %v1203
        %vm1300 = vmor %vm1298, %vm1299
        %v1301 = vsel %vm1300, nan, %v1297
        %vm1302 = vcmp.lt.f32.partialorder %v1243, 0.0
        %v1303 = vsel %vm1302, 2.3561945, 0.7853982
        %vm1304 = vcmp.eq.s32.totalorder %v1251, inf
        %vm1305 = vcmp.eq.s32.totalorder %v1252, inf
        %vm1306 = vmand %vm1304, %vm1305
        %v1307 = vsel %vm1306, %v1303, %v1301
        %v1308 = vand.u32 2147483647, %v1307
        %v1309 = vand.u32 %v1203, 2147483648
        %v1310 = vor.u32 %v1308, %v1309
        %v1311 = vand.u32 2147483647, %v1244
        %v1312 = vand.u32 2147483647, %v1204
        %v1313 = vmin.f32 %v1311, %v1312
        %v1314 = vmax.f32 %v1311, %v1312
        %v1315 = vrcp.pop %v1314
        %v1316 = vmul.f32 %v1314, %v1315
        %v1317 = vsub.f32 1.0, %v1316
        %v1318 = vmul.f32 %v1315, %v1317
        %v1319 = vadd.f32 %v1315, %v1318
        %vm1320 = vweird.f32 %v1314
        %vm1321 = vweird.f32 %v1315
        %vm1322 = vmor %vm1320, %vm1321
        %v1323 = vsel %vm1322, %v1315, %v1319
        %v1324 = vand.u32 2147483647, %v1314
        %vm1325 = vcmp.eq.f32.partialorder %v1324, 8.507059e+37
        %v1326 = vand.u32 %v1314, 2147483648
        %v1327 = vor.u32 1.1754944e-38, %v1326
        %v1328 = vsel %vm1325, %v1327, %v1323
        %v1329 = vmul.f32 %v1313, %v1328
        %v1330 = vmul.f32 %v1329, %v1329
        %v1331 = vmul.f32 0.002785687, %v1330
        %v1332 = vadd.f32 %v1331, -0.015866
        %v1333 = vmul.f32 %v1332, %v1330
        %v1334 = vadd.f32 %v1333, 0.04247222
        %v1335 = vmul.f32 %v1334, %v1330
        %v1336 = vadd.f32 %v1335, -0.074975304
        %v1337 = vmul.f32 %v1336, %v1330
        %v1338 = vadd.f32 %v1337, 0.1064488
        %v1339 = vmul.f32 %v1338, %v1330
        %v1340 = vadd.f32 %v1339, -0.14207031
        %v1341 = vmul.f32 %v1340, %v1330
        %v1342 = vadd.f32 %v1341, 0.19993454
        %v1343 = vmul.f32 %v1342, %v1330
        %v1344 = vadd.f32 %v1343, -0.33333147
        %v1345 = vmul.f32 %v1344, %v1330
        %v1346 = vmul.f32 %v1345, %v1329
        %v1347 = vadd.f32 %v1346, %v1329
        %vm1348 = vcmp.gt.f32.partialorder %v1312, %v1311
        %v1349 = vsub.f32 1.5707964, %v1347
        %v1350 = vsel %vm1348, %v1349, %v1347
        %vm1351 = vcmp.lt.f32.partialorder %v1244, 0.0
        %v1352 = vsub.f32 3.1415927, %v1350
        %v1353 = vsel %vm1351, %v1352, %v1350
        %vm1354 = vcmp.lt.s32.totalorder %v1244, 0
        %v1355 = vsel %vm1354, 3.1415927, 0.0
        %vm1356 = vcmp.eq.f32.partialorder %v1204, 0.0
        %v1357 = vsel %vm1356, %v1355, %v1353
        %vm1358 = vcmp.ne.f32.partialorder %v1244, %v1244
        %vm1359 = vcmp.ne.f32.partialorder %v1204, %v1204
        %vm1360 = vmor %vm1358, %vm1359
        %v1361 = vsel %vm1360, nan, %v1357
        %vm1362 = vcmp.lt.f32.partialorder %v1244, 0.0
        %v1363 = vsel %vm1362, 2.3561945, 0.7853982
        %vm1364 = vcmp.eq.s32.totalorder %v1311, inf
        %vm1365 = vcmp.eq.s32.totalorder %v1312, inf
        %vm1366 = vmand %vm1364, %vm1365
        %v1367 = vsel %vm1366, %v1363, %v1361
        %v1368 = vand.u32 2147483647, %v1367
        %v1369 = vand.u32 %v1204, 2147483648
        %v1370 = vor.u32 %v1368, %v1369
        %v1371 = vand.u32 2147483647, %v1245
        %v1372 = vand.u32 2147483647, %v1205
        %v1373 = vmin.f32 %v1371, %v1372
        %v1374 = vmax.f32 %v1371, %v1372
        %v1375 = vrcp.pop %v1374
        %v1376 = vmul.f32 %v1374, %v1375
        %v1377 = vsub.f32 1.0, %v1376
        %v1378 = vmul.f32 %v1375, %v1377
        %v1379 = vadd.f32 %v1375, %v1378
        %vm1380 = vweird.f32 %v1374
        %vm1381 = vweird.f32 %v1375
        %vm1382 = vmor %vm1380, %vm1381
        %v1383 = vsel %vm1382, %v1375, %v1379
        %v1384 = vand.u32 2147483647, %v1374
        %vm1385 = vcmp.eq.f32.partialorder %v1384, 8.507059e+37
        %v1386 = vand.u32 %v1374, 2147483648
        %v1387 = vor.u32 1.1754944e-38, %v1386
        %v1388 = vsel %vm1385, %v1387, %v1383
        %v1389 = vmul.f32 %v1373, %v1388
        %v1390 = vmul.f32 %v1389, %v1389
        %v1391 = vmul.f32 0.002785687, %v1390
        %v1392 = vadd.f32 %v1391, -0.015866
        %v1393 = vmul.f32 %v1392, %v1390
        %v1394 = vadd.f32 %v1393, 0.04247222
        %v1395 = vmul.f32 %v1394, %v1390
        %v1396 = vadd.f32 %v1395, -0.074975304
        %v1397 = vmul.f32 %v1396, %v1390
        %v1398 = vadd.f32 %v1397, 0.1064488
        %v1399 = vmul.f32 %v1398, %v1390
        %v1400 = vadd.f32 %v1399, -0.14207031
        %v1401 = vmul.f32 %v1400, %v1390
        %v1402 = vadd.f32 %v1401, 0.19993454
        %v1403 = vmul.f32 %v1402, %v1390
        %v1404 = vadd.f32 %v1403, -0.33333147
        %v1405 = vmul.f32 %v1404, %v1390
        %v1406 = vmul.f32 %v1405, %v1389
        %v1407 = vadd.f32 %v1406, %v1389
        %vm1408 = vcmp.gt.f32.partialorder %v1372, %v1371
        %v1409 = vsub.f32 1.5707964, %v1407
        %v1410 = vsel %vm1408, %v1409, %v1407
        %vm1411 = vcmp.lt.f32.partialorder %v1245, 0.0
        %v1412 = vsub.f32 3.1415927, %v1410
        %v1413 = vsel %vm1411, %v1412, %v1410
        %vm1414 = vcmp.lt.s32.totalorder %v1245, 0
        %v1415 = vsel %vm1414, 3.1415927, 0.0
        %vm1416 = vcmp.eq.f32.partialorder %v1205, 0.0
        %v1417 = vsel %vm1416, %v1415, %v1413
        %vm1418 = vcmp.ne.f32.partialorder %v1245, %v1245
        %vm1419 = vcmp.ne.f32.partialorder %v1205, %v1205
        %vm1420 = vmor %vm1418, %vm1419
        %v1421 = vsel %vm1420, nan, %v1417
        %vm1422 = vcmp.lt.f32.partialorder %v1245, 0.0
        %v1423 = vsel %vm1422, 2.3561945, 0.7853982
        %vm1424 = vcmp.eq.s32.totalorder %v1371, inf
        %vm1425 = vcmp.eq.s32.totalorder %v1372, inf
        %vm1426 = vmand %vm1424, %vm1425
        %v1427 = vsel %vm1426, %v1423, %v1421
        %v1428 = vand.u32 2147483647, %v1427
        %v1429 = vand.u32 %v1205, 2147483648
        %v1430 = vor.u32 %v1428, %v1429
        %v1431 = vand.u32 2147483647, %v1246
        %v1432 = vand.u32 2147483647, %v1206
        %v1433 = vmin.f32 %v1431, %v1432
        %v1434 = vmax.f32 %v1431, %v1432
        %v1435 = vrcp.pop %v1434
        %v1436 = vmul.f32 %v1434, %v1435
        %v1437 = vsub.f32 1.0, %v1436
        %v1438 = vmul.f32 %v1435, %v1437
        %v1439 = vadd.f32 %v1435, %v1438
        %vm1440 = vweird.f32 %v1434
        %vm1441 = vweird.f32 %v1435
        %vm1442 = vmor %vm1440, %vm1441
        %v1443 = vsel %vm1442, %v1435, %v1439
        %v1444 = vand.u32 2147483647, %v1434
        %vm1445 = vcmp.eq.f32.partialorder %v1444, 8.507059e+37
        %v1446 = vand.u32 %v1434, 2147483648
        %v1447 = vor.u32 1.1754944e-38, %v1446
        %v1448 = vsel %vm1445, %v1447, %v1443
        %v1449 = vmul.f32 %v1433, %v1448
        %v1450 = vmul.f32 %v1449, %v1449
        %v1451 = vmul.f32 0.002785687, %v1450
        %v1452 = vadd.f32 %v1451, -0.015866
        %v1453 = vmul.f32 %v1452, %v1450
        %v1454 = vadd.f32 %v1453, 0.04247222
        %v1455 = vmul.f32 %v1454, %v1450
        %v1456 = vadd.f32 %v1455, -0.074975304
        %v1457 = vmul.f32 %v1456, %v1450
        %v1458 = vadd.f32 %v1457, 0.1064488
        %v1459 = vmul.f32 %v1458, %v1450
        %v1460 = vadd.f32 %v1459, -0.14207031
        %v1461 = vmul.f32 %v1460, %v1450
        %v1462 = vadd.f32 %v1461, 0.19993454
        %v1463 = vmul.f32 %v1462, %v1450
        %v1464 = vadd.f32 %v1463, -0.33333147
        %v1465 = vmul.f32 %v1464, %v1450
        %v1466 = vmul.f32 %v1465, %v1449
        %v1467 = vadd.f32 %v1466, %v1449
        %vm1468 = vcmp.gt.f32.partialorder %v1432, %v1431
        %v1469 = vsub.f32 1.5707964, %v1467
        %v1470 = vsel %vm1468, %v1469, %v1467
        %vm1471 = vcmp.lt.f32.partialorder %v1246, 0.0
        %v1472 = vsub.f32 3.1415927, %v1470
        %v1473 = vsel %vm1471, %v1472, %v1470
        %vm1474 = vcmp.lt.s32.totalorder %v1246, 0
        %v1475 = vsel %vm1474, 3.1415927, 0.0
        %vm1476 = vcmp.eq.f32.partialorder %v1206, 0.0
        %v1477 = vsel %vm1476, %v1475, %v1473
        %vm1478 = vcmp.ne.f32.partialorder %v1246, %v1246
        %vm1479 = vcmp.ne.f32.partialorder %v1206, %v1206
        %vm1480 = vmor %vm1478, %vm1479
        %v1481 = vsel %vm1480, nan, %v1477
        %vm1482 = vcmp.lt.f32.partialorder %v1246, 0.0
        %v1483 = vsel %vm1482, 2.3561945, 0.7853982
        %vm1484 = vcmp.eq.s32.totalorder %v1431, inf
        %vm1485 = vcmp.eq.s32.totalorder %v1432, inf
        %vm1486 = vmand %vm1484, %vm1485
        %v1487 = vsel %vm1486, %v1483, %v1481
        %v1488 = vand.u32 2147483647, %v1487
        %v1489 = vand.u32 %v1206, 2147483648
        %v1490 = vor.u32 %v1488, %v1489
        %v1491 = vand.u32 2147483647, %v1247
        %v1492 = vand.u32 2147483647, %v1207
        %v1493 = vmin.f32 %v1491, %v1492
        %v1494 = vmax.f32 %v1491, %v1492
        %v1495 = vrcp.pop %v1494
        %v1496 = vmul.f32 %v1494, %v1495
        %v1497 = vsub.f32 1.0, %v1496
        %v1498 = vmul.f32 %v1495, %v1497
        %v1499 = vadd.f32 %v1495, %v1498
        %vm1500 = vweird.f32 %v1494
        %vm1501 = vweird.f32 %v1495
        %vm1502 = vmor %vm1500, %vm1501
        %v1503 = vsel %vm1502, %v1495, %v1499
        %v1504 = vand.u32 2147483647, %v1494
        %vm1505 = vcmp.eq.f32.partialorder %v1504, 8.507059e+37
        %v1506 = vand.u32 %v1494, 2147483648
        %v1507 = vor.u32 1.1754944e-38, %v1506
        %v1508 = vsel %vm1505, %v1507, %v1503
        %v1509 = vmul.f32 %v1493, %v1508
        %v1510 = vmul.f32 %v1509, %v1509
        %v1511 = vmul.f32 0.002785687, %v1510
        %v1512 = vadd.f32 %v1511, -0.015866
        %v1513 = vmul.f32 %v1512, %v1510
        %v1514 = vadd.f32 %v1513, 0.04247222
        %v1515 = vmul.f32 %v1514, %v1510
        %v1516 = vadd.f32 %v1515, -0.074975304
        %v1517 = vmul.f32 %v1516, %v1510
        %v1518 = vadd.f32 %v1517, 0.1064488
        %v1519 = vmul.f32 %v1518, %v1510
        %v1520 = vadd.f32 %v1519, -0.14207031
        %v1521 = vmul.f32 %v1520, %v1510
        %v1522 = vadd.f32 %v1521, 0.19993454
        %v1523 = vmul.f32 %v1522, %v1510
        %v1524 = vadd.f32 %v1523, -0.33333147
        %v1525 = vmul.f32 %v1524, %v1510
        %v1526 = vmul.f32 %v1525, %v1509
        %v1527 = vadd.f32 %v1526, %v1509
        %vm1528 = vcmp.gt.f32.partialorder %v1492, %v1491
        %v1529 = vsub.f32 1.5707964, %v1527
        %v1530 = vsel %vm1528, %v1529, %v1527
        %vm1531 = vcmp.lt.f32.partialorder %v1247, 0.0
        %v1532 = vsub.f32 3.1415927, %v1530
        %v1533 = vsel %vm1531, %v1532, %v1530
        %vm1534 = vcmp.lt.s32.totalorder %v1247, 0
        %v1535 = vsel %vm1534, 3.1415927, 0.0
        %vm1536 = vcmp.eq.f32.partialorder %v1207, 0.0
        %v1537 = vsel %vm1536, %v1535, %v1533
        %vm1538 = vcmp.ne.f32.partialorder %v1247, %v1247
        %vm1539 = vcmp.ne.f32.partialorder %v1207, %v1207
        %vm1540 = vmor %vm1538, %vm1539
        %v1541 = vsel %vm1540, nan, %v1537
        %vm1542 = vcmp.lt.f32.partialorder %v1247, 0.0
        %v1543 = vsel %vm1542, 2.3561945, 0.7853982
        %vm1544 = vcmp.eq.s32.totalorder %v1491, inf
        %vm1545 = vcmp.eq.s32.totalorder %v1492, inf
        %vm1546 = vmand %vm1544, %vm1545
        %v1547 = vsel %vm1546, %v1543, %v1541
        %v1548 = vand.u32 2147483647, %v1547
        %v1549 = vand.u32 %v1207, 2147483648
        %v1550 = vor.u32 %v1548, %v1549
        %v1551 = vand.u32 2147483647, %v1248
        %v1552 = vand.u32 2147483647, %v1208
        %v1553 = vmin.f32 %v1551, %v1552
        %v1554 = vmax.f32 %v1551, %v1552
        %v1555 = vrcp.pop %v1554
        %v1556 = vmul.f32 %v1554, %v1555
        %v1557 = vsub.f32 1.0, %v1556
        %v1558 = vmul.f32 %v1555, %v1557
        %v1559 = vadd.f32 %v1555, %v1558
        %vm1560 = vweird.f32 %v1554
        %vm1561 = vweird.f32 %v1555
        %vm1562 = vmor %vm1560, %vm1561
        %v1563 = vsel %vm1562, %v1555, %v1559
        %v1564 = vand.u32 2147483647, %v1554
        %vm1565 = vcmp.eq.f32.partialorder %v1564, 8.507059e+37
        %v1566 = vand.u32 %v1554, 2147483648
        %v1567 = vor.u32 1.1754944e-38, %v1566
        %v1568 = vsel %vm1565, %v1567, %v1563
        %v1569 = vmul.f32 %v1553, %v1568
        %v1570 = vmul.f32 %v1569, %v1569
        %v1571 = vmul.f32 0.002785687, %v1570
        %v1572 = vadd.f32 %v1571, -0.015866
        %v1573 = vmul.f32 %v1572, %v1570
        %v1574 = vadd.f32 %v1573, 0.04247222
        %v1575 = vmul.f32 %v1574, %v1570
        %v1576 = vadd.f32 %v1575, -0.074975304
        %v1577 = vmul.f32 %v1576, %v1570
        %v1578 = vadd.f32 %v1577, 0.1064488
        %v1579 = vmul.f32 %v1578, %v1570
        %v1580 = vadd.f32 %v1579, -0.14207031
        %v1581 = vmul.f32 %v1580, %v1570
        %v1582 = vadd.f32 %v1581, 0.19993454
        %v1583 = vmul.f32 %v1582, %v1570
        %v1584 = vadd.f32 %v1583, -0.33333147
        %v1585 = vmul.f32 %v1584, %v1570
        %v1586 = vmul.f32 %v1585, %v1569
        %v1587 = vadd.f32 %v1586, %v1569
        %vm1588 = vcmp.gt.f32.partialorder %v1552, %v1551
        %v1589 = vsub.f32 1.5707964, %v1587
        %v1590 = vsel %vm1588, %v1589, %v1587
        %vm1591 = vcmp.lt.f32.partialorder %v1248, 0.0
        %v1592 = vsub.f32 3.1415927, %v1590
        %v1593 = vsel %vm1591, %v1592, %v1590
        %vm1594 = vcmp.lt.s32.totalorder %v1248, 0
        %v1595 = vsel %vm1594, 3.1415927, 0.0
        %vm1596 = vcmp.eq.f32.partialorder %v1208, 0.0
        %v1597 = vsel %vm1596, %v1595, %v1593
        %vm1598 = vcmp.ne.f32.partialorder %v1248, %v1248
        %vm1599 = vcmp.ne.f32.partialorder %v1208, %v1208
        %vm1600 = vmor %vm1598, %vm1599
        %v1601 = vsel %vm1600, nan, %v1597
        %vm1602 = vcmp.lt.f32.partialorder %v1248, 0.0
        %v1603 = vsel %vm1602, 2.3561945, 0.7853982
        %vm1604 = vcmp.eq.s32.totalorder %v1551, inf
        %vm1605 = vcmp.eq.s32.totalorder %v1552, inf
        %vm1606 = vmand %vm1604, %vm1605
        %v1607 = vsel %vm1606, %v1603, %v1601
        %v1608 = vand.u32 2147483647, %v1607
        %v1609 = vand.u32 %v1208, 2147483648
        %v1610 = vor.u32 %v1608, %v1609
        %v1611 = vand.u32 2147483647, %v1249
        %v1612 = vand.u32 2147483647, %v1209
        %v1613 = vmin.f32 %v1611, %v1612
        %v1614 = vmax.f32 %v1611, %v1612
        %v1615 = vrcp.pop %v1614
        %v1616 = vmul.f32 %v1614, %v1615
        %v1617 = vsub.f32 1.0, %v1616
        %v1618 = vmul.f32 %v1615, %v1617
        %v1619 = vadd.f32 %v1615, %v1618
        %vm1620 = vweird.f32 %v1614
        %vm1621 = vweird.f32 %v1615
        %vm1622 = vmor %vm1620, %vm1621
        %v1623 = vsel %vm1622, %v1615, %v1619
        %v1624 = vand.u32 2147483647, %v1614
        %vm1625 = vcmp.eq.f32.partialorder %v1624, 8.507059e+37
        %v1626 = vand.u32 %v1614, 2147483648
        %v1627 = vor.u32 1.1754944e-38, %v1626
        %v1628 = vsel %vm1625, %v1627, %v1623
        %v1629 = vmul.f32 %v1613, %v1628
        %v1630 = vmul.f32 %v1629, %v1629
        %v1631 = vmul.f32 0.002785687, %v1630
        %v1632 = vadd.f32 %v1631, -0.015866
        %v1633 = vmul.f32 %v1632, %v1630
        %v1634 = vadd.f32 %v1633, 0.04247222
        %v1635 = vmul.f32 %v1634, %v1630
        %v1636 = vadd.f32 %v1635, -0.074975304
        %v1637 = vmul.f32 %v1636, %v1630
        %v1638 = vadd.f32 %v1637, 0.1064488
        %v1639 = vmul.f32 %v1638, %v1630
        %v1640 = vadd.f32 %v1639, -0.14207031
        %v1641 = vmul.f32 %v1640, %v1630
        %v1642 = vadd.f32 %v1641, 0.19993454
        %v1643 = vmul.f32 %v1642, %v1630
        %v1644 = vadd.f32 %v1643, -0.33333147
        %v1645 = vmul.f32 %v1644, %v1630
        %v1646 = vmul.f32 %v1645, %v1629
        %v1647 = vadd.f32 %v1646, %v1629
        %vm1648 = vcmp.gt.f32.partialorder %v1612, %v1611
        %v1649 = vsub.f32 1.5707964, %v1647
        %v1650 = vsel %vm1648, %v1649, %v1647
        %vm1651 = vcmp.lt.f32.partialorder %v1249, 0.0
        %v1652 = vsub.f32 3.1415927, %v1650
        %v1653 = vsel %vm1651, %v1652, %v1650
        %vm1654 = vcmp.lt.s32.totalorder %v1249, 0
        %v1655 = vsel %vm1654, 3.1415927, 0.0
        %vm1656 = vcmp.eq.f32.partialorder %v1209, 0.0
        %v1657 = vsel %vm1656, %v1655, %v1653
        %vm1658 = vcmp.ne.f32.partialorder %v1249, %v1249
        %vm1659 = vcmp.ne.f32.partialorder %v1209, %v1209
        %vm1660 = vmor %vm1658, %vm1659
        %v1661 = vsel %vm1660, nan, %v1657
        %vm1662 = vcmp.lt.f32.partialorder %v1249, 0.0
        %v1663 = vsel %vm1662, 2.3561945, 0.7853982
        %vm1664 = vcmp.eq.s32.totalorder %v1611, inf
        %vm1665 = vcmp.eq.s32.totalorder %v1612, inf
        %vm1666 = vmand %vm1664, %vm1665
        %v1667 = vsel %vm1666, %v1663, %v1661
        %v1668 = vand.u32 2147483647, %v1667
        %v1669 = vand.u32 %v1209, 2147483648
        %v1670 = vor.u32 %v1668, %v1669
        %v1671 = vand.u32 2147483647, %v1250
        %v1672 = vand.u32 2147483647, %v1210
        %v1673 = vmin.f32 %v1671, %v1672
        %v1674 = vmax.f32 %v1671, %v1672
        %v1675 = vrcp.pop %v1674
        %v1676 = vmul.f32 %v1674, %v1675
        %v1677 = vsub.f32 1.0, %v1676
        %v1678 = vmul.f32 %v1675, %v1677
        %v1679 = vadd.f32 %v1675, %v1678
        %vm1680 = vweird.f32 %v1674
        %vm1681 = vweird.f32 %v1675
        %vm1682 = vmor %vm1680, %vm1681
        %v1683 = vsel %vm1682, %v1675, %v1679
        %v1684 = vand.u32 2147483647, %v1674
        %vm1685 = vcmp.eq.f32.partialorder %v1684, 8.507059e+37
        %v1686 = vand.u32 %v1674, 2147483648
        %v1687 = vor.u32 1.1754944e-38, %v1686
        %v1688 = vsel %vm1685, %v1687, %v1683
        %v1689 = vmul.f32 %v1673, %v1688
        %v1690 = vmul.f32 %v1689, %v1689
        %v1691 = vmul.f32 0.002785687, %v1690
        %v1692 = vadd.f32 %v1691, -0.015866
        %v1693 = vmul.f32 %v1692, %v1690
        %v1694 = vadd.f32 %v1693, 0.04247222
        %v1695 = vmul.f32 %v1694, %v1690
        %v1696 = vadd.f32 %v1695, -0.074975304
        %v1697 = vmul.f32 %v1696, %v1690
        %v1698 = vadd.f32 %v1697, 0.1064488
        %v1699 = vmul.f32 %v1698, %v1690
        %v1700 = vadd.f32 %v1699, -0.14207031
        %v1701 = vmul.f32 %v1700, %v1690
        %v1702 = vadd.f32 %v1701, 0.19993454
        %v1703 = vmul.f32 %v1702, %v1690
        %v1704 = vadd.f32 %v1703, -0.33333147
        %v1705 = vmul.f32 %v1704, %v1690
        %v1706 = vmul.f32 %v1705, %v1689
        %v1707 = vadd.f32 %v1706, %v1689
        %vm1708 = vcmp.gt.f32.partialorder %v1672, %v1671
        %v1709 = vsub.f32 1.5707964, %v1707
        %v1710 = vsel %vm1708, %v1709, %v1707
        %vm1711 = vcmp.lt.f32.partialorder %v1250, 0.0
        %v1712 = vsub.f32 3.1415927, %v1710
        %v1713 = vsel %vm1711, %v1712, %v1710
        %vm1714 = vcmp.lt.s32.totalorder %v1250, 0
        %v1715 = vsel %vm1714, 3.1415927, 0.0
        %vm1716 = vcmp.eq.f32.partialorder %v1210, 0.0
        %v1717 = vsel %vm1716, %v1715, %v1713
        %vm1718 = vcmp.ne.f32.partialorder %v1250, %v1250
        %vm1719 = vcmp.ne.f32.partialorder %v1210, %v1210
        %vm1720 = vmor %vm1718, %vm1719
        %v1721 = vsel %vm1720, nan, %v1717
        %vm1722 = vcmp.lt.f32.partialorder %v1250, 0.0
        %v1723 = vsel %vm1722, 2.3561945, 0.7853982
        %vm1724 = vcmp.eq.s32.totalorder %v1671, inf
        %vm1725 = vcmp.eq.s32.totalorder %v1672, inf
        %vm1726 = vmand %vm1724, %vm1725
        %v1727 = vsel %vm1726, %v1723, %v1721
        %v1728 = vand.u32 2147483647, %v1727
        %v1729 = vand.u32 %v1210, 2147483648
        %v1730 = vor.u32 %v1728, %v1729
        %1732 = vset.pattern.permute.xlu0 0
        %1733 = vperm.xlu0 %1732, %v606
        %v1734 = vpop.permute.xlu0 %1733
        %1737 = vset.pattern.permute.xlu0 0
        %1738 = vperm.xlu0 %1737, %v607
        %v1739 = vpop.permute.xlu0 %1738
        %1742 = vset.pattern.permute.xlu0 0
        %1743 = vperm.xlu0 %1742, %v608
        %v1744 = vpop.permute.xlu0 %1743
        %1747 = vset.pattern.permute.xlu0 0
        %1748 = vperm.xlu0 %1747, %v609
        %v1749 = vpop.permute.xlu0 %1748
        %1752 = vset.pattern.permute.xlu0 0
        %1753 = vperm.xlu0 %1752, %v610
        %v1754 = vpop.permute.xlu0 %1753
        %1757 = vset.pattern.permute.xlu0 0
        %1758 = vperm.xlu0 %1757, %v611
        %v1759 = vpop.permute.xlu0 %1758
        %1762 = vset.pattern.permute.xlu0 0
        %1763 = vperm.xlu0 %1762, %v612
        %v1764 = vpop.permute.xlu0 %1763
        %1767 = vset.pattern.permute.xlu0 0
        %1768 = vperm.xlu0 %1767, %v613
        %v1769 = vpop.permute.xlu0 %1768
        %v1771 = vsub.f32 %v1310, %v1734
        %v1772 = vsub.f32 %v1370, %v1739
        %v1773 = vsub.f32 %v1430, %v1744
        %v1774 = vsub.f32 %v1490, %v1749
        %v1775 = vsub.f32 %v1550, %v1754
        %v1776 = vsub.f32 %v1610, %v1759
        %v1777 = vsub.f32 %v1670, %v1764
        %v1778 = vsub.f32 %v1730, %v1769
        %v1779 = vmul.f32 %v1771, 0.15915494
        %v1780 = vmul.f32 %v1772, 0.15915494
        %v1781 = vmul.f32 %v1773, 0.15915494
        %v1782 = vmul.f32 %v1774, 0.15915494
        %v1783 = vmul.f32 %v1775, 0.15915494
        %v1784 = vmul.f32 %v1776, 0.15915494
        %v1785 = vmul.f32 %v1777, 0.15915494
        %v1786 = vmul.f32 %v1778, 0.15915494
        %v1787 = vadd.f32 %v1779, 0.5
        %v1788 = vadd.f32 %v1780, 0.5
        %v1789 = vadd.f32 %v1781, 0.5
        %v1790 = vadd.f32 %v1782, 0.5
        %v1791 = vadd.f32 %v1783, 0.5
        %v1792 = vadd.f32 %v1784, 0.5
        %v1793 = vadd.f32 %v1785, 0.5
        %v1794 = vadd.f32 %v1786, 0.5
        %v1795 = vfloor.f32 %v1787
        %v1796 = vfloor.f32 %v1788
        %v1797 = vfloor.f32 %v1789
        %v1798 = vfloor.f32 %v1790
        %v1799 = vfloor.f32 %v1791
        %v1800 = vfloor.f32 %v1792
        %v1801 = vfloor.f32 %v1793
        %v1802 = vfloor.f32 %v1794
        %v1803 = vmul.f32 %v1795, 6.2831855
        %v1804 = vmul.f32 %v1796, 6.2831855
        %v1805 = vmul.f32 %v1797, 6.2831855
        %v1806 = vmul.f32 %v1798, 6.2831855
        %v1807 = vmul.f32 %v1799, 6.2831855
        %v1808 = vmul.f32 %v1800, 6.2831855
        %v1809 = vmul.f32 %v1801, 6.2831855
        %v1810 = vmul.f32 %v1802, 6.2831855
        %v1811 = vsub.f32 %v1771, %v1803
        %v1812 = vsub.f32 %v1772, %v1804
        %v1813 = vsub.f32 %v1773, %v1805
        %v1814 = vsub.f32 %v1774, %v1806
        %v1815 = vsub.f32 %v1775, %v1807
        %v1816 = vsub.f32 %v1776, %v1808
        %v1817 = vsub.f32 %v1777, %v1809
        %v1818 = vsub.f32 %v1778, %v1810
        %v1819 = vadd.f32 %v1811, %v1734
        %v1820 = vadd.f32 %v1812, %v1739
        %v1821 = vadd.f32 %v1813, %v1744
        %v1822 = vadd.f32 %v1814, %v1749
        %v1823 = vadd.f32 %v1815, %v1754
        %v1824 = vadd.f32 %v1816, %v1759
        %v1825 = vadd.f32 %v1817, %v1764
        %v1826 = vadd.f32 %v1818, %v1769
        %v1827 = vmul.f32 %v573, %v573
        %v1828 = vmul.f32 %v574, %v574
        %v1829 = vmul.f32 %v575, %v575
        %v1830 = vmul.f32 %v576, %v576
        %v1831 = vmul.f32 %v577, %v577
        %v1832 = vmul.f32 %v578, %v578
        %v1833 = vmul.f32 %v579, %v579
        %v1834 = vmul.f32 %v580, %v580
        %v1835 = vmul.f32 %v581, %v581
        %v1836 = vmul.f32 %v582, %v582
        %v1837 = vmul.f32 %v583, %v583
        %v1838 = vmul.f32 %v584, %v584
        %v1839 = vmul.f32 %v585, %v585
        %v1840 = vmul.f32 %v586, %v586
        %v1841 = vmul.f32 %v587, %v587
        %v1842 = vmul.f32 %v588, %v588
        %v1843 = vadd.f32 %v1827, %v1835
        %v1844 = vadd.f32 %v1828, %v1836
        %v1845 = vadd.f32 %v1829, %v1837
        %v1846 = vadd.f32 %v1830, %v1838
        %v1847 = vadd.f32 %v1831, %v1839
        %v1848 = vadd.f32 %v1832, %v1840
        %v1849 = vadd.f32 %v1833, %v1841
        %v1850 = vadd.f32 %v1834, %v1842
        %v1851 = vrsqrt.pop %v1843
        %v1852 = vmul.f32 %v1851, %v1843
        %v1853 = vmul.f32 %v1852, %v1851
        %v1854 = vmul.f32 0.5, %v1853
        %v1855 = vsub.f32 1.5, %v1854
        %v1856 = vmul.f32 %v1851, %v1855
        %v1857 = vmul.f32 %v1843, %v1856
        %vm1858 = vcmp.eq.f32.partialorder %v1843, inf
        %v1859 = vsel %vm1858, %v1843, %v1857
        %vm1860 = vcmp.eq.f32.partialorder %v1843, 0.0
        %v1861 = vand.u32 %v1843, 2147483648
        %v1862 = vsel %vm1860, %v1861, %v1859
        %v1863 = vrsqrt.pop %v1844
        %v1864 = vmul.f32 %v1863, %v1844
        %v1865 = vmul.f32 %v1864, %v1863
        %v1866 = vmul.f32 0.5, %v1865
        %v1867 = vsub.f32 1.5, %v1866
        %v1868 = vmul.f32 %v1863, %v1867
        %v1869 = vmul.f32 %v1844, %v1868
        %vm1870 = vcmp.eq.f32.partialorder %v1844, inf
        %v1871 = vsel %vm1870, %v1844, %v1869
        %vm1872 = vcmp.eq.f32.partialorder %v1844, 0.0
        %v1873 = vand.u32 %v1844, 2147483648
        %v1874 = vsel %vm1872, %v1873, %v1871
        %v1875 = vrsqrt.pop %v1845
        %v1876 = vmul.f32 %v1875, %v1845
        %v1877 = vmul.f32 %v1876, %v1875
        %v1878 = vmul.f32 0.5, %v1877
        %v1879 = vsub.f32 1.5, %v1878
        %v1880 = vmul.f32 %v1875, %v1879
        %v1881 = vmul.f32 %v1845, %v1880
        %vm1882 = vcmp.eq.f32.partialorder %v1845, inf
        %v1883 = vsel %vm1882, %v1845, %v1881
        %vm1884 = vcmp.eq.f32.partialorder %v1845, 0.0
        %v1885 = vand.u32 %v1845, 2147483648
        %v1886 = vsel %vm1884, %v1885, %v1883
        %v1887 = vrsqrt.pop %v1846
        %v1888 = vmul.f32 %v1887, %v1846
        %v1889 = vmul.f32 %v1888, %v1887
        %v1890 = vmul.f32 0.5, %v1889
        %v1891 = vsub.f32 1.5, %v1890
        %v1892 = vmul.f32 %v1887, %v1891
        %v1893 = vmul.f32 %v1846, %v1892
        %vm1894 = vcmp.eq.f32.partialorder %v1846, inf
        %v1895 = vsel %vm1894, %v1846, %v1893
        %vm1896 = vcmp.eq.f32.partialorder %v1846, 0.0
        %v1897 = vand.u32 %v1846, 2147483648
        %v1898 = vsel %vm1896, %v1897, %v1895
        %v1899 = vrsqrt.pop %v1847
        %v1900 = vmul.f32 %v1899, %v1847
        %v1901 = vmul.f32 %v1900, %v1899
        %v1902 = vmul.f32 0.5, %v1901
        %v1903 = vsub.f32 1.5, %v1902
        %v1904 = vmul.f32 %v1899, %v1903
        %v1905 = vmul.f32 %v1847, %v1904
        %vm1906 = vcmp.eq.f32.partialorder %v1847, inf
        %v1907 = vsel %vm1906, %v1847, %v1905
        %vm1908 = vcmp.eq.f32.partialorder %v1847, 0.0
        %v1909 = vand.u32 %v1847, 2147483648
        %v1910 = vsel %vm1908, %v1909, %v1907
        %v1911 = vrsqrt.pop %v1848
        %v1912 = vmul.f32 %v1911, %v1848
        %v1913 = vmul.f32 %v1912, %v1911
        %v1914 = vmul.f32 0.5, %v1913
        %v1915 = vsub.f32 1.5, %v1914
        %v1916 = vmul.f32 %v1911, %v1915
        %v1917 = vmul.f32 %v1848, %v1916
        %vm1918 = vcmp.eq.f32.partialorder %v1848, inf
        %v1919 = vsel %vm1918, %v1848, %v1917
        %vm1920 = vcmp.eq.f32.partialorder %v1848, 0.0
        %v1921 = vand.u32 %v1848, 2147483648
        %v1922 = vsel %vm1920, %v1921, %v1919
        %v1923 = vrsqrt.pop %v1849
        %v1924 = vmul.f32 %v1923, %v1849
        %v1925 = vmul.f32 %v1924, %v1923
        %v1926 = vmul.f32 0.5, %v1925
        %v1927 = vsub.f32 1.5, %v1926
        %v1928 = vmul.f32 %v1923, %v1927
        %v1929 = vmul.f32 %v1849, %v1928
        %vm1930 = vcmp.eq.f32.partialorder %v1849, inf
        %v1931 = vsel %vm1930, %v1849, %v1929
        %vm1932 = vcmp.eq.f32.partialorder %v1849, 0.0
        %v1933 = vand.u32 %v1849, 2147483648
        %v1934 = vsel %vm1932, %v1933, %v1931
        %v1935 = vrsqrt.pop %v1850
        %v1936 = vmul.f32 %v1935, %v1850
        %v1937 = vmul.f32 %v1936, %v1935
        %v1938 = vmul.f32 0.5, %v1937
        %v1939 = vsub.f32 1.5, %v1938
        %v1940 = vmul.f32 %v1935, %v1939
        %v1941 = vmul.f32 %v1850, %v1940
        %vm1942 = vcmp.eq.f32.partialorder %v1850, inf
        %v1943 = vsel %vm1942, %v1850, %v1941
        %vm1944 = vcmp.eq.f32.partialorder %v1850, 0.0
        %v1945 = vand.u32 %v1850, 2147483648
        %v1946 = vsel %vm1944, %v1945, %v1943
        %v1947 = vmul.f32 %v589, %v589
        %v1948 = vmul.f32 %v590, %v590
        %v1949 = vmul.f32 %v591, %v591
        %v1950 = vmul.f32 %v592, %v592
        %v1951 = vmul.f32 %v593, %v593
        %v1952 = vmul.f32 %v594, %v594
        %v1953 = vmul.f32 %v595, %v595
        %v1954 = vmul.f32 %v596, %v596
        %v1955 = vmul.f32 %v597, %v597
        %v1956 = vmul.f32 %v598, %v598
        %v1957 = vmul.f32 %v599, %v599
        %v1958 = vmul.f32 %v600, %v600
        %v1959 = vmul.f32 %v601, %v601
        %v1960 = vmul.f32 %v602, %v602
        %v1961 = vmul.f32 %v603, %v603
        %v1962 = vmul.f32 %v604, %v604
        %v1963 = vadd.f32 %v1947, %v1955
        %v1964 = vadd.f32 %v1948, %v1956
        %v1965 = vadd.f32 %v1949, %v1957
        %v1966 = vadd.f32 %v1950, %v1958
        %v1967 = vadd.f32 %v1951, %v1959
        %v1968 = vadd.f32 %v1952, %v1960
        %v1969 = vadd.f32 %v1953, %v1961
        %v1970 = vadd.f32 %v1954, %v1962
        %v1971 = vrsqrt.pop %v1963
        %v1972 = vmul.f32 %v1971, %v1963
        %v1973 = vmul.f32 %v1972, %v1971
        %v1974 = vmul.f32 0.5, %v1973
        %v1975 = vsub.f32 1.5, %v1974
        %v1976 = vmul.f32 %v1971, %v1975
        %v1977 = vmul.f32 %v1963, %v1976
        %vm1978 = vcmp.eq.f32.partialorder %v1963, inf
        %v1979 = vsel %vm1978, %v1963, %v1977
        %vm1980 = vcmp.eq.f32.partialorder %v1963, 0.0
        %v1981 = vand.u32 %v1963, 2147483648
        %v1982 = vsel %vm1980, %v1981, %v1979
        %v1983 = vrsqrt.pop %v1964
        %v1984 = vmul.f32 %v1983, %v1964
        %v1985 = vmul.f32 %v1984, %v1983
        %v1986 = vmul.f32 0.5, %v1985
        %v1987 = vsub.f32 1.5, %v1986
        %v1988 = vmul.f32 %v1983, %v1987
        %v1989 = vmul.f32 %v1964, %v1988
        %vm1990 = vcmp.eq.f32.partialorder %v1964, inf
        %v1991 = vsel %vm1990, %v1964, %v1989
        %vm1992 = vcmp.eq.f32.partialorder %v1964, 0.0
        %v1993 = vand.u32 %v1964, 2147483648
        %v1994 = vsel %vm1992, %v1993, %v1991
        %v1995 = vrsqrt.pop %v1965
        %v1996 = vmul.f32 %v1995, %v1965
        %v1997 = vmul.f32 %v1996, %v1995
        %v1998 = vmul.f32 0.5, %v1997
        %v1999 = vsub.f32 1.5, %v1998
        %v2000 = vmul.f32 %v1995, %v1999
        %v2001 = vmul.f32 %v1965, %v2000
        %vm2002 = vcmp.eq.f32.partialorder %v1965, inf
        %v2003 = vsel %vm2002, %v1965, %v2001
        %vm2004 = vcmp.eq.f32.partialorder %v1965, 0.0
        %v2005 = vand.u32 %v1965, 2147483648
        %v2006 = vsel %vm2004, %v2005, %v2003
        %v2007 = vrsqrt.pop %v1966
        %v2008 = vmul.f32 %v2007, %v1966
        %v2009 = vmul.f32 %v2008, %v2007
        %v2010 = vmul.f32 0.5, %v2009
        %v2011 = vsub.f32 1.5, %v2010
        %v2012 = vmul.f32 %v2007, %v2011
        %v2013 = vmul.f32 %v1966, %v2012
        %vm2014 = vcmp.eq.f32.partialorder %v1966, inf
        %v2015 = vsel %vm2014, %v1966, %v2013
        %vm2016 = vcmp.eq.f32.partialorder %v1966, 0.0
        %v2017 = vand.u32 %v1966, 2147483648
        %v2018 = vsel %vm2016, %v2017, %v2015
        %v2019 = vrsqrt.pop %v1967
        %v2020 = vmul.f32 %v2019, %v1967
        %v2021 = vmul.f32 %v2020, %v2019
        %v2022 = vmul.f32 0.5, %v2021
        %v2023 = vsub.f32 1.5, %v2022
        %v2024 = vmul.f32 %v2019, %v2023
        %v2025 = vmul.f32 %v1967, %v2024
        %vm2026 = vcmp.eq.f32.partialorder %v1967, inf
        %v2027 = vsel %vm2026, %v1967, %v2025
        %vm2028 = vcmp.eq.f32.partialorder %v1967, 0.0
        %v2029 = vand.u32 %v1967, 2147483648
        %v2030 = vsel %vm2028, %v2029, %v2027
        %v2031 = vrsqrt.pop %v1968
        %v2032 = vmul.f32 %v2031, %v1968
        %v2033 = vmul.f32 %v2032, %v2031
        %v2034 = vmul.f32 0.5, %v2033
        %v2035 = vsub.f32 1.5, %v2034
        %v2036 = vmul.f32 %v2031, %v2035
        %v2037 = vmul.f32 %v1968, %v2036
        %vm2038 = vcmp.eq.f32.partialorder %v1968, inf
        %v2039 = vsel %vm2038, %v1968, %v2037
        %vm2040 = vcmp.eq.f32.partialorder %v1968, 0.0
        %v2041 = vand.u32 %v1968, 2147483648
        %v2042 = vsel %vm2040, %v2041, %v2039
        %v2043 = vrsqrt.pop %v1969
        %v2044 = vmul.f32 %v2043, %v1969
        %v2045 = vmul.f32 %v2044, %v2043
        %v2046 = vmul.f32 0.5, %v2045
        %v2047 = vsub.f32 1.5, %v2046
        %v2048 = vmul.f32 %v2043, %v2047
        %v2049 = vmul.f32 %v1969, %v2048
        %vm2050 = vcmp.eq.f32.partialorder %v1969, inf
        %v2051 = vsel %vm2050, %v1969, %v2049
        %vm2052 = vcmp.eq.f32.partialorder %v1969, 0.0
        %v2053 = vand.u32 %v1969, 2147483648
        %v2054 = vsel %vm2052, %v2053, %v2051
        %v2055 = vrsqrt.pop %v1970
        %v2056 = vmul.f32 %v2055, %v1970
        %v2057 = vmul.f32 %v2056, %v2055
        %v2058 = vmul.f32 0.5, %v2057
        %v2059 = vsub.f32 1.5, %v2058
        %v2060 = vmul.f32 %v2055, %v2059
        %v2061 = vmul.f32 %v1970, %v2060
        %vm2062 = vcmp.eq.f32.partialorder %v1970, inf
        %v2063 = vsel %vm2062, %v1970, %v2061
        %vm2064 = vcmp.eq.f32.partialorder %v1970, 0.0
        %v2065 = vand.u32 %v1970, 2147483648
        %v2066 = vsel %vm2064, %v2065, %v2063
        %v2068 = vperm.slane %v605, 0
        %v2070 = vmul.f32 %v2068, %v1982
        %v2071 = vmul.f32 %v2068, %v1994
        %v2072 = vmul.f32 %v2068, %v2006
        %v2073 = vmul.f32 %v2068, %v2018
        %v2074 = vmul.f32 %v2068, %v2030
        %v2075 = vmul.f32 %v2068, %v2042
        %v2076 = vmul.f32 %v2068, %v2054
        %v2077 = vmul.f32 %v2068, %v2066
        %v2078 = vsub.f32 1.0, %v605
        %v2080 = vperm.slane %v2078, 0
        %v2082 = vmul.f32 %v2080, %v1862
        %v2083 = vmul.f32 %v2080, %v1874
        %v2084 = vmul.f32 %v2080, %v1886
        %v2085 = vmul.f32 %v2080, %v1898
        %v2086 = vmul.f32 %v2080, %v1910
        %v2087 = vmul.f32 %v2080, %v1922
        %v2088 = vmul.f32 %v2080, %v1934
        %v2089 = vmul.f32 %v2080, %v1946
        %v2090 = vadd.f32 %v2070, %v2082
        %v2091 = vadd.f32 %v2071, %v2083
        %v2092 = vadd.f32 %v2072, %v2084
        %v2093 = vadd.f32 %v2073, %v2085
        %v2094 = vadd.f32 %v2074, %v2086
        %v2095 = vadd.f32 %v2075, %v2087
        %v2096 = vadd.f32 %v2076, %v2088
        %v2097 = vadd.f32 %v2077, %v2089
        %v2098 = vld [vmem:[#allocation12] sm:$0xff]
        %v2099 = vld [vmem:[#allocation12 + $0x8] sm:$0xff]
        %v2100 = vld [vmem:[#allocation12 + $0x10] sm:$0xff]
        %v2101 = vld [vmem:[#allocation12 + $0x18] sm:$0xff]
        %v2102 = vld [vmem:[#allocation12 + $0x20] sm:$0xff]
        %v2103 = vld [vmem:[#allocation12 + $0x28] sm:$0xff]
        %v2104 = vld [vmem:[#allocation12 + $0x30] sm:$0xff]
        %v2105 = vld [vmem:[#allocation12 + $0x38] sm:$0xff]
        %v2106 = vld [vmem:[#allocation12 + $0x40] sm:$0xff]
        %v2107 = vld [vmem:[#allocation12 + $0x48] sm:$0xff]
        %v2108 = vld [vmem:[#allocation12 + $0x50] sm:$0xff]
        %v2109 = vld [vmem:[#allocation12 + $0x58] sm:$0xff]
        %v2110 = vld [vmem:[#allocation12 + $0x60] sm:$0xff]
        %v2111 = vld [vmem:[#allocation12 + $0x68] sm:$0xff]
        %v2112 = vld [vmem:[#allocation12 + $0x70] sm:$0xff]
        %v2113 = vld [vmem:[#allocation12 + $0x78] sm:$0xff]
        %v2114 = vld [vmem:[#allocation2] sm:$0xff]
        %v2115 = vld [vmem:[#allocation2 + $0x8] sm:$0xff]
        %v2116 = vld [vmem:[#allocation2 + $0x10] sm:$0xff]
        %v2117 = vld [vmem:[#allocation2 + $0x18] sm:$0xff]
        %v2118 = vld [vmem:[#allocation2 + $0x20] sm:$0xff]
        %v2119 = vld [vmem:[#allocation2 + $0x28] sm:$0xff]
        %v2120 = vld [vmem:[#allocation2 + $0x30] sm:$0xff]
        %v2121 = vld [vmem:[#allocation2 + $0x38] sm:$0xff]
        %2123 = vset.pattern.permute.xlu0 0
        %2124 = vperm.xlu0 %2123, %v2114
        %v2125 = vpop.permute.xlu0 %2124
        %2128 = vset.pattern.permute.xlu0 0
        %2129 = vperm.xlu0 %2128, %v2115
        %v2130 = vpop.permute.xlu0 %2129
        %2133 = vset.pattern.permute.xlu0 0
        %2134 = vperm.xlu0 %2133, %v2116
        %v2135 = vpop.permute.xlu0 %2134
        %2138 = vset.pattern.permute.xlu0 0
        %2139 = vperm.xlu0 %2138, %v2117
        %v2140 = vpop.permute.xlu0 %2139
        %2143 = vset.pattern.permute.xlu0 0
        %2144 = vperm.xlu0 %2143, %v2118
        %v2145 = vpop.permute.xlu0 %2144
        %2148 = vset.pattern.permute.xlu0 0
        %2149 = vperm.xlu0 %2148, %v2119
        %v2150 = vpop.permute.xlu0 %2149
        %2153 = vset.pattern.permute.xlu0 0
        %2154 = vperm.xlu0 %2153, %v2120
        %v2155 = vpop.permute.xlu0 %2154
        %2158 = vset.pattern.permute.xlu0 0
        %2159 = vperm.xlu0 %2158, %v2121
        %v2160 = vpop.permute.xlu0 %2159
        %v2162 = vand.u32 %v2113, 4294901760
        %2163 = vmatpush.msra.mxu0 %v2162
        %v2164 = vand.u32 %v2112, 4294901760
        %2165 = vmatpush.msra.mxu0 %v2164
        %v2166 = vand.u32 %v2111, 4294901760
        %2167 = vmatpush.msra.mxu0 %v2166
        %v2168 = vand.u32 %v2110, 4294901760
        %2169 = vmatpush.msra.mxu0 %v2168
        %v2170 = vand.u32 %v2109, 4294901760
        %2171 = vmatpush.msra.mxu0 %v2170
        %v2172 = vand.u32 %v2108, 4294901760
        %2173 = vmatpush.msra.mxu0 %v2172
        %v2174 = vand.u32 %v2107, 4294901760
        %2175 = vmatpush.msra.mxu0 %v2174
        %v2176 = vand.u32 %v2106, 4294901760
        %2177 = vmatpush.msra.mxu0 %v2176
        %v2178 = vand.u32 %v2105, 4294901760
        %2179 = vmatpush.msra.mxu0 %v2178
        %v2180 = vand.u32 %v2104, 4294901760
        %2181 = vmatpush.msra.mxu0 %v2180
        %v2182 = vand.u32 %v2103, 4294901760
        %2183 = vmatpush.msra.mxu0 %v2182
        %v2184 = vand.u32 %v2102, 4294901760
        %2185 = vmatpush.msra.mxu0 %v2184
        %v2186 = vand.u32 %v2101, 4294901760
        %2187 = vmatpush.msra.mxu0 %v2186
        %v2188 = vand.u32 %v2100, 4294901760
        %2189 = vmatpush.msra.mxu0 %v2188
        %v2190 = vand.u32 %v2099, 4294901760
        %2191 = vmatpush.msra.mxu0 %v2190
        %v2192 = vand.u32 %v2098, 4294901760
        %2193 = vmatpush.msra.mxu0 %v2192
        %v2194 = vand.u32 %v1819, 4294901760
        %v2195 = vsub.f32 %v1819, %v2194
        %v2196 = vand.u32 %v2195, 4294901760
        %v2197 = vsub.f32 %v2195, %v2196
        %v2198 = vand.u32 %v2197, 4294901760
        %2199 = vmatmul.f32.gmra.mxu0 %v2198
        %v2200 = vpop.f32.mrf.mxu0
        %v2201 = vadd.f32 %v2125, %v2200
        %v2202 = vand.u32 %v1820, 4294901760
        %v2203 = vsub.f32 %v1820, %v2202
        %v2204 = vand.u32 %v2203, 4294901760
        %v2205 = vsub.f32 %v2203, %v2204
        %v2206 = vand.u32 %v2205, 4294901760
        %2207 = vmatmul.f32.gmra.mxu0 %v2206
        %v2208 = vpop.f32.mrf.mxu0
        %v2209 = vadd.f32 %v2130, %v2208
        %v2210 = vand.u32 %v1821, 4294901760
        %v2211 = vsub.f32 %v1821, %v2210
        %v2212 = vand.u32 %v2211, 4294901760
        %v2213 = vsub.f32 %v2211, %v2212
        %v2214 = vand.u32 %v2213, 4294901760
        %2215 = vmatmul.f32.gmra.mxu0 %v2214
        %v2216 = vpop.f32.mrf.mxu0
        %v2217 = vadd.f32 %v2135, %v2216
        %v2218 = vand.u32 %v1822, 4294901760
        %v2219 = vsub.f32 %v1822, %v2218
        %v2220 = vand.u32 %v2219, 4294901760
        %v2221 = vsub.f32 %v2219, %v2220
        %v2222 = vand.u32 %v2221, 4294901760
        %2223 = vmatmul.f32.gmra.mxu0 %v2222
        %v2224 = vpop.f32.mrf.mxu0
        %v2225 = vadd.f32 %v2140, %v2224
        %v2226 = vand.u32 %v1823, 4294901760
        %v2227 = vsub.f32 %v1823, %v2226
        %v2228 = vand.u32 %v2227, 4294901760
        %v2229 = vsub.f32 %v2227, %v2228
        %v2230 = vand.u32 %v2229, 4294901760
        %2231 = vmatmul.f32.gmra.mxu0 %v2230
        %v2232 = vpop.f32.mrf.mxu0
        %v2233 = vadd.f32 %v2145, %v2232
        %v2234 = vand.u32 %v1824, 4294901760
        %v2235 = vsub.f32 %v1824, %v2234
        %v2236 = vand.u32 %v2235, 4294901760
        %v2237 = vsub.f32 %v2235, %v2236
        %v2238 = vand.u32 %v2237, 4294901760
        %2239 = vmatmul.f32.gmra.mxu0 %v2238
        %v2240 = vpop.f32.mrf.mxu0
        %v2241 = vadd.f32 %v2150, %v2240
        %v2242 = vand.u32 %v1825, 4294901760
        %v2243 = vsub.f32 %v1825, %v2242
        %v2244 = vand.u32 %v2243, 4294901760
        %v2245 = vsub.f32 %v2243, %v2244
        %v2246 = vand.u32 %v2245, 4294901760
        %2247 = vmatmul.f32.gmra.mxu0 %v2246
        %v2248 = vpop.f32.mrf.mxu0
        %v2249 = vadd.f32 %v2155, %v2248
        %v2250 = vand.u32 %v1826, 4294901760
        %v2251 = vsub.f32 %v1826, %v2250
        %v2252 = vand.u32 %v2251, 4294901760
        %v2253 = vsub.f32 %v2251, %v2252
        %v2254 = vand.u32 %v2253, 4294901760
        %2255 = vmatmul.f32.gmra.mxu0 %v2254
        %v2256 = vpop.f32.mrf.mxu0
        %v2257 = vadd.f32 %v2160, %v2256
        %2258 = vdwg.mxu0
        %v2259 = vand.u32 %v2113, 4294901760
        %v2260 = vsub.f32 %v2113, %v2259
        %v2261 = vand.u32 %v2260, 4294901760
        %v2262 = vsub.f32 %v2260, %v2261
        %v2263 = vand.u32 %v2262, 4294901760
        %2264 = vmatpush.msra.mxu0 %v2263
        %v2265 = vand.u32 %v2112, 4294901760
        %v2266 = vsub.f32 %v2112, %v2265
        %v2267 = vand.u32 %v2266, 4294901760
        %v2268 = vsub.f32 %v2266, %v2267
        %v2269 = vand.u32 %v2268, 4294901760
        %2270 = vmatpush.msra.mxu0 %v2269
        %v2271 = vand.u32 %v2111, 4294901760
        %v2272 = vsub.f32 %v2111, %v2271
        %v2273 = vand.u32 %v2272, 4294901760
        %v2274 = vsub.f32 %v2272, %v2273
        %v2275 = vand.u32 %v2274, 4294901760
        %2276 = vmatpush.msra.mxu0 %v2275
        %v2277 = vand.u32 %v2110, 4294901760
        %v2278 = vsub.f32 %v2110, %v2277
        %v2279 = vand.u32 %v2278, 4294901760
        %v2280 = vsub.f32 %v2278, %v2279
        %v2281 = vand.u32 %v2280, 4294901760
        %2282 = vmatpush.msra.mxu0 %v2281
        %v2283 = vand.u32 %v2109, 4294901760
        %v2284 = vsub.f32 %v2109, %v2283
        %v2285 = vand.u32 %v2284, 4294901760
        %v2286 = vsub.f32 %v2284, %v2285
        %v2287 = vand.u32 %v2286, 4294901760
        %2288 = vmatpush.msra.mxu0 %v2287
        %v2289 = vand.u32 %v2108, 4294901760
        %v2290 = vsub.f32 %v2108, %v2289
        %v2291 = vand.u32 %v2290, 4294901760
        %v2292 = vsub.f32 %v2290, %v2291
        %v2293 = vand.u32 %v2292, 4294901760
        %2294 = vmatpush.msra.mxu0 %v2293
        %v2295 = vand.u32 %v2107, 4294901760
        %v2296 = vsub.f32 %v2107, %v2295
        %v2297 = vand.u32 %v2296, 4294901760
        %v2298 = vsub.f32 %v2296, %v2297
        %v2299 = vand.u32 %v2298, 4294901760
        %2300 = vmatpush.msra.mxu0 %v2299
        %v2301 = vand.u32 %v2106, 4294901760
        %v2302 = vsub.f32 %v2106, %v2301
        %v2303 = vand.u32 %v2302, 4294901760
        %v2304 = vsub.f32 %v2302, %v2303
        %v2305 = vand.u32 %v2304, 4294901760
        %2306 = vmatpush.msra.mxu0 %v2305
        %v2307 = vand.u32 %v2105, 4294901760
        %v2308 = vsub.f32 %v2105, %v2307
        %v2309 = vand.u32 %v2308, 4294901760
        %v2310 = vsub.f32 %v2308, %v2309
        %v2311 = vand.u32 %v2310, 4294901760
        %2312 = vmatpush.msra.mxu0 %v2311
        %v2313 = vand.u32 %v2104, 4294901760
        %v2314 = vsub.f32 %v2104, %v2313
        %v2315 = vand.u32 %v2314, 4294901760
        %v2316 = vsub.f32 %v2314, %v2315
        %v2317 = vand.u32 %v2316, 4294901760
        %2318 = vmatpush.msra.mxu0 %v2317
        %v2319 = vand.u32 %v2103, 4294901760
        %v2320 = vsub.f32 %v2103, %v2319
        %v2321 = vand.u32 %v2320, 4294901760
        %v2322 = vsub.f32 %v2320, %v2321
        %v2323 = vand.u32 %v2322, 4294901760
        %2324 = vmatpush.msra.mxu0 %v2323
        %v2325 = vand.u32 %v2102, 4294901760
        %v2326 = vsub.f32 %v2102, %v2325
        %v2327 = vand.u32 %v2326, 4294901760
        %v2328 = vsub.f32 %v2326, %v2327
        %v2329 = vand.u32 %v2328, 4294901760
        %2330 = vmatpush.msra.mxu0 %v2329
        %v2331 = vand.u32 %v2101, 4294901760
        %v2332 = vsub.f32 %v2101, %v2331
        %v2333 = vand.u32 %v2332, 4294901760
        %v2334 = vsub.f32 %v2332, %v2333
        %v2335 = vand.u32 %v2334, 4294901760
        %2336 = vmatpush.msra.mxu0 %v2335
        %v2337 = vand.u32 %v2100, 4294901760
        %v2338 = vsub.f32 %v2100, %v2337
        %v2339 = vand.u32 %v2338, 4294901760
        %v2340 = vsub.f32 %v2338, %v2339
        %v2341 = vand.u32 %v2340, 4294901760
        %2342 = vmatpush.msra.mxu0 %v2341
        %v2343 = vand.u32 %v2099, 4294901760
        %v2344 = vsub.f32 %v2099, %v2343
        %v2345 = vand.u32 %v2344, 4294901760
        %v2346 = vsub.f32 %v2344, %v2345
        %v2347 = vand.u32 %v2346, 4294901760
        %2348 = vmatpush.msra.mxu0 %v2347
        %v2349 = vand.u32 %v2098, 4294901760
        %v2350 = vsub.f32 %v2098, %v2349
        %v2351 = vand.u32 %v2350, 4294901760
        %v2352 = vsub.f32 %v2350, %v2351
        %v2353 = vand.u32 %v2352, 4294901760
        %2354 = vmatpush.msra.mxu0 %v2353
        %v2355 = vand.u32 %v1819, 4294901760
        %2356 = vmatmul.f32.gmra.mxu0 %v2355
        %v2357 = vpop.f32.mrf.mxu0
        %v2358 = vadd.f32 %v2201, %v2357
        %v2359 = vand.u32 %v1820, 4294901760
        %2360 = vmatmul.f32.gmra.mxu0 %v2359
        %v2361 = vpop.f32.mrf.mxu0
        %v2362 = vadd.f32 %v2209, %v2361
        %v2363 = vand.u32 %v1821, 4294901760
        %2364 = vmatmul.f32.gmra.mxu0 %v2363
        %v2365 = vpop.f32.mrf.mxu0
        %v2366 = vadd.f32 %v2217, %v2365
        %v2367 = vand.u32 %v1822, 4294901760
        %2368 = vmatmul.f32.gmra.mxu0 %v2367
        %v2369 = vpop.f32.mrf.mxu0
        %v2370 = vadd.f32 %v2225, %v2369
        %v2371 = vand.u32 %v1823, 4294901760
        %2372 = vmatmul.f32.gmra.mxu0 %v2371
        %v2373 = vpop.f32.mrf.mxu0
        %v2374 = vadd.f32 %v2233, %v2373
        %v2375 = vand.u32 %v1824, 4294901760
        %2376 = vmatmul.f32.gmra.mxu0 %v2375
        %v2377 = vpop.f32.mrf.mxu0
        %v2378 = vadd.f32 %v2241, %v2377
        %v2379 = vand.u32 %v1825, 4294901760
        %2380 = vmatmul.f32.gmra.mxu0 %v2379
        %v2381 = vpop.f32.mrf.mxu0
        %v2382 = vadd.f32 %v2249, %v2381
        %v2383 = vand.u32 %v1826, 4294901760
        %2384 = vmatmul.f32.gmra.mxu0 %v2383
        %v2385 = vpop.f32.mrf.mxu0
        %v2386 = vadd.f32 %v2257, %v2385
        %2387 = vdwg.mxu0
        %v2388 = vand.u32 %v2113, 4294901760
        %v2389 = vsub.f32 %v2113, %v2388
        %2390 = vmatpush.msra.mxu0 %v2389
        %v2391 = vand.u32 %v2112, 4294901760
        %v2392 = vsub.f32 %v2112, %v2391
        %2393 = vmatpush.msra.mxu0 %v2392
        %v2394 = vand.u32 %v2111, 4294901760
        %v2395 = vsub.f32 %v2111, %v2394
        %2396 = vmatpush.msra.mxu0 %v2395
        %v2397 = vand.u32 %v2110, 4294901760
        %v2398 = vsub.f32 %v2110, %v2397
        %2399 = vmatpush.msra.mxu0 %v2398
        %v2400 = vand.u32 %v2109, 4294901760
        %v2401 = vsub.f32 %v2109, %v2400
        %2402 = vmatpush.msra.mxu0 %v2401
        %v2403 = vand.u32 %v2108, 4294901760
        %v2404 = vsub.f32 %v2108, %v2403
        %2405 = vmatpush.msra.mxu0 %v2404
        %v2406 = vand.u32 %v2107, 4294901760
        %v2407 = vsub.f32 %v2107, %v2406
        %2408 = vmatpush.msra.mxu0 %v2407
        %v2409 = vand.u32 %v2106, 4294901760
        %v2410 = vsub.f32 %v2106, %v2409
        %2411 = vmatpush.msra.mxu0 %v2410
        %v2412 = vand.u32 %v2105, 4294901760
        %v2413 = vsub.f32 %v2105, %v2412
        %2414 = vmatpush.msra.mxu0 %v2413
        %v2415 = vand.u32 %v2104, 4294901760
        %v2416 = vsub.f32 %v2104, %v2415
        %2417 = vmatpush.msra.mxu0 %v2416
        %v2418 = vand.u32 %v2103, 4294901760
        %v2419 = vsub.f32 %v2103, %v2418
        %2420 = vmatpush.msra.mxu0 %v2419
        %v2421 = vand.u32 %v2102, 4294901760
        %v2422 = vsub.f32 %v2102, %v2421
        %2423 = vmatpush.msra.mxu0 %v2422
        %v2424 = vand.u32 %v2101, 4294901760
        %v2425 = vsub.f32 %v2101, %v2424
        %2426 = vmatpush.msra.mxu0 %v2425
        %v2427 = vand.u32 %v2100, 4294901760
        %v2428 = vsub.f32 %v2100, %v2427
        %2429 = vmatpush.msra.mxu0 %v2428
        %v2430 = vand.u32 %v2099, 4294901760
        %v2431 = vsub.f32 %v2099, %v2430
        %2432 = vmatpush.msra.mxu0 %v2431
        %v2433 = vand.u32 %v2098, 4294901760
        %v2434 = vsub.f32 %v2098, %v2433
        %2435 = vmatpush.msra.mxu0 %v2434
        %v2436 = vand.u32 %v1819, 4294901760
        %v2437 = vsub.f32 %v1819, %v2436
        %2438 = vmatmul.f32.gmra.mxu0 %v2437
        %v2439 = vpop.f32.mrf.mxu0
        %v2440 = vadd.f32 %v2358, %v2439
        %v2441 = vand.u32 %v1820, 4294901760
        %v2442 = vsub.f32 %v1820, %v2441
        %2443 = vmatmul.f32.gmra.mxu0 %v2442
        %v2444 = vpop.f32.mrf.mxu0
        %v2445 = vadd.f32 %v2362, %v2444
        %v2446 = vand.u32 %v1821, 4294901760
        %v2447 = vsub.f32 %v1821, %v2446
        %2448 = vmatmul.f32.gmra.mxu0 %v2447
        %v2449 = vpop.f32.mrf.mxu0
        %v2450 = vadd.f32 %v2366, %v2449
        %v2451 = vand.u32 %v1822, 4294901760
        %v2452 = vsub.f32 %v1822, %v2451
        %2453 = vmatmul.f32.gmra.mxu0 %v2452
        %v2454 = vpop.f32.mrf.mxu0
        %v2455 = vadd.f32 %v2370, %v2454
        %v2456 = vand.u32 %v1823, 4294901760
        %v2457 = vsub.f32 %v1823, %v2456
        %2458 = vmatmul.f32.gmra.mxu0 %v2457
        %v2459 = vpop.f32.mrf.mxu0
        %v2460 = vadd.f32 %v2374, %v2459
        %v2461 = vand.u32 %v1824, 4294901760
        %v2462 = vsub.f32 %v1824, %v2461
        %2463 = vmatmul.f32.gmra.mxu0 %v2462
        %v2464 = vpop.f32.mrf.mxu0
        %v2465 = vadd.f32 %v2378, %v2464
        %v2466 = vand.u32 %v1825, 4294901760
        %v2467 = vsub.f32 %v1825, %v2466
        %2468 = vmatmul.f32.gmra.mxu0 %v2467
        %v2469 = vpop.f32.mrf.mxu0
        %v2470 = vadd.f32 %v2382, %v2469
        %v2471 = vand.u32 %v1826, 4294901760
        %v2472 = vsub.f32 %v1826, %v2471
        %2473 = vmatmul.f32.gmra.mxu0 %v2472
        %v2474 = vpop.f32.mrf.mxu0
        %v2475 = vadd.f32 %v2386, %v2474
        %2476 = vdwg.mxu0
        %v2477 = vand.u32 %v2113, 4294901760
        %2478 = vmatpush.msra.mxu0 %v2477
        %v2479 = vand.u32 %v2112, 4294901760
        %2480 = vmatpush.msra.mxu0 %v2479
        %v2481 = vand.u32 %v2111, 4294901760
        %2482 = vmatpush.msra.mxu0 %v2481
        %v2483 = vand.u32 %v2110, 4294901760
        %2484 = vmatpush.msra.mxu0 %v2483
        %v2485 = vand.u32 %v2109, 4294901760
        %2486 = vmatpush.msra.mxu0 %v2485
        %v2487 = vand.u32 %v2108, 4294901760
        %2488 = vmatpush.msra.mxu0 %v2487
        %v2489 = vand.u32 %v2107, 4294901760
        %2490 = vmatpush.msra.mxu0 %v2489
        %v2491 = vand.u32 %v2106, 4294901760
        %2492 = vmatpush.msra.mxu0 %v2491
        %v2493 = vand.u32 %v2105, 4294901760
        %2494 = vmatpush.msra.mxu0 %v2493
        %v2495 = vand.u32 %v2104, 4294901760
        %2496 = vmatpush.msra.mxu0 %v2495
        %v2497 = vand.u32 %v2103, 4294901760
        %2498 = vmatpush.msra.mxu0 %v2497
        %v2499 = vand.u32 %v2102, 4294901760
        %2500 = vmatpush.msra.mxu0 %v2499
        %v2501 = vand.u32 %v2101, 4294901760
        %2502 = vmatpush.msra.mxu0 %v2501
        %v2503 = vand.u32 %v2100, 4294901760
        %2504 = vmatpush.msra.mxu0 %v2503
        %v2505 = vand.u32 %v2099, 4294901760
        %2506 = vmatpush.msra.mxu0 %v2505
        %v2507 = vand.u32 %v2098, 4294901760
        %2508 = vmatpush.msra.mxu0 %v2507
        %v2509 = vand.u32 %v1819, 4294901760
        %v2510 = vsub.f32 %v1819, %v2509
        %v2511 = vand.u32 %v2510, 4294901760
        %2512 = vmatmul.f32.gmra.mxu0 %v2511
        %v2513 = vpop.f32.mrf.mxu0
        %v2514 = vadd.f32 %v2440, %v2513
        %v2515 = vand.u32 %v1820, 4294901760
        %v2516 = vsub.f32 %v1820, %v2515
        %v2517 = vand.u32 %v2516, 4294901760
        %2518 = vmatmul.f32.gmra.mxu0 %v2517
        %v2519 = vpop.f32.mrf.mxu0
        %v2520 = vadd.f32 %v2445, %v2519
        %v2521 = vand.u32 %v1821, 4294901760
        %v2522 = vsub.f32 %v1821, %v2521
        %v2523 = vand.u32 %v2522, 4294901760
        %2524 = vmatmul.f32.gmra.mxu0 %v2523
        %v2525 = vpop.f32.mrf.mxu0
        %v2526 = vadd.f32 %v2450, %v2525
        %v2527 = vand.u32 %v1822, 4294901760
        %v2528 = vsub.f32 %v1822, %v2527
        %v2529 = vand.u32 %v2528, 4294901760
        %2530 = vmatmul.f32.gmra.mxu0 %v2529
        %v2531 = vpop.f32.mrf.mxu0
        %v2532 = vadd.f32 %v2455, %v2531
        %v2533 = vand.u32 %v1823, 4294901760
        %v2534 = vsub.f32 %v1823, %v2533
        %v2535 = vand.u32 %v2534, 4294901760
        %2536 = vmatmul.f32.gmra.mxu0 %v2535
        %v2537 = vpop.f32.mrf.mxu0
        %v2538 = vadd.f32 %v2460, %v2537
        %v2539 = vand.u32 %v1824, 4294901760
        %v2540 = vsub.f32 %v1824, %v2539
        %v2541 = vand.u32 %v2540, 4294901760
        %2542 = vmatmul.f32.gmra.mxu0 %v2541
        %v2543 = vpop.f32.mrf.mxu0
        %v2544 = vadd.f32 %v2465, %v2543
        %v2545 = vand.u32 %v1825, 4294901760
        %v2546 = vsub.f32 %v1825, %v2545
        %v2547 = vand.u32 %v2546, 4294901760
        %2548 = vmatmul.f32.gmra.mxu0 %v2547
        %v2549 = vpop.f32.mrf.mxu0
        %v2550 = vadd.f32 %v2470, %v2549
        %v2551 = vand.u32 %v1826, 4294901760
        %v2552 = vsub.f32 %v1826, %v2551
        %v2553 = vand.u32 %v2552, 4294901760
        %2554 = vmatmul.f32.gmra.mxu0 %v2553
        %v2555 = vpop.f32.mrf.mxu0
        %v2556 = vadd.f32 %v2475, %v2555
        %2557 = vdwg.mxu0
        %v2558 = vand.u32 %v2113, 4294901760
        %v2559 = vsub.f32 %v2113, %v2558
        %v2560 = vand.u32 %v2559, 4294901760
        %2561 = vmatpush.msra.mxu0 %v2560
        %v2562 = vand.u32 %v2112, 4294901760
        %v2563 = vsub.f32 %v2112, %v2562
        %v2564 = vand.u32 %v2563, 4294901760
        %2565 = vmatpush.msra.mxu0 %v2564
        %v2566 = vand.u32 %v2111, 4294901760
        %v2567 = vsub.f32 %v2111, %v2566
        %v2568 = vand.u32 %v2567, 4294901760
        %2569 = vmatpush.msra.mxu0 %v2568
        %v2570 = vand.u32 %v2110, 4294901760
        %v2571 = vsub.f32 %v2110, %v2570
        %v2572 = vand.u32 %v2571, 4294901760
        %2573 = vmatpush.msra.mxu0 %v2572
        %v2574 = vand.u32 %v2109, 4294901760
        %v2575 = vsub.f32 %v2109, %v2574
        %v2576 = vand.u32 %v2575, 4294901760
        %2577 = vmatpush.msra.mxu0 %v2576
        %v2578 = vand.u32 %v2108, 4294901760
        %v2579 = vsub.f32 %v2108, %v2578
        %v2580 = vand.u32 %v2579, 4294901760
        %2581 = vmatpush.msra.mxu0 %v2580
        %v2582 = vand.u32 %v2107, 4294901760
        %v2583 = vsub.f32 %v2107, %v2582
        %v2584 = vand.u32 %v2583, 4294901760
        %2585 = vmatpush.msra.mxu0 %v2584
        %v2586 = vand.u32 %v2106, 4294901760
        %v2587 = vsub.f32 %v2106, %v2586
        %v2588 = vand.u32 %v2587, 4294901760
        %2589 = vmatpush.msra.mxu0 %v2588
        %v2590 = vand.u32 %v2105, 4294901760
        %v2591 = vsub.f32 %v2105, %v2590
        %v2592 = vand.u32 %v2591, 4294901760
        %2593 = vmatpush.msra.mxu0 %v2592
        %v2594 = vand.u32 %v2104, 4294901760
        %v2595 = vsub.f32 %v2104, %v2594
        %v2596 = vand.u32 %v2595, 4294901760
        %2597 = vmatpush.msra.mxu0 %v2596
        %v2598 = vand.u32 %v2103, 4294901760
        %v2599 = vsub.f32 %v2103, %v2598
        %v2600 = vand.u32 %v2599, 4294901760
        %2601 = vmatpush.msra.mxu0 %v2600
        %v2602 = vand.u32 %v2102, 4294901760
        %v2603 = vsub.f32 %v2102, %v2602
        %v2604 = vand.u32 %v2603, 4294901760
        %2605 = vmatpush.msra.mxu0 %v2604
        %v2606 = vand.u32 %v2101, 4294901760
        %v2607 = vsub.f32 %v2101, %v2606
        %v2608 = vand.u32 %v2607, 4294901760
        %2609 = vmatpush.msra.mxu0 %v2608
        %v2610 = vand.u32 %v2100, 4294901760
        %v2611 = vsub.f32 %v2100, %v2610
        %v2612 = vand.u32 %v2611, 4294901760
        %2613 = vmatpush.msra.mxu0 %v2612
        %v2614 = vand.u32 %v2099, 4294901760
        %v2615 = vsub.f32 %v2099, %v2614
        %v2616 = vand.u32 %v2615, 4294901760
        %2617 = vmatpush.msra.mxu0 %v2616
        %v2618 = vand.u32 %v2098, 4294901760
        %v2619 = vsub.f32 %v2098, %v2618
        %v2620 = vand.u32 %v2619, 4294901760
        %2621 = vmatpush.msra.mxu0 %v2620
        %v2622 = vand.u32 %v1819, 4294901760
        %2623 = vmatmul.f32.gmra.mxu0 %v2622
        %v2624 = vpop.f32.mrf.mxu0
        %v2625 = vadd.f32 %v2514, %v2624
        %v2626 = vand.u32 %v1820, 4294901760
        %2627 = vmatmul.f32.gmra.mxu0 %v2626
        %v2628 = vpop.f32.mrf.mxu0
        %v2629 = vadd.f32 %v2520, %v2628
        %v2630 = vand.u32 %v1821, 4294901760
        %2631 = vmatmul.f32.gmra.mxu0 %v2630
        %v2632 = vpop.f32.mrf.mxu0
        %v2633 = vadd.f32 %v2526, %v2632
        %v2634 = vand.u32 %v1822, 4294901760
        %2635 = vmatmul.f32.gmra.mxu0 %v2634
        %v2636 = vpop.f32.mrf.mxu0
        %v2637 = vadd.f32 %v2532, %v2636
        %v2638 = vand.u32 %v1823, 4294901760
        %2639 = vmatmul.f32.gmra.mxu0 %v2638
        %v2640 = vpop.f32.mrf.mxu0
        %v2641 = vadd.f32 %v2538, %v2640
        %v2642 = vand.u32 %v1824, 4294901760
        %2643 = vmatmul.f32.gmra.mxu0 %v2642
        %v2644 = vpop.f32.mrf.mxu0
        %v2645 = vadd.f32 %v2544, %v2644
        %v2646 = vand.u32 %v1825, 4294901760
        %2647 = vmatmul.f32.gmra.mxu0 %v2646
        %v2648 = vpop.f32.mrf.mxu0
        %v2649 = vadd.f32 %v2550, %v2648
        %v2650 = vand.u32 %v1826, 4294901760
        %2651 = vmatmul.f32.gmra.mxu0 %v2650
        %v2652 = vpop.f32.mrf.mxu0
        %v2653 = vadd.f32 %v2556, %v2652
        %2654 = vdwg.mxu0
        %v2655 = vand.u32 %v2113, 4294901760
        %2656 = vmatpush.msra.mxu0 %v2655
        %v2657 = vand.u32 %v2112, 4294901760
        %2658 = vmatpush.msra.mxu0 %v2657
        %v2659 = vand.u32 %v2111, 4294901760
        %2660 = vmatpush.msra.mxu0 %v2659
        %v2661 = vand.u32 %v2110, 4294901760
        %2662 = vmatpush.msra.mxu0 %v2661
        %v2663 = vand.u32 %v2109, 4294901760
        %2664 = vmatpush.msra.mxu0 %v2663
        %v2665 = vand.u32 %v2108, 4294901760
        %2666 = vmatpush.msra.mxu0 %v2665
        %v2667 = vand.u32 %v2107, 4294901760
        %2668 = vmatpush.msra.mxu0 %v2667
        %v2669 = vand.u32 %v2106, 4294901760
        %2670 = vmatpush.msra.mxu0 %v2669
        %v2671 = vand.u32 %v2105, 4294901760
        %2672 = vmatpush.msra.mxu0 %v2671
        %v2673 = vand.u32 %v2104, 4294901760
        %2674 = vmatpush.msra.mxu0 %v2673
        %v2675 = vand.u32 %v2103, 4294901760
        %2676 = vmatpush.msra.mxu0 %v2675
        %v2677 = vand.u32 %v2102, 4294901760
        %2678 = vmatpush.msra.mxu0 %v2677
        %v2679 = vand.u32 %v2101, 4294901760
        %2680 = vmatpush.msra.mxu0 %v2679
        %v2681 = vand.u32 %v2100, 4294901760
        %2682 = vmatpush.msra.mxu0 %v2681
        %v2683 = vand.u32 %v2099, 4294901760
        %2684 = vmatpush.msra.mxu0 %v2683
        %v2685 = vand.u32 %v2098, 4294901760
        %2686 = vmatpush.msra.mxu0 %v2685
        %v2687 = vand.u32 %v1819, 4294901760
        %2688 = vmatmul.f32.gmra.mxu0 %v2687
        %v2689 = vpop.f32.mrf.mxu0
        %v2690 = vadd.f32 %v2625, %v2689
        %v2691 = vand.u32 %v1820, 4294901760
        %2692 = vmatmul.f32.gmra.mxu0 %v2691
        %v2693 = vpop.f32.mrf.mxu0
        %v2694 = vadd.f32 %v2629, %v2693
        %v2695 = vand.u32 %v1821, 4294901760
        %2696 = vmatmul.f32.gmra.mxu0 %v2695
        %v2697 = vpop.f32.mrf.mxu0
        %v2698 = vadd.f32 %v2633, %v2697
        %v2699 = vand.u32 %v1822, 4294901760
        %2700 = vmatmul.f32.gmra.mxu0 %v2699
        %v2701 = vpop.f32.mrf.mxu0
        %v2702 = vadd.f32 %v2637, %v2701
        %v2703 = vand.u32 %v1823, 4294901760
        %2704 = vmatmul.f32.gmra.mxu0 %v2703
        %v2705 = vpop.f32.mrf.mxu0
        %v2706 = vadd.f32 %v2641, %v2705
        %v2707 = vand.u32 %v1824, 4294901760
        %2708 = vmatmul.f32.gmra.mxu0 %v2707
        %v2709 = vpop.f32.mrf.mxu0
        %v2710 = vadd.f32 %v2645, %v2709
        %v2711 = vand.u32 %v1825, 4294901760
        %2712 = vmatmul.f32.gmra.mxu0 %v2711
        %v2713 = vpop.f32.mrf.mxu0
        %v2714 = vadd.f32 %v2649, %v2713
        %v2715 = vand.u32 %v1826, 4294901760
        %2716 = vmatmul.f32.gmra.mxu0 %v2715
        %v2717 = vpop.f32.mrf.mxu0
        %v2718 = vadd.f32 %v2653, %v2717
        %2719 = vdwg.mxu0
        %v2720 = vld [vmem:[#allocation3] sm:$0xff]
        %v2721 = vld [vmem:[#allocation3 + $0x8] sm:$0xff]
        %v2722 = vld [vmem:[#allocation3 + $0x10] sm:$0xff]
        %v2723 = vld [vmem:[#allocation3 + $0x18] sm:$0xff]
        %v2724 = vld [vmem:[#allocation3 + $0x20] sm:$0xff]
        %v2725 = vld [vmem:[#allocation3 + $0x28] sm:$0xff]
        %v2726 = vld [vmem:[#allocation3 + $0x30] sm:$0xff]
        %v2727 = vld [vmem:[#allocation3 + $0x38] sm:$0xff]
        %2729 = vset.pattern.permute.xlu0 0
        %2730 = vperm.xlu0 %2729, %v2720
        %v2731 = vpop.permute.xlu0 %2730
        %2734 = vset.pattern.permute.xlu0 0
        %2735 = vperm.xlu0 %2734, %v2721
        %v2736 = vpop.permute.xlu0 %2735
        %2739 = vset.pattern.permute.xlu0 0
        %2740 = vperm.xlu0 %2739, %v2722
        %v2741 = vpop.permute.xlu0 %2740
        %2744 = vset.pattern.permute.xlu0 0
        %2745 = vperm.xlu0 %2744, %v2723
        %v2746 = vpop.permute.xlu0 %2745
        %2749 = vset.pattern.permute.xlu0 0
        %2750 = vperm.xlu0 %2749, %v2724
        %v2751 = vpop.permute.xlu0 %2750
        %2754 = vset.pattern.permute.xlu0 0
        %2755 = vperm.xlu0 %2754, %v2725
        %v2756 = vpop.permute.xlu0 %2755
        %2759 = vset.pattern.permute.xlu0 0
        %2760 = vperm.xlu0 %2759, %v2726
        %v2761 = vpop.permute.xlu0 %2760
        %2764 = vset.pattern.permute.xlu0 0
        %2765 = vperm.xlu0 %2764, %v2727
        %v2766 = vpop.permute.xlu0 %2765
        %v2768 = vadd.f32 %v2690, %v2731
        %v2769 = vadd.f32 %v2694, %v2736
        %v2770 = vadd.f32 %v2698, %v2741
        %v2771 = vadd.f32 %v2702, %v2746
        %v2772 = vadd.f32 %v2706, %v2751
        %v2773 = vadd.f32 %v2710, %v2756
        %v2774 = vadd.f32 %v2714, %v2761
        %v2775 = vadd.f32 %v2718, %v2766
        %2784 = vrot.lane.b32.xlu0 %v2768, 1
        %v2785 = vpop.permute.xlu0 %2784
        %2786 = vrot.lane.b32.xlu0 %v2769, 1
        %v2787 = vpop.permute.xlu0 %2786
        %2788 = vrot.lane.b32.xlu0 %v2770, 1
        %v2789 = vpop.permute.xlu0 %2788
        %2790 = vrot.lane.b32.xlu0 %v2771, 1
        %v2791 = vpop.permute.xlu0 %2790
        %2792 = vrot.lane.b32.xlu0 %v2772, 1
        %v2793 = vpop.permute.xlu0 %2792
        %2794 = vrot.lane.b32.xlu0 %v2773, 1
        %v2795 = vpop.permute.xlu0 %2794
        %2796 = vrot.lane.b32.xlu0 %v2774, 1
        %v2797 = vpop.permute.xlu0 %2796
        %2798 = vrot.lane.b32.xlu0 %v2775, 1
        %v2799 = vpop.permute.xlu0 %2798
        %vm2808 = vcmask 7168
        %2809 = vst.msk [vmem:[#allocation2] sm:$0xff] %vm2808, %v2785
        %2810 = vst.msk [vmem:[#allocation2 + $0x8] sm:$0xff] %vm2808, %v2787
        %2811 = vst.msk [vmem:[#allocation2 + $0x10] sm:$0xff] %vm2808, %v2789
        %2812 = vst.msk [vmem:[#allocation2 + $0x18] sm:$0xff] %vm2808, %v2791
        %2813 = vst.msk [vmem:[#allocation2 + $0x20] sm:$0xff] %vm2808, %v2793
        %2814 = vst.msk [vmem:[#allocation2 + $0x28] sm:$0xff] %vm2808, %v2795
        %2815 = vst.msk [vmem:[#allocation2 + $0x30] sm:$0xff] %vm2808, %v2797
        %2816 = vst.msk [vmem:[#allocation2 + $0x38] sm:$0xff] %vm2808, %v2799
        %2825 = vrot.lane.b32.xlu0 %v1819, 1
        %v2826 = vpop.permute.xlu0 %2825
        %2827 = vrot.lane.b32.xlu0 %v1820, 1
        %v2828 = vpop.permute.xlu0 %2827
        %2829 = vrot.lane.b32.xlu0 %v1821, 1
        %v2830 = vpop.permute.xlu0 %2829
        %2831 = vrot.lane.b32.xlu0 %v1822, 1
        %v2832 = vpop.permute.xlu0 %2831
        %2833 = vrot.lane.b32.xlu0 %v1823, 1
        %v2834 = vpop.permute.xlu0 %2833
        %2835 = vrot.lane.b32.xlu0 %v1824, 1
        %v2836 = vpop.permute.xlu0 %2835
        %2837 = vrot.lane.b32.xlu0 %v1825, 1
        %v2838 = vpop.permute.xlu0 %2837
        %2839 = vrot.lane.b32.xlu0 %v1826, 1
        %v2840 = vpop.permute.xlu0 %2839
        %2849 = vst.msk [vmem:[#allocation3] sm:$0xff] %vm2808, %v2826
        %2850 = vst.msk [vmem:[#allocation3 + $0x8] sm:$0xff] %vm2808, %v2828
        %2851 = vst.msk [vmem:[#allocation3 + $0x10] sm:$0xff] %vm2808, %v2830
        %2852 = vst.msk [vmem:[#allocation3 + $0x18] sm:$0xff] %vm2808, %v2832
        %2853 = vst.msk [vmem:[#allocation3 + $0x20] sm:$0xff] %vm2808, %v2834
        %2854 = vst.msk [vmem:[#allocation3 + $0x28] sm:$0xff] %vm2808, %v2836
        %2855 = vst.msk [vmem:[#allocation3 + $0x30] sm:$0xff] %vm2808, %v2838
        %2856 = vst.msk [vmem:[#allocation3 + $0x38] sm:$0xff] %vm2808, %v2840
        %v2857 = vand.u32 2147483647, %v2768
        %vm2858 = vcmp.le.f32.partialorder %v2857, 0.7853982
        %vm2859 = vcmp.lt.s32.totalorder %v2768, 0
        %v2860 = vand.u32 %v2768, 2139095040
        %v2861 = vshrl.u32 %v2860, 23
        %v2862 = vsub.s32 %v2861, 127
        %v2863 = vand.u32 2147483647, %v2768
        %v2864 = vand.u32 %v2863, 8388607
        %v2865 = vor.u32 %v2864, 8388608
        %v2866 = vsub.s32 0, %v2865
        %v2867 = vadd.s32 %v2862, 1
        %vm2868 = vcmp.gt.s32.totalorder %v2867, 0
        %v2869 = vsel %vm2868, %v2867, 0
        %v2870 = vshrl.u32 %v2869, 5
        %v2871 = vand.u32 %v2869, 31
        %v2872 = vsub.s32 32, %v2871
        %v2873 = vshrl.u32 683565275, %v2872
        %v2874 = vshll.u32 683565275, %v2871
        %v2875 = vshrl.u32 2475754826, %v2872
        %v2876 = vor.u32 %v2874, %v2875
        %v2877 = vshll.u32 2475754826, %v2871
        %v2878 = vshrl.u32 2131351028, %v2872
        %v2879 = vor.u32 %v2877, %v2878
        %v2880 = vshll.u32 2131351028, %v2871
        %v2881 = vshrl.u32 2102212464, %v2872
        %v2882 = vor.u32 %v2880, %v2881
        %v2883 = vshll.u32 2102212464, %v2871
        %v2884 = vshrl.u32 920167782, %v2872
        %v2885 = vor.u32 %v2883, %v2884
        %v2886 = vshll.u32 920167782, %v2871
        %v2887 = vshrl.u32 1326507024, %v2872
        %v2888 = vor.u32 %v2886, %v2887
        %vm2889 = vcmp.lt.s32.totalorder %v2870, 1
        %vm2890 = vcmp.lt.s32.totalorder %v2870, 2
        %vm2891 = vcmp.lt.s32.totalorder %v2870, 3
        %vm2892 = vcmp.lt.s32.totalorder %v2870, 4
        %v2893 = vsel %vm2889, %v2873, %v2876
        %v2894 = vsel %vm2892, %v2882, 2102212464
        %v2895 = vsel %vm2891, %v2879, %v2894
        %v2896 = vsel %vm2890, %v2893, %v2895
        %v2897 = vsel %vm2889, %v2876, %v2879
        %v2898 = vsel %vm2892, %v2885, 920167782
        %v2899 = vsel %vm2891, %v2882, %v2898
        %v2900 = vsel %vm2890, %v2897, %v2899
        %v2901 = vsel %vm2889, %v2879, %v2882
        %v2902 = vsel %vm2892, %v2888, 1326507024
        %v2903 = vsel %vm2891, %v2885, %v2902
        %v2904 = vsel %vm2890, %v2901, %v2903
        %v2905 = vshll.u32 %v2865, 8
        %v2906 = vand.u32 %v2905, 65535
        %v2907 = vshrl.u32 %v2905, 16
        %v2908 = vand.u32 %v2904, 65535
        %v2909 = vshrl.u32 %v2904, 16
        %v2910 = vmul.u32 %v2906, %v2908
        %v2911 = vmul.u32 %v2906, %v2909
        %v2912 = vmul.u32 %v2907, %v2908
        %v2913 = vmul.u32 %v2907, %v2909
        %v2914 = vshll.u32 %v2911, 16
        %v2915 = vshrl.u32 %v2911, 16
        %v2916 = vshll.u32 %v2912, 16
        %v2917 = vshrl.u32 %v2912, 16
        %vm2918 = vc.u32 %v2910, %v2914
        %v2919 = vsel %vm2918, 1, 0
        %v2920 = vadd.s32 %v2910, %v2914
        %v2921 = vadd.s32 %v2913, %v2919
        %vm2922 = vc.u32 %v2920, %v2916
        %v2923 = vsel %vm2922, 1, 0
        %v2924 = vadd.s32 %v2920, %v2916
        %v2925 = vadd.s32 %v2921, %v2923
        %v2926 = vadd.s32 %v2925, %v2915
        %v2927 = vadd.s32 %v2926, %v2917
        %v2928 = vand.u32 %v2905, 65535
        %v2929 = vshrl.u32 %v2905, 16
        %v2930 = vand.u32 %v2900, 65535
        %v2931 = vshrl.u32 %v2900, 16
        %v2932 = vmul.u32 %v2928, %v2930
        %v2933 = vmul.u32 %v2928, %v2931
        %v2934 = vmul.u32 %v2929, %v2930
        %v2935 = vmul.u32 %v2929, %v2931
        %v2936 = vshll.u32 %v2933, 16
        %v2937 = vshrl.u32 %v2933, 16
        %v2938 = vshll.u32 %v2934, 16
        %v2939 = vshrl.u32 %v2934, 16
        %vm2940 = vc.u32 %v2932, %v2936
        %v2941 = vsel %vm2940, 1, 0
        %v2942 = vadd.s32 %v2932, %v2936
        %v2943 = vadd.s32 %v2935, %v2941
        %vm2944 = vc.u32 %v2942, %v2938
        %v2945 = vsel %vm2944, 1, 0
        %v2946 = vadd.s32 %v2942, %v2938
        %v2947 = vadd.s32 %v2943, %v2945
        %v2948 = vadd.s32 %v2947, %v2937
        %v2949 = vadd.s32 %v2948, %v2939
        %v2950 = vmul.u32 %v2905, %v2896
        %v2951 = vadd.s32 %v2927, %v2946
        %vm2952 = vc.u32 %v2927, %v2946
        %v2953 = vadd.s32 %v2949, 1
        %v2954 = vsel %vm2952, %v2953, %v2949
        %v2955 = vadd.s32 %v2950, %v2954
        %v2956 = vadd.s32 %v2955, 536870912
        %v2957 = vshrl.u32 %v2956, 30
        %v2958 = vshll.u32 %v2957, 30
        %v2959 = vsub.s32 %v2955, %v2958
        %vm2960 = vcmp.lt.s32.totalorder %v2959, 0
        %v2961 = vsub.s32 0, %v2959
        %v2962 = vsel %vm2960, %v2961, %v2959
        %v2963 = vclz %v2962
        %v2964 = vsub.s32 %v2963, 2
        %vm2965 = vcmp.gt.s32.totalorder 0, %v2964
        %v2966 = vsel %vm2965, 0, %v2964
        %v2967 = vsub.s32 32, %v2966
        %v2968 = vshll.u32 %v2959, %v2966
        %v2969 = vshrl.u32 %v2951, %v2967
        %v2970 = vor.u32 %v2968, %v2969
        %v2971 = vsub.s32 4294967266, %v2966
        %v2972 = vadd.s32 %v2971, 127
        %v2973 = vshll.u32 %v2972, 23
        %v2974 = vor.u32 4788187, %v2973
        %v2975 = vand.u32 2147483647, %v2974
        %v2977 = vcvt.s32.f32 %v2970
        %v2978 = vmul.f32 %v2977, %v2975
        %v2979 = vxor.u32 %v2978, 2147483648
        %v2980 = vsel %vm2859, %v2979, %v2978
        %v2981 = vsub.s32 4, %v2957
        %v2982 = vsel %vm2859, %v2981, %v2957
        %v2983 = vsel %vm2858, %v2768, %v2980
        %v2984 = vsel %vm2858, 0, %v2982
        %v2985 = vmul.f32 %v2983, %v2983
        %v2986 = vmul.f32 %v2985, -0.001358992
        %v2987 = vadd.f32 %v2986, 0.041655596
        %v2988 = vmul.f32 %v2985, %v2987
        %v2989 = vadd.f32 %v2988, -0.4999988
        %v2990 = vmul.f32 %v2985, %v2989
        %v2991 = vadd.f32 1.0, %v2990
        %v2992 = vmul.f32 %v2983, %v2983
        %v2993 = vmul.f32 %v2992, -0.00019511016
        %v2994 = vadd.f32 %v2993, 0.008332121
        %v2995 = vmul.f32 %v2992, %v2994
        %v2996 = vadd.f32 %v2995, -0.16666654
        %v2997 = vmul.f32 %v2992, %v2996
        %v2998 = vadd.f32 %v2997, 1.0
        %v2999 = vmul.f32 %v2998, %v2983
        %vm3000 = vweird.f32 %v2768
        %v3001 = vand.u32 %v2984, 3
        %vm3002 = vcmp.lt.s32.totalorder %v3001, 2
        %vm3003 = vcmp.eq.s32.totalorder %v3001, 0
        %v3004 = vxor.u32 %v2999, 2147483648
        %v3005 = vsel %vm3003, %v2991, %v3004
        %vm3006 = vcmp.eq.s32.totalorder %v3001, 2
        %v3007 = vxor.u32 %v2991, 2147483648
        %v3008 = vsel %vm3006, %v3007, %v2999
        %v3009 = vsel %vm3002, %v3005, %v3008
        %v3010 = vsel %vm3000, nan, %v3009
        %v3011 = vand.u32 2147483647, %v2769
        %vm3012 = vcmp.le.f32.partialorder %v3011, 0.7853982
        %vm3013 = vcmp.lt.s32.totalorder %v2769, 0
        %v3014 = vand.u32 %v2769, 2139095040
        %v3015 = vshrl.u32 %v3014, 23
        %v3016 = vsub.s32 %v3015, 127
        %v3017 = vand.u32 2147483647, %v2769
        %v3018 = vand.u32 %v3017, 8388607
        %v3019 = vor.u32 %v3018, 8388608
        %v3020 = vsub.s32 0, %v3019
        %v3021 = vadd.s32 %v3016, 1
        %vm3022 = vcmp.gt.s32.totalorder %v3021, 0
        %v3023 = vsel %vm3022, %v3021, 0
        %v3024 = vshrl.u32 %v3023, 5
        %v3025 = vand.u32 %v3023, 31
        %v3026 = vsub.s32 32, %v3025
        %v3027 = vshrl.u32 683565275, %v3026
        %v3028 = vshll.u32 683565275, %v3025
        %v3029 = vshrl.u32 2475754826, %v3026
        %v3030 = vor.u32 %v3028, %v3029
        %v3031 = vshll.u32 2475754826, %v3025
        %v3032 = vshrl.u32 2131351028, %v3026
        %v3033 = vor.u32 %v3031, %v3032
        %v3034 = vshll.u32 2131351028, %v3025
        %v3035 = vshrl.u32 2102212464, %v3026
        %v3036 = vor.u32 %v3034, %v3035
        %v3037 = vshll.u32 2102212464, %v3025
        %v3038 = vshrl.u32 920167782, %v3026
        %v3039 = vor.u32 %v3037, %v3038
        %v3040 = vshll.u32 920167782, %v3025
        %v3041 = vshrl.u32 1326507024, %v3026
        %v3042 = vor.u32 %v3040, %v3041
        %vm3043 = vcmp.lt.s32.totalorder %v3024, 1
        %vm3044 = vcmp.lt.s32.totalorder %v3024, 2
        %vm3045 = vcmp.lt.s32.totalorder %v3024, 3
        %vm3046 = vcmp.lt.s32.totalorder %v3024, 4
        %v3047 = vsel %vm3043, %v3027, %v3030
        %v3048 = vsel %vm3046, %v3036, 2102212464
        %v3049 = vsel %vm3045, %v3033, %v3048
        %v3050 = vsel %vm3044, %v3047, %v3049
        %v3051 = vsel %vm3043, %v3030, %v3033
        %v3052 = vsel %vm3046, %v3039, 920167782
        %v3053 = vsel %vm3045, %v3036, %v3052
        %v3054 = vsel %vm3044, %v3051, %v3053
        %v3055 = vsel %vm3043, %v3033, %v3036
        %v3056 = vsel %vm3046, %v3042, 1326507024
        %v3057 = vsel %vm3045, %v3039, %v3056
        %v3058 = vsel %vm3044, %v3055, %v3057
        %v3059 = vshll.u32 %v3019, 8
        %v3060 = vand.u32 %v3059, 65535
        %v3061 = vshrl.u32 %v3059, 16
        %v3062 = vand.u32 %v3058, 65535
        %v3063 = vshrl.u32 %v3058, 16
        %v3064 = vmul.u32 %v3060, %v3062
        %v3065 = vmul.u32 %v3060, %v3063
        %v3066 = vmul.u32 %v3061, %v3062
        %v3067 = vmul.u32 %v3061, %v3063
        %v3068 = vshll.u32 %v3065, 16
        %v3069 = vshrl.u32 %v3065, 16
        %v3070 = vshll.u32 %v3066, 16
        %v3071 = vshrl.u32 %v3066, 16
        %vm3072 = vc.u32 %v3064, %v3068
        %v3073 = vsel %vm3072, 1, 0
        %v3074 = vadd.s32 %v3064, %v3068
        %v3075 = vadd.s32 %v3067, %v3073
        %vm3076 = vc.u32 %v3074, %v3070
        %v3077 = vsel %vm3076, 1, 0
        %v3078 = vadd.s32 %v3074, %v3070
        %v3079 = vadd.s32 %v3075, %v3077
        %v3080 = vadd.s32 %v3079, %v3069
        %v3081 = vadd.s32 %v3080, %v3071
        %v3082 = vand.u32 %v3059, 65535
        %v3083 = vshrl.u32 %v3059, 16
        %v3084 = vand.u32 %v3054, 65535
        %v3085 = vshrl.u32 %v3054, 16
        %v3086 = vmul.u32 %v3082, %v3084
        %v3087 = vmul.u32 %v3082, %v3085
        %v3088 = vmul.u32 %v3083, %v3084
        %v3089 = vmul.u32 %v3083, %v3085
        %v3090 = vshll.u32 %v3087, 16
        %v3091 = vshrl.u32 %v3087, 16
        %v3092 = vshll.u32 %v3088, 16
        %v3093 = vshrl.u32 %v3088, 16
        %vm3094 = vc.u32 %v3086, %v3090
        %v3095 = vsel %vm3094, 1, 0
        %v3096 = vadd.s32 %v3086, %v3090
        %v3097 = vadd.s32 %v3089, %v3095
        %vm3098 = vc.u32 %v3096, %v3092
        %v3099 = vsel %vm3098, 1, 0
        %v3100 = vadd.s32 %v3096, %v3092
        %v3101 = vadd.s32 %v3097, %v3099
        %v3102 = vadd.s32 %v3101, %v3091
        %v3103 = vadd.s32 %v3102, %v3093
        %v3104 = vmul.u32 %v3059, %v3050
        %v3105 = vadd.s32 %v3081, %v3100
        %vm3106 = vc.u32 %v3081, %v3100
        %v3107 = vadd.s32 %v3103, 1
        %v3108 = vsel %vm3106, %v3107, %v3103
        %v3109 = vadd.s32 %v3104, %v3108
        %v3110 = vadd.s32 %v3109, 536870912
        %v3111 = vshrl.u32 %v3110, 30
        %v3112 = vshll.u32 %v3111, 30
        %v3113 = vsub.s32 %v3109, %v3112
        %vm3114 = vcmp.lt.s32.totalorder %v3113, 0
        %v3115 = vsub.s32 0, %v3113
        %v3116 = vsel %vm3114, %v3115, %v3113
        %v3117 = vclz %v3116
        %v3118 = vsub.s32 %v3117, 2
        %vm3119 = vcmp.gt.s32.totalorder 0, %v3118
        %v3120 = vsel %vm3119, 0, %v3118
        %v3121 = vsub.s32 32, %v3120
        %v3122 = vshll.u32 %v3113, %v3120
        %v3123 = vshrl.u32 %v3105, %v3121
        %v3124 = vor.u32 %v3122, %v3123
        %v3125 = vsub.s32 4294967266, %v3120
        %v3126 = vadd.s32 %v3125, 127
        %v3127 = vshll.u32 %v3126, 23
        %v3128 = vor.u32 4788187, %v3127
        %v3129 = vand.u32 2147483647, %v3128
        %v3131 = vcvt.s32.f32 %v3124
        %v3132 = vmul.f32 %v3131, %v3129
        %v3133 = vxor.u32 %v3132, 2147483648
        %v3134 = vsel %vm3013, %v3133, %v3132
        %v3135 = vsub.s32 4, %v3111
        %v3136 = vsel %vm3013, %v3135, %v3111
        %v3137 = vsel %vm3012, %v2769, %v3134
        %v3138 = vsel %vm3012, 0, %v3136
        %v3139 = vmul.f32 %v3137, %v3137
        %v3140 = vmul.f32 %v3139, -0.001358992
        %v3141 = vadd.f32 %v3140, 0.041655596
        %v3142 = vmul.f32 %v3139, %v3141
        %v3143 = vadd.f32 %v3142, -0.4999988
        %v3144 = vmul.f32 %v3139, %v3143
        %v3145 = vadd.f32 1.0, %v3144
        %v3146 = vmul.f32 %v3137, %v3137
        %v3147 = vmul.f32 %v3146, -0.00019511016
        %v3148 = vadd.f32 %v3147, 0.008332121
        %v3149 = vmul.f32 %v3146, %v3148
        %v3150 = vadd.f32 %v3149, -0.16666654
        %v3151 = vmul.f32 %v3146, %v3150
        %v3152 = vadd.f32 %v3151, 1.0
        %v3153 = vmul.f32 %v3152, %v3137
        %vm3154 = vweird.f32 %v2769
        %v3155 = vand.u32 %v3138, 3
        %vm3156 = vcmp.lt.s32.totalorder %v3155, 2
        %vm3157 = vcmp.eq.s32.totalorder %v3155, 0
        %v3158 = vxor.u32 %v3153, 2147483648
        %v3159 = vsel %vm3157, %v3145, %v3158
        %vm3160 = vcmp.eq.s32.totalorder %v3155, 2
        %v3161 = vxor.u32 %v3145, 2147483648
        %v3162 = vsel %vm3160, %v3161, %v3153
        %v3163 = vsel %vm3156, %v3159, %v3162
        %v3164 = vsel %vm3154, nan, %v3163
        %v3165 = vand.u32 2147483647, %v2770
        %vm3166 = vcmp.le.f32.partialorder %v3165, 0.7853982
        %vm3167 = vcmp.lt.s32.totalorder %v2770, 0
        %v3168 = vand.u32 %v2770, 2139095040
        %v3169 = vshrl.u32 %v3168, 23
        %v3170 = vsub.s32 %v3169, 127
        %v3171 = vand.u32 2147483647, %v2770
        %v3172 = vand.u32 %v3171, 8388607
        %v3173 = vor.u32 %v3172, 8388608
        %v3174 = vsub.s32 0, %v3173
        %v3175 = vadd.s32 %v3170, 1
        %vm3176 = vcmp.gt.s32.totalorder %v3175, 0
        %v3177 = vsel %vm3176, %v3175, 0
        %v3178 = vshrl.u32 %v3177, 5
        %v3179 = vand.u32 %v3177, 31
        %v3180 = vsub.s32 32, %v3179
        %v3181 = vshrl.u32 683565275, %v3180
        %v3182 = vshll.u32 683565275, %v3179
        %v3183 = vshrl.u32 2475754826, %v3180
        %v3184 = vor.u32 %v3182, %v3183
        %v3185 = vshll.u32 2475754826, %v3179
        %v3186 = vshrl.u32 2131351028, %v3180
        %v3187 = vor.u32 %v3185, %v3186
        %v3188 = vshll.u32 2131351028, %v3179
        %v3189 = vshrl.u32 2102212464, %v3180
        %v3190 = vor.u32 %v3188, %v3189
        %v3191 = vshll.u32 2102212464, %v3179
        %v3192 = vshrl.u32 920167782, %v3180
        %v3193 = vor.u32 %v3191, %v3192
        %v3194 = vshll.u32 920167782, %v3179
        %v3195 = vshrl.u32 1326507024, %v3180
        %v3196 = vor.u32 %v3194, %v3195
        %vm3197 = vcmp.lt.s32.totalorder %v3178, 1
        %vm3198 = vcmp.lt.s32.totalorder %v3178, 2
        %vm3199 = vcmp.lt.s32.totalorder %v3178, 3
        %vm3200 = vcmp.lt.s32.totalorder %v3178, 4
        %v3201 = vsel %vm3197, %v3181, %v3184
        %v3202 = vsel %vm3200, %v3190, 2102212464
        %v3203 = vsel %vm3199, %v3187, %v3202
        %v3204 = vsel %vm3198, %v3201, %v3203
        %v3205 = vsel %vm3197, %v3184, %v3187
        %v3206 = vsel %vm3200, %v3193, 920167782
        %v3207 = vsel %vm3199, %v3190, %v3206
        %v3208 = vsel %vm3198, %v3205, %v3207
        %v3209 = vsel %vm3197, %v3187, %v3190
        %v3210 = vsel %vm3200, %v3196, 1326507024
        %v3211 = vsel %vm3199, %v3193, %v3210
        %v3212 = vsel %vm3198, %v3209, %v3211
        %v3213 = vshll.u32 %v3173, 8
        %v3214 = vand.u32 %v3213, 65535
        %v3215 = vshrl.u32 %v3213, 16
        %v3216 = vand.u32 %v3212, 65535
        %v3217 = vshrl.u32 %v3212, 16
        %v3218 = vmul.u32 %v3214, %v3216
        %v3219 = vmul.u32 %v3214, %v3217
        %v3220 = vmul.u32 %v3215, %v3216
        %v3221 = vmul.u32 %v3215, %v3217
        %v3222 = vshll.u32 %v3219, 16
        %v3223 = vshrl.u32 %v3219, 16
        %v3224 = vshll.u32 %v3220, 16
        %v3225 = vshrl.u32 %v3220, 16
        %vm3226 = vc.u32 %v3218, %v3222
        %v3227 = vsel %vm3226, 1, 0
        %v3228 = vadd.s32 %v3218, %v3222
        %v3229 = vadd.s32 %v3221, %v3227
        %vm3230 = vc.u32 %v3228, %v3224
        %v3231 = vsel %vm3230, 1, 0
        %v3232 = vadd.s32 %v3228, %v3224
        %v3233 = vadd.s32 %v3229, %v3231
        %v3234 = vadd.s32 %v3233, %v3223
        %v3235 = vadd.s32 %v3234, %v3225
        %v3236 = vand.u32 %v3213, 65535
        %v3237 = vshrl.u32 %v3213, 16
        %v3238 = vand.u32 %v3208, 65535
        %v3239 = vshrl.u32 %v3208, 16
        %v3240 = vmul.u32 %v3236, %v3238
        %v3241 = vmul.u32 %v3236, %v3239
        %v3242 = vmul.u32 %v3237, %v3238
        %v3243 = vmul.u32 %v3237, %v3239
        %v3244 = vshll.u32 %v3241, 16
        %v3245 = vshrl.u32 %v3241, 16
        %v3246 = vshll.u32 %v3242, 16
        %v3247 = vshrl.u32 %v3242, 16
        %vm3248 = vc.u32 %v3240, %v3244
        %v3249 = vsel %vm3248, 1, 0
        %v3250 = vadd.s32 %v3240, %v3244
        %v3251 = vadd.s32 %v3243, %v3249
        %vm3252 = vc.u32 %v3250, %v3246
        %v3253 = vsel %vm3252, 1, 0
        %v3254 = vadd.s32 %v3250, %v3246
        %v3255 = vadd.s32 %v3251, %v3253
        %v3256 = vadd.s32 %v3255, %v3245
        %v3257 = vadd.s32 %v3256, %v3247
        %v3258 = vmul.u32 %v3213, %v3204
        %v3259 = vadd.s32 %v3235, %v3254
        %vm3260 = vc.u32 %v3235, %v3254
        %v3261 = vadd.s32 %v3257, 1
        %v3262 = vsel %vm3260, %v3261, %v3257
        %v3263 = vadd.s32 %v3258, %v3262
        %v3264 = vadd.s32 %v3263, 536870912
        %v3265 = vshrl.u32 %v3264, 30
        %v3266 = vshll.u32 %v3265, 30
        %v3267 = vsub.s32 %v3263, %v3266
        %vm3268 = vcmp.lt.s32.totalorder %v3267, 0
        %v3269 = vsub.s32 0, %v3267
        %v3270 = vsel %vm3268, %v3269, %v3267
        %v3271 = vclz %v3270
        %v3272 = vsub.s32 %v3271, 2
        %vm3273 = vcmp.gt.s32.totalorder 0, %v3272
        %v3274 = vsel %vm3273, 0, %v3272
        %v3275 = vsub.s32 32, %v3274
        %v3276 = vshll.u32 %v3267, %v3274
        %v3277 = vshrl.u32 %v3259, %v3275
        %v3278 = vor.u32 %v3276, %v3277
        %v3279 = vsub.s32 4294967266, %v3274
        %v3280 = vadd.s32 %v3279, 127
        %v3281 = vshll.u32 %v3280, 23
        %v3282 = vor.u32 4788187, %v3281
        %v3283 = vand.u32 2147483647, %v3282
        %v3285 = vcvt.s32.f32 %v3278
        %v3286 = vmul.f32 %v3285, %v3283
        %v3287 = vxor.u32 %v3286, 2147483648
        %v3288 = vsel %vm3167, %v3287, %v3286
        %v3289 = vsub.s32 4, %v3265
        %v3290 = vsel %vm3167, %v3289, %v3265
        %v3291 = vsel %vm3166, %v2770, %v3288
        %v3292 = vsel %vm3166, 0, %v3290
        %v3293 = vmul.f32 %v3291, %v3291
        %v3294 = vmul.f32 %v3293, -0.001358992
        %v3295 = vadd.f32 %v3294, 0.041655596
        %v3296 = vmul.f32 %v3293, %v3295
        %v3297 = vadd.f32 %v3296, -0.4999988
        %v3298 = vmul.f32 %v3293, %v3297
        %v3299 = vadd.f32 1.0, %v3298
        %v3300 = vmul.f32 %v3291, %v3291
        %v3301 = vmul.f32 %v3300, -0.00019511016
        %v3302 = vadd.f32 %v3301, 0.008332121
        %v3303 = vmul.f32 %v3300, %v3302
        %v3304 = vadd.f32 %v3303, -0.16666654
        %v3305 = vmul.f32 %v3300, %v3304
        %v3306 = vadd.f32 %v3305, 1.0
        %v3307 = vmul.f32 %v3306, %v3291
        %vm3308 = vweird.f32 %v2770
        %v3309 = vand.u32 %v3292, 3
        %vm3310 = vcmp.lt.s32.totalorder %v3309, 2
        %vm3311 = vcmp.eq.s32.totalorder %v3309, 0
        %v3312 = vxor.u32 %v3307, 2147483648
        %v3313 = vsel %vm3311, %v3299, %v3312
        %vm3314 = vcmp.eq.s32.totalorder %v3309, 2
        %v3315 = vxor.u32 %v3299, 2147483648
        %v3316 = vsel %vm3314, %v3315, %v3307
        %v3317 = vsel %vm3310, %v3313, %v3316
        %v3318 = vsel %vm3308, nan, %v3317
        %v3319 = vand.u32 2147483647, %v2771
        %vm3320 = vcmp.le.f32.partialorder %v3319, 0.7853982
        %vm3321 = vcmp.lt.s32.totalorder %v2771, 0
        %v3322 = vand.u32 %v2771, 2139095040
        %v3323 = vshrl.u32 %v3322, 23
        %v3324 = vsub.s32 %v3323, 127
        %v3325 = vand.u32 2147483647, %v2771
        %v3326 = vand.u32 %v3325, 8388607
        %v3327 = vor.u32 %v3326, 8388608
        %v3328 = vsub.s32 0, %v3327
        %v3329 = vadd.s32 %v3324, 1
        %vm3330 = vcmp.gt.s32.totalorder %v3329, 0
        %v3331 = vsel %vm3330, %v3329, 0
        %v3332 = vshrl.u32 %v3331, 5
        %v3333 = vand.u32 %v3331, 31
        %v3334 = vsub.s32 32, %v3333
        %v3335 = vshrl.u32 683565275, %v3334
        %v3336 = vshll.u32 683565275, %v3333
        %v3337 = vshrl.u32 2475754826, %v3334
        %v3338 = vor.u32 %v3336, %v3337
        %v3339 = vshll.u32 2475754826, %v3333
        %v3340 = vshrl.u32 2131351028, %v3334
        %v3341 = vor.u32 %v3339, %v3340
        %v3342 = vshll.u32 2131351028, %v3333
        %v3343 = vshrl.u32 2102212464, %v3334
        %v3344 = vor.u32 %v3342, %v3343
        %v3345 = vshll.u32 2102212464, %v3333
        %v3346 = vshrl.u32 920167782, %v3334
        %v3347 = vor.u32 %v3345, %v3346
        %v3348 = vshll.u32 920167782, %v3333
        %v3349 = vshrl.u32 1326507024, %v3334
        %v3350 = vor.u32 %v3348, %v3349
        %vm3351 = vcmp.lt.s32.totalorder %v3332, 1
        %vm3352 = vcmp.lt.s32.totalorder %v3332, 2
        %vm3353 = vcmp.lt.s32.totalorder %v3332, 3
        %vm3354 = vcmp.lt.s32.totalorder %v3332, 4
        %v3355 = vsel %vm3351, %v3335, %v3338
        %v3356 = vsel %vm3354, %v3344, 2102212464
        %v3357 = vsel %vm3353, %v3341, %v3356
        %v3358 = vsel %vm3352, %v3355, %v3357
        %v3359 = vsel %vm3351, %v3338, %v3341
        %v3360 = vsel %vm3354, %v3347, 920167782
        %v3361 = vsel %vm3353, %v3344, %v3360
        %v3362 = vsel %vm3352, %v3359, %v3361
        %v3363 = vsel %vm3351, %v3341, %v3344
        %v3364 = vsel %vm3354, %v3350, 1326507024
        %v3365 = vsel %vm3353, %v3347, %v3364
        %v3366 = vsel %vm3352, %v3363, %v3365
        %v3367 = vshll.u32 %v3327, 8
        %v3368 = vand.u32 %v3367, 65535
        %v3369 = vshrl.u32 %v3367, 16
        %v3370 = vand.u32 %v3366, 65535
        %v3371 = vshrl.u32 %v3366, 16
        %v3372 = vmul.u32 %v3368, %v3370
        %v3373 = vmul.u32 %v3368, %v3371
        %v3374 = vmul.u32 %v3369, %v3370
        %v3375 = vmul.u32 %v3369, %v3371
        %v3376 = vshll.u32 %v3373, 16
        %v3377 = vshrl.u32 %v3373, 16
        %v3378 = vshll.u32 %v3374, 16
        %v3379 = vshrl.u32 %v3374, 16
        %vm3380 = vc.u32 %v3372, %v3376
        %v3381 = vsel %vm3380, 1, 0
        %v3382 = vadd.s32 %v3372, %v3376
        %v3383 = vadd.s32 %v3375, %v3381
        %vm3384 = vc.u32 %v3382, %v3378
        %v3385 = vsel %vm3384, 1, 0
        %v3386 = vadd.s32 %v3382, %v3378
        %v3387 = vadd.s32 %v3383, %v3385
        %v3388 = vadd.s32 %v3387, %v3377
        %v3389 = vadd.s32 %v3388, %v3379
        %v3390 = vand.u32 %v3367, 65535
        %v3391 = vshrl.u32 %v3367, 16
        %v3392 = vand.u32 %v3362, 65535
        %v3393 = vshrl.u32 %v3362, 16
        %v3394 = vmul.u32 %v3390, %v3392
        %v3395 = vmul.u32 %v3390, %v3393
        %v3396 = vmul.u32 %v3391, %v3392
        %v3397 = vmul.u32 %v3391, %v3393
        %v3398 = vshll.u32 %v3395, 16
        %v3399 = vshrl.u32 %v3395, 16
        %v3400 = vshll.u32 %v3396, 16
        %v3401 = vshrl.u32 %v3396, 16
        %vm3402 = vc.u32 %v3394, %v3398
        %v3403 = vsel %vm3402, 1, 0
        %v3404 = vadd.s32 %v3394, %v3398
        %v3405 = vadd.s32 %v3397, %v3403
        %vm3406 = vc.u32 %v3404, %v3400
        %v3407 = vsel %vm3406, 1, 0
        %v3408 = vadd.s32 %v3404, %v3400
        %v3409 = vadd.s32 %v3405, %v3407
        %v3410 = vadd.s32 %v3409, %v3399
        %v3411 = vadd.s32 %v3410, %v3401
        %v3412 = vmul.u32 %v3367, %v3358
        %v3413 = vadd.s32 %v3389, %v3408
        %vm3414 = vc.u32 %v3389, %v3408
        %v3415 = vadd.s32 %v3411, 1
        %v3416 = vsel %vm3414, %v3415, %v3411
        %v3417 = vadd.s32 %v3412, %v3416
        %v3418 = vadd.s32 %v3417, 536870912
        %v3419 = vshrl.u32 %v3418, 30
        %v3420 = vshll.u32 %v3419, 30
        %v3421 = vsub.s32 %v3417, %v3420
        %vm3422 = vcmp.lt.s32.totalorder %v3421, 0
        %v3423 = vsub.s32 0, %v3421
        %v3424 = vsel %vm3422, %v3423, %v3421
        %v3425 = vclz %v3424
        %v3426 = vsub.s32 %v3425, 2
        %vm3427 = vcmp.gt.s32.totalorder 0, %v3426
        %v3428 = vsel %vm3427, 0, %v3426
        %v3429 = vsub.s32 32, %v3428
        %v3430 = vshll.u32 %v3421, %v3428
        %v3431 = vshrl.u32 %v3413, %v3429
        %v3432 = vor.u32 %v3430, %v3431
        %v3433 = vsub.s32 4294967266, %v3428
        %v3434 = vadd.s32 %v3433, 127
        %v3435 = vshll.u32 %v3434, 23
        %v3436 = vor.u32 4788187, %v3435
        %v3437 = vand.u32 2147483647, %v3436
        %v3439 = vcvt.s32.f32 %v3432
        %v3440 = vmul.f32 %v3439, %v3437
        %v3441 = vxor.u32 %v3440, 2147483648
        %v3442 = vsel %vm3321, %v3441, %v3440
        %v3443 = vsub.s32 4, %v3419
        %v3444 = vsel %vm3321, %v3443, %v3419
        %v3445 = vsel %vm3320, %v2771, %v3442
        %v3446 = vsel %vm3320, 0, %v3444
        %v3447 = vmul.f32 %v3445, %v3445
        %v3448 = vmul.f32 %v3447, -0.001358992
        %v3449 = vadd.f32 %v3448, 0.041655596
        %v3450 = vmul.f32 %v3447, %v3449
        %v3451 = vadd.f32 %v3450, -0.4999988
        %v3452 = vmul.f32 %v3447, %v3451
        %v3453 = vadd.f32 1.0, %v3452
        %v3454 = vmul.f32 %v3445, %v3445
        %v3455 = vmul.f32 %v3454, -0.00019511016
        %v3456 = vadd.f32 %v3455, 0.008332121
        %v3457 = vmul.f32 %v3454, %v3456
        %v3458 = vadd.f32 %v3457, -0.16666654
        %v3459 = vmul.f32 %v3454, %v3458
        %v3460 = vadd.f32 %v3459, 1.0
        %v3461 = vmul.f32 %v3460, %v3445
        %vm3462 = vweird.f32 %v2771
        %v3463 = vand.u32 %v3446, 3
        %vm3464 = vcmp.lt.s32.totalorder %v3463, 2
        %vm3465 = vcmp.eq.s32.totalorder %v3463, 0
        %v3466 = vxor.u32 %v3461, 2147483648
        %v3467 = vsel %vm3465, %v3453, %v3466
        %vm3468 = vcmp.eq.s32.totalorder %v3463, 2
        %v3469 = vxor.u32 %v3453, 2147483648
        %v3470 = vsel %vm3468, %v3469, %v3461
        %v3471 = vsel %vm3464, %v3467, %v3470
        %v3472 = vsel %vm3462, nan, %v3471
        %v3473 = vand.u32 2147483647, %v2772
        %vm3474 = vcmp.le.f32.partialorder %v3473, 0.7853982
        %vm3475 = vcmp.lt.s32.totalorder %v2772, 0
        %v3476 = vand.u32 %v2772, 2139095040
        %v3477 = vshrl.u32 %v3476, 23
        %v3478 = vsub.s32 %v3477, 127
        %v3479 = vand.u32 2147483647, %v2772
        %v3480 = vand.u32 %v3479, 8388607
        %v3481 = vor.u32 %v3480, 8388608
        %v3482 = vsub.s32 0, %v3481
        %v3483 = vadd.s32 %v3478, 1
        %vm3484 = vcmp.gt.s32.totalorder %v3483, 0
        %v3485 = vsel %vm3484, %v3483, 0
        %v3486 = vshrl.u32 %v3485, 5
        %v3487 = vand.u32 %v3485, 31
        %v3488 = vsub.s32 32, %v3487
        %v3489 = vshrl.u32 683565275, %v3488
        %v3490 = vshll.u32 683565275, %v3487
        %v3491 = vshrl.u32 2475754826, %v3488
        %v3492 = vor.u32 %v3490, %v3491
        %v3493 = vshll.u32 2475754826, %v3487
        %v3494 = vshrl.u32 2131351028, %v3488
        %v3495 = vor.u32 %v3493, %v3494
        %v3496 = vshll.u32 2131351028, %v3487
        %v3497 = vshrl.u32 2102212464, %v3488
        %v3498 = vor.u32 %v3496, %v3497
        %v3499 = vshll.u32 2102212464, %v3487
        %v3500 = vshrl.u32 920167782, %v3488
        %v3501 = vor.u32 %v3499, %v3500
        %v3502 = vshll.u32 920167782, %v3487
        %v3503 = vshrl.u32 1326507024, %v3488
        %v3504 = vor.u32 %v3502, %v3503
        %vm3505 = vcmp.lt.s32.totalorder %v3486, 1
        %vm3506 = vcmp.lt.s32.totalorder %v3486, 2
        %vm3507 = vcmp.lt.s32.totalorder %v3486, 3
        %vm3508 = vcmp.lt.s32.totalorder %v3486, 4
        %v3509 = vsel %vm3505, %v3489, %v3492
        %v3510 = vsel %vm3508, %v3498, 2102212464
        %v3511 = vsel %vm3507, %v3495, %v3510
        %v3512 = vsel %vm3506, %v3509, %v3511
        %v3513 = vsel %vm3505, %v3492, %v3495
        %v3514 = vsel %vm3508, %v3501, 920167782
        %v3515 = vsel %vm3507, %v3498, %v3514
        %v3516 = vsel %vm3506, %v3513, %v3515
        %v3517 = vsel %vm3505, %v3495, %v3498
        %v3518 = vsel %vm3508, %v3504, 1326507024
        %v3519 = vsel %vm3507, %v3501, %v3518
        %v3520 = vsel %vm3506, %v3517, %v3519
        %v3521 = vshll.u32 %v3481, 8
        %v3522 = vand.u32 %v3521, 65535
        %v3523 = vshrl.u32 %v3521, 16
        %v3524 = vand.u32 %v3520, 65535
        %v3525 = vshrl.u32 %v3520, 16
        %v3526 = vmul.u32 %v3522, %v3524
        %v3527 = vmul.u32 %v3522, %v3525
        %v3528 = vmul.u32 %v3523, %v3524
        %v3529 = vmul.u32 %v3523, %v3525
        %v3530 = vshll.u32 %v3527, 16
        %v3531 = vshrl.u32 %v3527, 16
        %v3532 = vshll.u32 %v3528, 16
        %v3533 = vshrl.u32 %v3528, 16
        %vm3534 = vc.u32 %v3526, %v3530
        %v3535 = vsel %vm3534, 1, 0
        %v3536 = vadd.s32 %v3526, %v3530
        %v3537 = vadd.s32 %v3529, %v3535
        %vm3538 = vc.u32 %v3536, %v3532
        %v3539 = vsel %vm3538, 1, 0
        %v3540 = vadd.s32 %v3536, %v3532
        %v3541 = vadd.s32 %v3537, %v3539
        %v3542 = vadd.s32 %v3541, %v3531
        %v3543 = vadd.s32 %v3542, %v3533
        %v3544 = vand.u32 %v3521, 65535
        %v3545 = vshrl.u32 %v3521, 16
        %v3546 = vand.u32 %v3516, 65535
        %v3547 = vshrl.u32 %v3516, 16
        %v3548 = vmul.u32 %v3544, %v3546
        %v3549 = vmul.u32 %v3544, %v3547
        %v3550 = vmul.u32 %v3545, %v3546
        %v3551 = vmul.u32 %v3545, %v3547
        %v3552 = vshll.u32 %v3549, 16
        %v3553 = vshrl.u32 %v3549, 16
        %v3554 = vshll.u32 %v3550, 16
        %v3555 = vshrl.u32 %v3550, 16
        %vm3556 = vc.u32 %v3548, %v3552
        %v3557 = vsel %vm3556, 1, 0
        %v3558 = vadd.s32 %v3548, %v3552
        %v3559 = vadd.s32 %v3551, %v3557
        %vm3560 = vc.u32 %v3558, %v3554
        %v3561 = vsel %vm3560, 1, 0
        %v3562 = vadd.s32 %v3558, %v3554
        %v3563 = vadd.s32 %v3559, %v3561
        %v3564 = vadd.s32 %v3563, %v3553
        %v3565 = vadd.s32 %v3564, %v3555
        %v3566 = vmul.u32 %v3521, %v3512
        %v3567 = vadd.s32 %v3543, %v3562
        %vm3568 = vc.u32 %v3543, %v3562
        %v3569 = vadd.s32 %v3565, 1
        %v3570 = vsel %vm3568, %v3569, %v3565
        %v3571 = vadd.s32 %v3566, %v3570
        %v3572 = vadd.s32 %v3571, 536870912
        %v3573 = vshrl.u32 %v3572, 30
        %v3574 = vshll.u32 %v3573, 30
        %v3575 = vsub.s32 %v3571, %v3574
        %vm3576 = vcmp.lt.s32.totalorder %v3575, 0
        %v3577 = vsub.s32 0, %v3575
        %v3578 = vsel %vm3576, %v3577, %v3575
        %v3579 = vclz %v3578
        %v3580 = vsub.s32 %v3579, 2
        %vm3581 = vcmp.gt.s32.totalorder 0, %v3580
        %v3582 = vsel %vm3581, 0, %v3580
        %v3583 = vsub.s32 32, %v3582
        %v3584 = vshll.u32 %v3575, %v3582
        %v3585 = vshrl.u32 %v3567, %v3583
        %v3586 = vor.u32 %v3584, %v3585
        %v3587 = vsub.s32 4294967266, %v3582
        %v3588 = vadd.s32 %v3587, 127
        %v3589 = vshll.u32 %v3588, 23
        %v3590 = vor.u32 4788187, %v3589
        %v3591 = vand.u32 2147483647, %v3590
        %v3593 = vcvt.s32.f32 %v3586
        %v3594 = vmul.f32 %v3593, %v3591
        %v3595 = vxor.u32 %v3594, 2147483648
        %v3596 = vsel %vm3475, %v3595, %v3594
        %v3597 = vsub.s32 4, %v3573
        %v3598 = vsel %vm3475, %v3597, %v3573
        %v3599 = vsel %vm3474, %v2772, %v3596
        %v3600 = vsel %vm3474, 0, %v3598
        %v3601 = vmul.f32 %v3599, %v3599
        %v3602 = vmul.f32 %v3601, -0.001358992
        %v3603 = vadd.f32 %v3602, 0.041655596
        %v3604 = vmul.f32 %v3601, %v3603
        %v3605 = vadd.f32 %v3604, -0.4999988
        %v3606 = vmul.f32 %v3601, %v3605
        %v3607 = vadd.f32 1.0, %v3606
        %v3608 = vmul.f32 %v3599, %v3599
        %v3609 = vmul.f32 %v3608, -0.00019511016
        %v3610 = vadd.f32 %v3609, 0.008332121
        %v3611 = vmul.f32 %v3608, %v3610
        %v3612 = vadd.f32 %v3611, -0.16666654
        %v3613 = vmul.f32 %v3608, %v3612
        %v3614 = vadd.f32 %v3613, 1.0
        %v3615 = vmul.f32 %v3614, %v3599
        %vm3616 = vweird.f32 %v2772
        %v3617 = vand.u32 %v3600, 3
        %vm3618 = vcmp.lt.s32.totalorder %v3617, 2
        %vm3619 = vcmp.eq.s32.totalorder %v3617, 0
        %v3620 = vxor.u32 %v3615, 2147483648
        %v3621 = vsel %vm3619, %v3607, %v3620
        %vm3622 = vcmp.eq.s32.totalorder %v3617, 2
        %v3623 = vxor.u32 %v3607, 2147483648
        %v3624 = vsel %vm3622, %v3623, %v3615
        %v3625 = vsel %vm3618, %v3621, %v3624
        %v3626 = vsel %vm3616, nan, %v3625
        %v3627 = vand.u32 2147483647, %v2773
        %vm3628 = vcmp.le.f32.partialorder %v3627, 0.7853982
        %vm3629 = vcmp.lt.s32.totalorder %v2773, 0
        %v3630 = vand.u32 %v2773, 2139095040
        %v3631 = vshrl.u32 %v3630, 23
        %v3632 = vsub.s32 %v3631, 127
        %v3633 = vand.u32 2147483647, %v2773
        %v3634 = vand.u32 %v3633, 8388607
        %v3635 = vor.u32 %v3634, 8388608
        %v3636 = vsub.s32 0, %v3635
        %v3637 = vadd.s32 %v3632, 1
        %vm3638 = vcmp.gt.s32.totalorder %v3637, 0
        %v3639 = vsel %vm3638, %v3637, 0
        %v3640 = vshrl.u32 %v3639, 5
        %v3641 = vand.u32 %v3639, 31
        %v3642 = vsub.s32 32, %v3641
        %v3643 = vshrl.u32 683565275, %v3642
        %v3644 = vshll.u32 683565275, %v3641
        %v3645 = vshrl.u32 2475754826, %v3642
        %v3646 = vor.u32 %v3644, %v3645
        %v3647 = vshll.u32 2475754826, %v3641
        %v3648 = vshrl.u32 2131351028, %v3642
        %v3649 = vor.u32 %v3647, %v3648
        %v3650 = vshll.u32 2131351028, %v3641
        %v3651 = vshrl.u32 2102212464, %v3642
        %v3652 = vor.u32 %v3650, %v3651
        %v3653 = vshll.u32 2102212464, %v3641
        %v3654 = vshrl.u32 920167782, %v3642
        %v3655 = vor.u32 %v3653, %v3654
        %v3656 = vshll.u32 920167782, %v3641
        %v3657 = vshrl.u32 1326507024, %v3642
        %v3658 = vor.u32 %v3656, %v3657
        %vm3659 = vcmp.lt.s32.totalorder %v3640, 1
        %vm3660 = vcmp.lt.s32.totalorder %v3640, 2
        %vm3661 = vcmp.lt.s32.totalorder %v3640, 3
        %vm3662 = vcmp.lt.s32.totalorder %v3640, 4
        %v3663 = vsel %vm3659, %v3643, %v3646
        %v3664 = vsel %vm3662, %v3652, 2102212464
        %v3665 = vsel %vm3661, %v3649, %v3664
        %v3666 = vsel %vm3660, %v3663, %v3665
        %v3667 = vsel %vm3659, %v3646, %v3649
        %v3668 = vsel %vm3662, %v3655, 920167782
        %v3669 = vsel %vm3661, %v3652, %v3668
        %v3670 = vsel %vm3660, %v3667, %v3669
        %v3671 = vsel %vm3659, %v3649, %v3652
        %v3672 = vsel %vm3662, %v3658, 1326507024
        %v3673 = vsel %vm3661, %v3655, %v3672
        %v3674 = vsel %vm3660, %v3671, %v3673
        %v3675 = vshll.u32 %v3635, 8
        %v3676 = vand.u32 %v3675, 65535
        %v3677 = vshrl.u32 %v3675, 16
        %v3678 = vand.u32 %v3674, 65535
        %v3679 = vshrl.u32 %v3674, 16
        %v3680 = vmul.u32 %v3676, %v3678
        %v3681 = vmul.u32 %v3676, %v3679
        %v3682 = vmul.u32 %v3677, %v3678
        %v3683 = vmul.u32 %v3677, %v3679
        %v3684 = vshll.u32 %v3681, 16
        %v3685 = vshrl.u32 %v3681, 16
        %v3686 = vshll.u32 %v3682, 16
        %v3687 = vshrl.u32 %v3682, 16
        %vm3688 = vc.u32 %v3680, %v3684
        %v3689 = vsel %vm3688, 1, 0
        %v3690 = vadd.s32 %v3680, %v3684
        %v3691 = vadd.s32 %v3683, %v3689
        %vm3692 = vc.u32 %v3690, %v3686
        %v3693 = vsel %vm3692, 1, 0
        %v3694 = vadd.s32 %v3690, %v3686
        %v3695 = vadd.s32 %v3691, %v3693
        %v3696 = vadd.s32 %v3695, %v3685
        %v3697 = vadd.s32 %v3696, %v3687
        %v3698 = vand.u32 %v3675, 65535
        %v3699 = vshrl.u32 %v3675, 16
        %v3700 = vand.u32 %v3670, 65535
        %v3701 = vshrl.u32 %v3670, 16
        %v3702 = vmul.u32 %v3698, %v3700
        %v3703 = vmul.u32 %v3698, %v3701
        %v3704 = vmul.u32 %v3699, %v3700
        %v3705 = vmul.u32 %v3699, %v3701
        %v3706 = vshll.u32 %v3703, 16
        %v3707 = vshrl.u32 %v3703, 16
        %v3708 = vshll.u32 %v3704, 16
        %v3709 = vshrl.u32 %v3704, 16
        %vm3710 = vc.u32 %v3702, %v3706
        %v3711 = vsel %vm3710, 1, 0
        %v3712 = vadd.s32 %v3702, %v3706
        %v3713 = vadd.s32 %v3705, %v3711
        %vm3714 = vc.u32 %v3712, %v3708
        %v3715 = vsel %vm3714, 1, 0
        %v3716 = vadd.s32 %v3712, %v3708
        %v3717 = vadd.s32 %v3713, %v3715
        %v3718 = vadd.s32 %v3717, %v3707
        %v3719 = vadd.s32 %v3718, %v3709
        %v3720 = vmul.u32 %v3675, %v3666
        %v3721 = vadd.s32 %v3697, %v3716
        %vm3722 = vc.u32 %v3697, %v3716
        %v3723 = vadd.s32 %v3719, 1
        %v3724 = vsel %vm3722, %v3723, %v3719
        %v3725 = vadd.s32 %v3720, %v3724
        %v3726 = vadd.s32 %v3725, 536870912
        %v3727 = vshrl.u32 %v3726, 30
        %v3728 = vshll.u32 %v3727, 30
        %v3729 = vsub.s32 %v3725, %v3728
        %vm3730 = vcmp.lt.s32.totalorder %v3729, 0
        %v3731 = vsub.s32 0, %v3729
        %v3732 = vsel %vm3730, %v3731, %v3729
        %v3733 = vclz %v3732
        %v3734 = vsub.s32 %v3733, 2
        %vm3735 = vcmp.gt.s32.totalorder 0, %v3734
        %v3736 = vsel %vm3735, 0, %v3734
        %v3737 = vsub.s32 32, %v3736
        %v3738 = vshll.u32 %v3729, %v3736
        %v3739 = vshrl.u32 %v3721, %v3737
        %v3740 = vor.u32 %v3738, %v3739
        %v3741 = vsub.s32 4294967266, %v3736
        %v3742 = vadd.s32 %v3741, 127
        %v3743 = vshll.u32 %v3742, 23
        %v3744 = vor.u32 4788187, %v3743
        %v3745 = vand.u32 2147483647, %v3744
        %v3747 = vcvt.s32.f32 %v3740
        %v3748 = vmul.f32 %v3747, %v3745
        %v3749 = vxor.u32 %v3748, 2147483648
        %v3750 = vsel %vm3629, %v3749, %v3748
        %v3751 = vsub.s32 4, %v3727
        %v3752 = vsel %vm3629, %v3751, %v3727
        %v3753 = vsel %vm3628, %v2773, %v3750
        %v3754 = vsel %vm3628, 0, %v3752
        %v3755 = vmul.f32 %v3753, %v3753
        %v3756 = vmul.f32 %v3755, -0.001358992
        %v3757 = vadd.f32 %v3756, 0.041655596
        %v3758 = vmul.f32 %v3755, %v3757
        %v3759 = vadd.f32 %v3758, -0.4999988
        %v3760 = vmul.f32 %v3755, %v3759
        %v3761 = vadd.f32 1.0, %v3760
        %v3762 = vmul.f32 %v3753, %v3753
        %v3763 = vmul.f32 %v3762, -0.00019511016
        %v3764 = vadd.f32 %v3763, 0.008332121
        %v3765 = vmul.f32 %v3762, %v3764
        %v3766 = vadd.f32 %v3765, -0.16666654
        %v3767 = vmul.f32 %v3762, %v3766
        %v3768 = vadd.f32 %v3767, 1.0
        %v3769 = vmul.f32 %v3768, %v3753
        %vm3770 = vweird.f32 %v2773
        %v3771 = vand.u32 %v3754, 3
        %vm3772 = vcmp.lt.s32.totalorder %v3771, 2
        %vm3773 = vcmp.eq.s32.totalorder %v3771, 0
        %v3774 = vxor.u32 %v3769, 2147483648
        %v3775 = vsel %vm3773, %v3761, %v3774
        %vm3776 = vcmp.eq.s32.totalorder %v3771, 2
        %v3777 = vxor.u32 %v3761, 2147483648
        %v3778 = vsel %vm3776, %v3777, %v3769
        %v3779 = vsel %vm3772, %v3775, %v3778
        %v3780 = vsel %vm3770, nan, %v3779
        %v3781 = vand.u32 2147483647, %v2774
        %vm3782 = vcmp.le.f32.partialorder %v3781, 0.7853982
        %vm3783 = vcmp.lt.s32.totalorder %v2774, 0
        %v3784 = vand.u32 %v2774, 2139095040
        %v3785 = vshrl.u32 %v3784, 23
        %v3786 = vsub.s32 %v3785, 127
        %v3787 = vand.u32 2147483647, %v2774
        %v3788 = vand.u32 %v3787, 8388607
        %v3789 = vor.u32 %v3788, 8388608
        %v3790 = vsub.s32 0, %v3789
        %v3791 = vadd.s32 %v3786, 1
        %vm3792 = vcmp.gt.s32.totalorder %v3791, 0
        %v3793 = vsel %vm3792, %v3791, 0
        %v3794 = vshrl.u32 %v3793, 5
        %v3795 = vand.u32 %v3793, 31
        %v3796 = vsub.s32 32, %v3795
        %v3797 = vshrl.u32 683565275, %v3796
        %v3798 = vshll.u32 683565275, %v3795
        %v3799 = vshrl.u32 2475754826, %v3796
        %v3800 = vor.u32 %v3798, %v3799
        %v3801 = vshll.u32 2475754826, %v3795
        %v3802 = vshrl.u32 2131351028, %v3796
        %v3803 = vor.u32 %v3801, %v3802
        %v3804 = vshll.u32 2131351028, %v3795
        %v3805 = vshrl.u32 2102212464, %v3796
        %v3806 = vor.u32 %v3804, %v3805
        %v3807 = vshll.u32 2102212464, %v3795
        %v3808 = vshrl.u32 920167782, %v3796
        %v3809 = vor.u32 %v3807, %v3808
        %v3810 = vshll.u32 920167782, %v3795
        %v3811 = vshrl.u32 1326507024, %v3796
        %v3812 = vor.u32 %v3810, %v3811
        %vm3813 = vcmp.lt.s32.totalorder %v3794, 1
        %vm3814 = vcmp.lt.s32.totalorder %v3794, 2
        %vm3815 = vcmp.lt.s32.totalorder %v3794, 3
        %vm3816 = vcmp.lt.s32.totalorder %v3794, 4
        %v3817 = vsel %vm3813, %v3797, %v3800
        %v3818 = vsel %vm3816, %v3806, 2102212464
        %v3819 = vsel %vm3815, %v3803, %v3818
        %v3820 = vsel %vm3814, %v3817, %v3819
        %v3821 = vsel %vm3813, %v3800, %v3803
        %v3822 = vsel %vm3816, %v3809, 920167782
        %v3823 = vsel %vm3815, %v3806, %v3822
        %v3824 = vsel %vm3814, %v3821, %v3823
        %v3825 = vsel %vm3813, %v3803, %v3806
        %v3826 = vsel %vm3816, %v3812, 1326507024
        %v3827 = vsel %vm3815, %v3809, %v3826
        %v3828 = vsel %vm3814, %v3825, %v3827
        %v3829 = vshll.u32 %v3789, 8
        %v3830 = vand.u32 %v3829, 65535
        %v3831 = vshrl.u32 %v3829, 16
        %v3832 = vand.u32 %v3828, 65535
        %v3833 = vshrl.u32 %v3828, 16
        %v3834 = vmul.u32 %v3830, %v3832
        %v3835 = vmul.u32 %v3830, %v3833
        %v3836 = vmul.u32 %v3831, %v3832
        %v3837 = vmul.u32 %v3831, %v3833
        %v3838 = vshll.u32 %v3835, 16
        %v3839 = vshrl.u32 %v3835, 16
        %v3840 = vshll.u32 %v3836, 16
        %v3841 = vshrl.u32 %v3836, 16
        %vm3842 = vc.u32 %v3834, %v3838
        %v3843 = vsel %vm3842, 1, 0
        %v3844 = vadd.s32 %v3834, %v3838
        %v3845 = vadd.s32 %v3837, %v3843
        %vm3846 = vc.u32 %v3844, %v3840
        %v3847 = vsel %vm3846, 1, 0
        %v3848 = vadd.s32 %v3844, %v3840
        %v3849 = vadd.s32 %v3845, %v3847
        %v3850 = vadd.s32 %v3849, %v3839
        %v3851 = vadd.s32 %v3850, %v3841
        %v3852 = vand.u32 %v3829, 65535
        %v3853 = vshrl.u32 %v3829, 16
        %v3854 = vand.u32 %v3824, 65535
        %v3855 = vshrl.u32 %v3824, 16
        %v3856 = vmul.u32 %v3852, %v3854
        %v3857 = vmul.u32 %v3852, %v3855
        %v3858 = vmul.u32 %v3853, %v3854
        %v3859 = vmul.u32 %v3853, %v3855
        %v3860 = vshll.u32 %v3857, 16
        %v3861 = vshrl.u32 %v3857, 16
        %v3862 = vshll.u32 %v3858, 16
        %v3863 = vshrl.u32 %v3858, 16
        %vm3864 = vc.u32 %v3856, %v3860
        %v3865 = vsel %vm3864, 1, 0
        %v3866 = vadd.s32 %v3856, %v3860
        %v3867 = vadd.s32 %v3859, %v3865
        %vm3868 = vc.u32 %v3866, %v3862
        %v3869 = vsel %vm3868, 1, 0
        %v3870 = vadd.s32 %v3866, %v3862
        %v3871 = vadd.s32 %v3867, %v3869
        %v3872 = vadd.s32 %v3871, %v3861
        %v3873 = vadd.s32 %v3872, %v3863
        %v3874 = vmul.u32 %v3829, %v3820
        %v3875 = vadd.s32 %v3851, %v3870
        %vm3876 = vc.u32 %v3851, %v3870
        %v3877 = vadd.s32 %v3873, 1
        %v3878 = vsel %vm3876, %v3877, %v3873
        %v3879 = vadd.s32 %v3874, %v3878
        %v3880 = vadd.s32 %v3879, 536870912
        %v3881 = vshrl.u32 %v3880, 30
        %v3882 = vshll.u32 %v3881, 30
        %v3883 = vsub.s32 %v3879, %v3882
        %vm3884 = vcmp.lt.s32.totalorder %v3883, 0
        %v3885 = vsub.s32 0, %v3883
        %v3886 = vsel %vm3884, %v3885, %v3883
        %v3887 = vclz %v3886
        %v3888 = vsub.s32 %v3887, 2
        %vm3889 = vcmp.gt.s32.totalorder 0, %v3888
        %v3890 = vsel %vm3889, 0, %v3888
        %v3891 = vsub.s32 32, %v3890
        %v3892 = vshll.u32 %v3883, %v3890
        %v3893 = vshrl.u32 %v3875, %v3891
        %v3894 = vor.u32 %v3892, %v3893
        %v3895 = vsub.s32 4294967266, %v3890
        %v3896 = vadd.s32 %v3895, 127
        %v3897 = vshll.u32 %v3896, 23
        %v3898 = vor.u32 4788187, %v3897
        %v3899 = vand.u32 2147483647, %v3898
        %v3901 = vcvt.s32.f32 %v3894
        %v3902 = vmul.f32 %v3901, %v3899
        %v3903 = vxor.u32 %v3902, 2147483648
        %v3904 = vsel %vm3783, %v3903, %v3902
        %v3905 = vsub.s32 4, %v3881
        %v3906 = vsel %vm3783, %v3905, %v3881
        %v3907 = vsel %vm3782, %v2774, %v3904
        %v3908 = vsel %vm3782, 0, %v3906
        %v3909 = vmul.f32 %v3907, %v3907
        %v3910 = vmul.f32 %v3909, -0.001358992
        %v3911 = vadd.f32 %v3910, 0.041655596
        %v3912 = vmul.f32 %v3909, %v3911
        %v3913 = vadd.f32 %v3912, -0.4999988
        %v3914 = vmul.f32 %v3909, %v3913
        %v3915 = vadd.f32 1.0, %v3914
        %v3916 = vmul.f32 %v3907, %v3907
        %v3917 = vmul.f32 %v3916, -0.00019511016
        %v3918 = vadd.f32 %v3917, 0.008332121
        %v3919 = vmul.f32 %v3916, %v3918
        %v3920 = vadd.f32 %v3919, -0.16666654
        %v3921 = vmul.f32 %v3916, %v3920
        %v3922 = vadd.f32 %v3921, 1.0
        %v3923 = vmul.f32 %v3922, %v3907
        %vm3924 = vweird.f32 %v2774
        %v3925 = vand.u32 %v3908, 3
        %vm3926 = vcmp.lt.s32.totalorder %v3925, 2
        %vm3927 = vcmp.eq.s32.totalorder %v3925, 0
        %v3928 = vxor.u32 %v3923, 2147483648
        %v3929 = vsel %vm3927, %v3915, %v3928
        %vm3930 = vcmp.eq.s32.totalorder %v3925, 2
        %v3931 = vxor.u32 %v3915, 2147483648
        %v3932 = vsel %vm3930, %v3931, %v3923
        %v3933 = vsel %vm3926, %v3929, %v3932
        %v3934 = vsel %vm3924, nan, %v3933
        %v3935 = vand.u32 2147483647, %v2775
        %vm3936 = vcmp.le.f32.partialorder %v3935, 0.7853982
        %vm3937 = vcmp.lt.s32.totalorder %v2775, 0
        %v3938 = vand.u32 %v2775, 2139095040
        %v3939 = vshrl.u32 %v3938, 23
        %v3940 = vsub.s32 %v3939, 127
        %v3941 = vand.u32 2147483647, %v2775
        %v3942 = vand.u32 %v3941, 8388607
        %v3943 = vor.u32 %v3942, 8388608
        %v3944 = vsub.s32 0, %v3943
        %v3945 = vadd.s32 %v3940, 1
        %vm3946 = vcmp.gt.s32.totalorder %v3945, 0
        %v3947 = vsel %vm3946, %v3945, 0
        %v3948 = vshrl.u32 %v3947, 5
        %v3949 = vand.u32 %v3947, 31
        %v3950 = vsub.s32 32, %v3949
        %v3951 = vshrl.u32 683565275, %v3950
        %v3952 = vshll.u32 683565275, %v3949
        %v3953 = vshrl.u32 2475754826, %v3950
        %v3954 = vor.u32 %v3952, %v3953
        %v3955 = vshll.u32 2475754826, %v3949
        %v3956 = vshrl.u32 2131351028, %v3950
        %v3957 = vor.u32 %v3955, %v3956
        %v3958 = vshll.u32 2131351028, %v3949
        %v3959 = vshrl.u32 2102212464, %v3950
        %v3960 = vor.u32 %v3958, %v3959
        %v3961 = vshll.u32 2102212464, %v3949
        %v3962 = vshrl.u32 920167782, %v3950
        %v3963 = vor.u32 %v3961, %v3962
        %v3964 = vshll.u32 920167782, %v3949
        %v3965 = vshrl.u32 1326507024, %v3950
        %v3966 = vor.u32 %v3964, %v3965
        %vm3967 = vcmp.lt.s32.totalorder %v3948, 1
        %vm3968 = vcmp.lt.s32.totalorder %v3948, 2
        %vm3969 = vcmp.lt.s32.totalorder %v3948, 3
        %vm3970 = vcmp.lt.s32.totalorder %v3948, 4
        %v3971 = vsel %vm3967, %v3951, %v3954
        %v3972 = vsel %vm3970, %v3960, 2102212464
        %v3973 = vsel %vm3969, %v3957, %v3972
        %v3974 = vsel %vm3968, %v3971, %v3973
        %v3975 = vsel %vm3967, %v3954, %v3957
        %v3976 = vsel %vm3970, %v3963, 920167782
        %v3977 = vsel %vm3969, %v3960, %v3976
        %v3978 = vsel %vm3968, %v3975, %v3977
        %v3979 = vsel %vm3967, %v3957, %v3960
        %v3980 = vsel %vm3970, %v3966, 1326507024
        %v3981 = vsel %vm3969, %v3963, %v3980
        %v3982 = vsel %vm3968, %v3979, %v3981
        %v3983 = vshll.u32 %v3943, 8
        %v3984 = vand.u32 %v3983, 65535
        %v3985 = vshrl.u32 %v3983, 16
        %v3986 = vand.u32 %v3982, 65535
        %v3987 = vshrl.u32 %v3982, 16
        %v3988 = vmul.u32 %v3984, %v3986
        %v3989 = vmul.u32 %v3984, %v3987
        %v3990 = vmul.u32 %v3985, %v3986
        %v3991 = vmul.u32 %v3985, %v3987
        %v3992 = vshll.u32 %v3989, 16
        %v3993 = vshrl.u32 %v3989, 16
        %v3994 = vshll.u32 %v3990, 16
        %v3995 = vshrl.u32 %v3990, 16
        %vm3996 = vc.u32 %v3988, %v3992
        %v3997 = vsel %vm3996, 1, 0
        %v3998 = vadd.s32 %v3988, %v3992
        %v3999 = vadd.s32 %v3991, %v3997
        %vm4000 = vc.u32 %v3998, %v3994
        %v4001 = vsel %vm4000, 1, 0
        %v4002 = vadd.s32 %v3998, %v3994
        %v4003 = vadd.s32 %v3999, %v4001
        %v4004 = vadd.s32 %v4003, %v3993
        %v4005 = vadd.s32 %v4004, %v3995
        %v4006 = vand.u32 %v3983, 65535
        %v4007 = vshrl.u32 %v3983, 16
        %v4008 = vand.u32 %v3978, 65535
        %v4009 = vshrl.u32 %v3978, 16
        %v4010 = vmul.u32 %v4006, %v4008
        %v4011 = vmul.u32 %v4006, %v4009
        %v4012 = vmul.u32 %v4007, %v4008
        %v4013 = vmul.u32 %v4007, %v4009
        %v4014 = vshll.u32 %v4011, 16
        %v4015 = vshrl.u32 %v4011, 16
        %v4016 = vshll.u32 %v4012, 16
        %v4017 = vshrl.u32 %v4012, 16
        %vm4018 = vc.u32 %v4010, %v4014
        %v4019 = vsel %vm4018, 1, 0
        %v4020 = vadd.s32 %v4010, %v4014
        %v4021 = vadd.s32 %v4013, %v4019
        %vm4022 = vc.u32 %v4020, %v4016
        %v4023 = vsel %vm4022, 1, 0
        %v4024 = vadd.s32 %v4020, %v4016
        %v4025 = vadd.s32 %v4021, %v4023
        %v4026 = vadd.s32 %v4025, %v4015
        %v4027 = vadd.s32 %v4026, %v4017
        %v4028 = vmul.u32 %v3983, %v3974
        %v4029 = vadd.s32 %v4005, %v4024
        %vm4030 = vc.u32 %v4005, %v4024
        %v4031 = vadd.s32 %v4027, 1
        %v4032 = vsel %vm4030, %v4031, %v4027
        %v4033 = vadd.s32 %v4028, %v4032
        %v4034 = vadd.s32 %v4033, 536870912
        %v4035 = vshrl.u32 %v4034, 30
        %v4036 = vshll.u32 %v4035, 30
        %v4037 = vsub.s32 %v4033, %v4036
        %vm4038 = vcmp.lt.s32.totalorder %v4037, 0
        %v4039 = vsub.s32 0, %v4037
        %v4040 = vsel %vm4038, %v4039, %v4037
        %v4041 = vclz %v4040
        %v4042 = vsub.s32 %v4041, 2
        %vm4043 = vcmp.gt.s32.totalorder 0, %v4042
        %v4044 = vsel %vm4043, 0, %v4042
        %v4045 = vsub.s32 32, %v4044
        %v4046 = vshll.u32 %v4037, %v4044
        %v4047 = vshrl.u32 %v4029, %v4045
        %v4048 = vor.u32 %v4046, %v4047
        %v4049 = vsub.s32 4294967266, %v4044
        %v4050 = vadd.s32 %v4049, 127
        %v4051 = vshll.u32 %v4050, 23
        %v4052 = vor.u32 4788187, %v4051
        %v4053 = vand.u32 2147483647, %v4052
        %v4055 = vcvt.s32.f32 %v4048
        %v4056 = vmul.f32 %v4055, %v4053
        %v4057 = vxor.u32 %v4056, 2147483648
        %v4058 = vsel %vm3937, %v4057, %v4056
        %v4059 = vsub.s32 4, %v4035
        %v4060 = vsel %vm3937, %v4059, %v4035
        %v4061 = vsel %vm3936, %v2775, %v4058
        %v4062 = vsel %vm3936, 0, %v4060
        %v4063 = vmul.f32 %v4061, %v4061
        %v4064 = vmul.f32 %v4063, -0.001358992
        %v4065 = vadd.f32 %v4064, 0.041655596
        %v4066 = vmul.f32 %v4063, %v4065
        %v4067 = vadd.f32 %v4066, -0.4999988
        %v4068 = vmul.f32 %v4063, %v4067
        %v4069 = vadd.f32 1.0, %v4068
        %v4070 = vmul.f32 %v4061, %v4061
        %v4071 = vmul.f32 %v4070, -0.00019511016
        %v4072 = vadd.f32 %v4071, 0.008332121
        %v4073 = vmul.f32 %v4070, %v4072
        %v4074 = vadd.f32 %v4073, -0.16666654
        %v4075 = vmul.f32 %v4070, %v4074
        %v4076 = vadd.f32 %v4075, 1.0
        %v4077 = vmul.f32 %v4076, %v4061
        %vm4078 = vweird.f32 %v2775
        %v4079 = vand.u32 %v4062, 3
        %vm4080 = vcmp.lt.s32.totalorder %v4079, 2
        %vm4081 = vcmp.eq.s32.totalorder %v4079, 0
        %v4082 = vxor.u32 %v4077, 2147483648
        %v4083 = vsel %vm4081, %v4069, %v4082
        %vm4084 = vcmp.eq.s32.totalorder %v4079, 2
        %v4085 = vxor.u32 %v4069, 2147483648
        %v4086 = vsel %vm4084, %v4085, %v4077
        %v4087 = vsel %vm4080, %v4083, %v4086
        %v4088 = vsel %vm4078, nan, %v4087
        %v4089 = vmul.f32 %v2090, %v3010
        %v4090 = vmul.f32 %v2091, %v3164
        %v4091 = vmul.f32 %v2092, %v3318
        %v4092 = vmul.f32 %v2093, %v3472
        %v4093 = vmul.f32 %v2094, %v3626
        %v4094 = vmul.f32 %v2095, %v3780
        %v4095 = vmul.f32 %v2096, %v3934
        %v4096 = vmul.f32 %v2097, %v4088
        %4097 = vst [vmem:[%s550] sm:$0xff] %v4089
        %4098 = vst [vmem:[%s550 + $0x8] sm:$0xff] %v4090
        %4099 = vst [vmem:[%s550 + $0x10] sm:$0xff] %v4091
        %4100 = vst [vmem:[%s550 + $0x18] sm:$0xff] %v4092
        %4101 = vst [vmem:[%s550 + $0x20] sm:$0xff] %v4093
        %4102 = vst [vmem:[%s550 + $0x28] sm:$0xff] %v4094
        %4103 = vst [vmem:[%s550 + $0x30] sm:$0xff] %v4095
        %4104 = vst [vmem:[%s550 + $0x38] sm:$0xff] %v4096
        %v4105 = vand.u32 2147483647, %v2768
        %vm4106 = vcmp.le.f32.partialorder %v4105, 0.7853982
        %vm4107 = vcmp.lt.s32.totalorder %v2768, 0
        %v4108 = vand.u32 %v2768, 2139095040
        %v4109 = vshrl.u32 %v4108, 23
        %v4110 = vsub.s32 %v4109, 127
        %v4111 = vand.u32 2147483647, %v2768
        %v4112 = vand.u32 %v4111, 8388607
        %v4113 = vor.u32 %v4112, 8388608
        %v4114 = vsub.s32 0, %v4113
        %v4115 = vadd.s32 %v4110, 1
        %vm4116 = vcmp.gt.s32.totalorder %v4115, 0
        %v4117 = vsel %vm4116, %v4115, 0
        %v4118 = vshrl.u32 %v4117, 5
        %v4119 = vand.u32 %v4117, 31
        %v4120 = vsub.s32 32, %v4119
        %v4121 = vshrl.u32 683565275, %v4120
        %v4122 = vshll.u32 683565275, %v4119
        %v4123 = vshrl.u32 2475754826, %v4120
        %v4124 = vor.u32 %v4122, %v4123
        %v4125 = vshll.u32 2475754826, %v4119
        %v4126 = vshrl.u32 2131351028, %v4120
        %v4127 = vor.u32 %v4125, %v4126
        %v4128 = vshll.u32 2131351028, %v4119
        %v4129 = vshrl.u32 2102212464, %v4120
        %v4130 = vor.u32 %v4128, %v4129
        %v4131 = vshll.u32 2102212464, %v4119
        %v4132 = vshrl.u32 920167782, %v4120
        %v4133 = vor.u32 %v4131, %v4132
        %v4134 = vshll.u32 920167782, %v4119
        %v4135 = vshrl.u32 1326507024, %v4120
        %v4136 = vor.u32 %v4134, %v4135
        %vm4137 = vcmp.lt.s32.totalorder %v4118, 1
        %vm4138 = vcmp.lt.s32.totalorder %v4118, 2
        %vm4139 = vcmp.lt.s32.totalorder %v4118, 3
        %vm4140 = vcmp.lt.s32.totalorder %v4118, 4
        %v4141 = vsel %vm4137, %v4121, %v4124
        %v4142 = vsel %vm4140, %v4130, 2102212464
        %v4143 = vsel %vm4139, %v4127, %v4142
        %v4144 = vsel %vm4138, %v4141, %v4143
        %v4145 = vsel %vm4137, %v4124, %v4127
        %v4146 = vsel %vm4140, %v4133, 920167782
        %v4147 = vsel %vm4139, %v4130, %v4146
        %v4148 = vsel %vm4138, %v4145, %v4147
        %v4149 = vsel %vm4137, %v4127, %v4130
        %v4150 = vsel %vm4140, %v4136, 1326507024
        %v4151 = vsel %vm4139, %v4133, %v4150
        %v4152 = vsel %vm4138, %v4149, %v4151
        %v4153 = vshll.u32 %v4113, 8
        %v4154 = vand.u32 %v4153, 65535
        %v4155 = vshrl.u32 %v4153, 16
        %v4156 = vand.u32 %v4152, 65535
        %v4157 = vshrl.u32 %v4152, 16
        %v4158 = vmul.u32 %v4154, %v4156
        %v4159 = vmul.u32 %v4154, %v4157
        %v4160 = vmul.u32 %v4155, %v4156
        %v4161 = vmul.u32 %v4155, %v4157
        %v4162 = vshll.u32 %v4159, 16
        %v4163 = vshrl.u32 %v4159, 16
        %v4164 = vshll.u32 %v4160, 16
        %v4165 = vshrl.u32 %v4160, 16
        %vm4166 = vc.u32 %v4158, %v4162
        %v4167 = vsel %vm4166, 1, 0
        %v4168 = vadd.s32 %v4158, %v4162
        %v4169 = vadd.s32 %v4161, %v4167
        %vm4170 = vc.u32 %v4168, %v4164
        %v4171 = vsel %vm4170, 1, 0
        %v4172 = vadd.s32 %v4168, %v4164
        %v4173 = vadd.s32 %v4169, %v4171
        %v4174 = vadd.s32 %v4173, %v4163
        %v4175 = vadd.s32 %v4174, %v4165
        %v4176 = vand.u32 %v4153, 65535
        %v4177 = vshrl.u32 %v4153, 16
        %v4178 = vand.u32 %v4148, 65535
        %v4179 = vshrl.u32 %v4148, 16
        %v4180 = vmul.u32 %v4176, %v4178
        %v4181 = vmul.u32 %v4176, %v4179
        %v4182 = vmul.u32 %v4177, %v4178
        %v4183 = vmul.u32 %v4177, %v4179
        %v4184 = vshll.u32 %v4181, 16
        %v4185 = vshrl.u32 %v4181, 16
        %v4186 = vshll.u32 %v4182, 16
        %v4187 = vshrl.u32 %v4182, 16
        %vm4188 = vc.u32 %v4180, %v4184
        %v4189 = vsel %vm4188, 1, 0
        %v4190 = vadd.s32 %v4180, %v4184
        %v4191 = vadd.s32 %v4183, %v4189
        %vm4192 = vc.u32 %v4190, %v4186
        %v4193 = vsel %vm4192, 1, 0
        %v4194 = vadd.s32 %v4190, %v4186
        %v4195 = vadd.s32 %v4191, %v4193
        %v4196 = vadd.s32 %v4195, %v4185
        %v4197 = vadd.s32 %v4196, %v4187
        %v4198 = vmul.u32 %v4153, %v4144
        %v4199 = vadd.s32 %v4175, %v4194
        %vm4200 = vc.u32 %v4175, %v4194
        %v4201 = vadd.s32 %v4197, 1
        %v4202 = vsel %vm4200, %v4201, %v4197
        %v4203 = vadd.s32 %v4198, %v4202
        %v4204 = vadd.s32 %v4203, 536870912
        %v4205 = vshrl.u32 %v4204, 30
        %v4206 = vshll.u32 %v4205, 30
        %v4207 = vsub.s32 %v4203, %v4206
        %vm4208 = vcmp.lt.s32.totalorder %v4207, 0
        %v4209 = vsub.s32 0, %v4207
        %v4210 = vsel %vm4208, %v4209, %v4207
        %v4211 = vclz %v4210
        %v4212 = vsub.s32 %v4211, 2
        %vm4213 = vcmp.gt.s32.totalorder 0, %v4212
        %v4214 = vsel %vm4213, 0, %v4212
        %v4215 = vsub.s32 32, %v4214
        %v4216 = vshll.u32 %v4207, %v4214
        %v4217 = vshrl.u32 %v4199, %v4215
        %v4218 = vor.u32 %v4216, %v4217
        %v4219 = vsub.s32 4294967266, %v4214
        %v4220 = vadd.s32 %v4219, 127
        %v4221 = vshll.u32 %v4220, 23
        %v4222 = vor.u32 4788187, %v4221
        %v4223 = vand.u32 2147483647, %v4222
        %v4225 = vcvt.s32.f32 %v4218
        %v4226 = vmul.f32 %v4225, %v4223
        %v4227 = vxor.u32 %v4226, 2147483648
        %v4228 = vsel %vm4107, %v4227, %v4226
        %v4229 = vsub.s32 4, %v4205
        %v4230 = vsel %vm4107, %v4229, %v4205
        %v4231 = vsel %vm4106, %v2768, %v4228
        %v4232 = vsel %vm4106, 0, %v4230
        %v4233 = vmul.f32 %v4231, %v4231
        %v4234 = vmul.f32 %v4233, -0.001358992
        %v4235 = vadd.f32 %v4234, 0.041655596
        %v4236 = vmul.f32 %v4233, %v4235
        %v4237 = vadd.f32 %v4236, -0.4999988
        %v4238 = vmul.f32 %v4233, %v4237
        %v4239 = vadd.f32 1.0, %v4238
        %v4240 = vmul.f32 %v4231, %v4231
        %v4241 = vmul.f32 %v4240, -0.00019511016
        %v4242 = vadd.f32 %v4241, 0.008332121
        %v4243 = vmul.f32 %v4240, %v4242
        %v4244 = vadd.f32 %v4243, -0.16666654
        %v4245 = vmul.f32 %v4240, %v4244
        %v4246 = vadd.f32 %v4245, 1.0
        %v4247 = vmul.f32 %v4246, %v4231
        %vm4248 = vweird.f32 %v2768
        %v4249 = vadd.s32 %v4232, 3
        %v4250 = vand.u32 %v4249, 3
        %vm4251 = vcmp.lt.s32.totalorder %v4250, 2
        %vm4252 = vcmp.eq.s32.totalorder %v4250, 0
        %v4253 = vxor.u32 %v4247, 2147483648
        %v4254 = vsel %vm4252, %v4239, %v4253
        %vm4255 = vcmp.eq.s32.totalorder %v4250, 2
        %v4256 = vxor.u32 %v4239, 2147483648
        %v4257 = vsel %vm4255, %v4256, %v4247
        %v4258 = vsel %vm4251, %v4254, %v4257
        %v4259 = vsel %vm4248, nan, %v4258
        %v4260 = vand.u32 2147483647, %v2769
        %vm4261 = vcmp.le.f32.partialorder %v4260, 0.7853982
        %vm4262 = vcmp.lt.s32.totalorder %v2769, 0
        %v4263 = vand.u32 %v2769, 2139095040
        %v4264 = vshrl.u32 %v4263, 23
        %v4265 = vsub.s32 %v4264, 127
        %v4266 = vand.u32 2147483647, %v2769
        %v4267 = vand.u32 %v4266, 8388607
        %v4268 = vor.u32 %v4267, 8388608
        %v4269 = vsub.s32 0, %v4268
        %v4270 = vadd.s32 %v4265, 1
        %vm4271 = vcmp.gt.s32.totalorder %v4270, 0
        %v4272 = vsel %vm4271, %v4270, 0
        %v4273 = vshrl.u32 %v4272, 5
        %v4274 = vand.u32 %v4272, 31
        %v4275 = vsub.s32 32, %v4274
        %v4276 = vshrl.u32 683565275, %v4275
        %v4277 = vshll.u32 683565275, %v4274
        %v4278 = vshrl.u32 2475754826, %v4275
        %v4279 = vor.u32 %v4277, %v4278
        %v4280 = vshll.u32 2475754826, %v4274
        %v4281 = vshrl.u32 2131351028, %v4275
        %v4282 = vor.u32 %v4280, %v4281
        %v4283 = vshll.u32 2131351028, %v4274
        %v4284 = vshrl.u32 2102212464, %v4275
        %v4285 = vor.u32 %v4283, %v4284
        %v4286 = vshll.u32 2102212464, %v4274
        %v4287 = vshrl.u32 920167782, %v4275
        %v4288 = vor.u32 %v4286, %v4287
        %v4289 = vshll.u32 920167782, %v4274
        %v4290 = vshrl.u32 1326507024, %v4275
        %v4291 = vor.u32 %v4289, %v4290
        %vm4292 = vcmp.lt.s32.totalorder %v4273, 1
        %vm4293 = vcmp.lt.s32.totalorder %v4273, 2
        %vm4294 = vcmp.lt.s32.totalorder %v4273, 3
        %vm4295 = vcmp.lt.s32.totalorder %v4273, 4
        %v4296 = vsel %vm4292, %v4276, %v4279
        %v4297 = vsel %vm4295, %v4285, 2102212464
        %v4298 = vsel %vm4294, %v4282, %v4297
        %v4299 = vsel %vm4293, %v4296, %v4298
        %v4300 = vsel %vm4292, %v4279, %v4282
        %v4301 = vsel %vm4295, %v4288, 920167782
        %v4302 = vsel %vm4294, %v4285, %v4301
        %v4303 = vsel %vm4293, %v4300, %v4302
        %v4304 = vsel %vm4292, %v4282, %v4285
        %v4305 = vsel %vm4295, %v4291, 1326507024
        %v4306 = vsel %vm4294, %v4288, %v4305
        %v4307 = vsel %vm4293, %v4304, %v4306
        %v4308 = vshll.u32 %v4268, 8
        %v4309 = vand.u32 %v4308, 65535
        %v4310 = vshrl.u32 %v4308, 16
        %v4311 = vand.u32 %v4307, 65535
        %v4312 = vshrl.u32 %v4307, 16
        %v4313 = vmul.u32 %v4309, %v4311
        %v4314 = vmul.u32 %v4309, %v4312
        %v4315 = vmul.u32 %v4310, %v4311
        %v4316 = vmul.u32 %v4310, %v4312
        %v4317 = vshll.u32 %v4314, 16
        %v4318 = vshrl.u32 %v4314, 16
        %v4319 = vshll.u32 %v4315, 16
        %v4320 = vshrl.u32 %v4315, 16
        %vm4321 = vc.u32 %v4313, %v4317
        %v4322 = vsel %vm4321, 1, 0
        %v4323 = vadd.s32 %v4313, %v4317
        %v4324 = vadd.s32 %v4316, %v4322
        %vm4325 = vc.u32 %v4323, %v4319
        %v4326 = vsel %vm4325, 1, 0
        %v4327 = vadd.s32 %v4323, %v4319
        %v4328 = vadd.s32 %v4324, %v4326
        %v4329 = vadd.s32 %v4328, %v4318
        %v4330 = vadd.s32 %v4329, %v4320
        %v4331 = vand.u32 %v4308, 65535
        %v4332 = vshrl.u32 %v4308, 16
        %v4333 = vand.u32 %v4303, 65535
        %v4334 = vshrl.u32 %v4303, 16
        %v4335 = vmul.u32 %v4331, %v4333
        %v4336 = vmul.u32 %v4331, %v4334
        %v4337 = vmul.u32 %v4332, %v4333
        %v4338 = vmul.u32 %v4332, %v4334
        %v4339 = vshll.u32 %v4336, 16
        %v4340 = vshrl.u32 %v4336, 16
        %v4341 = vshll.u32 %v4337, 16
        %v4342 = vshrl.u32 %v4337, 16
        %vm4343 = vc.u32 %v4335, %v4339
        %v4344 = vsel %vm4343, 1, 0
        %v4345 = vadd.s32 %v4335, %v4339
        %v4346 = vadd.s32 %v4338, %v4344
        %vm4347 = vc.u32 %v4345, %v4341
        %v4348 = vsel %vm4347, 1, 0
        %v4349 = vadd.s32 %v4345, %v4341
        %v4350 = vadd.s32 %v4346, %v4348
        %v4351 = vadd.s32 %v4350, %v4340
        %v4352 = vadd.s32 %v4351, %v4342
        %v4353 = vmul.u32 %v4308, %v4299
        %v4354 = vadd.s32 %v4330, %v4349
        %vm4355 = vc.u32 %v4330, %v4349
        %v4356 = vadd.s32 %v4352, 1
        %v4357 = vsel %vm4355, %v4356, %v4352
        %v4358 = vadd.s32 %v4353, %v4357
        %v4359 = vadd.s32 %v4358, 536870912
        %v4360 = vshrl.u32 %v4359, 30
        %v4361 = vshll.u32 %v4360, 30
        %v4362 = vsub.s32 %v4358, %v4361
        %vm4363 = vcmp.lt.s32.totalorder %v4362, 0
        %v4364 = vsub.s32 0, %v4362
        %v4365 = vsel %vm4363, %v4364, %v4362
        %v4366 = vclz %v4365
        %v4367 = vsub.s32 %v4366, 2
        %vm4368 = vcmp.gt.s32.totalorder 0, %v4367
        %v4369 = vsel %vm4368, 0, %v4367
        %v4370 = vsub.s32 32, %v4369
        %v4371 = vshll.u32 %v4362, %v4369
        %v4372 = vshrl.u32 %v4354, %v4370
        %v4373 = vor.u32 %v4371, %v4372
        %v4374 = vsub.s32 4294967266, %v4369
        %v4375 = vadd.s32 %v4374, 127
        %v4376 = vshll.u32 %v4375, 23
        %v4377 = vor.u32 4788187, %v4376
        %v4378 = vand.u32 2147483647, %v4377
        %v4380 = vcvt.s32.f32 %v4373
        %v4381 = vmul.f32 %v4380, %v4378
        %v4382 = vxor.u32 %v4381, 2147483648
        %v4383 = vsel %vm4262, %v4382, %v4381
        %v4384 = vsub.s32 4, %v4360
        %v4385 = vsel %vm4262, %v4384, %v4360
        %v4386 = vsel %vm4261, %v2769, %v4383
        %v4387 = vsel %vm4261, 0, %v4385
        %v4388 = vmul.f32 %v4386, %v4386
        %v4389 = vmul.f32 %v4388, -0.001358992
        %v4390 = vadd.f32 %v4389, 0.041655596
        %v4391 = vmul.f32 %v4388, %v4390
        %v4392 = vadd.f32 %v4391, -0.4999988
        %v4393 = vmul.f32 %v4388, %v4392
        %v4394 = vadd.f32 1.0, %v4393
        %v4395 = vmul.f32 %v4386, %v4386
        %v4396 = vmul.f32 %v4395, -0.00019511016
        %v4397 = vadd.f32 %v4396, 0.008332121
        %v4398 = vmul.f32 %v4395, %v4397
        %v4399 = vadd.f32 %v4398, -0.16666654
        %v4400 = vmul.f32 %v4395, %v4399
        %v4401 = vadd.f32 %v4400, 1.0
        %v4402 = vmul.f32 %v4401, %v4386
        %vm4403 = vweird.f32 %v2769
        %v4404 = vadd.s32 %v4387, 3
        %v4405 = vand.u32 %v4404, 3
        %vm4406 = vcmp.lt.s32.totalorder %v4405, 2
        %vm4407 = vcmp.eq.s32.totalorder %v4405, 0
        %v4408 = vxor.u32 %v4402, 2147483648
        %v4409 = vsel %vm4407, %v4394, %v4408
        %vm4410 = vcmp.eq.s32.totalorder %v4405, 2
        %v4411 = vxor.u32 %v4394, 2147483648
        %v4412 = vsel %vm4410, %v4411, %v4402
        %v4413 = vsel %vm4406, %v4409, %v4412
        %v4414 = vsel %vm4403, nan, %v4413
        %v4415 = vand.u32 2147483647, %v2770
        %vm4416 = vcmp.le.f32.partialorder %v4415, 0.7853982
        %vm4417 = vcmp.lt.s32.totalorder %v2770, 0
        %v4418 = vand.u32 %v2770, 2139095040
        %v4419 = vshrl.u32 %v4418, 23
        %v4420 = vsub.s32 %v4419, 127
        %v4421 = vand.u32 2147483647, %v2770
        %v4422 = vand.u32 %v4421, 8388607
        %v4423 = vor.u32 %v4422, 8388608
        %v4424 = vsub.s32 0, %v4423
        %v4425 = vadd.s32 %v4420, 1
        %vm4426 = vcmp.gt.s32.totalorder %v4425, 0
        %v4427 = vsel %vm4426, %v4425, 0
        %v4428 = vshrl.u32 %v4427, 5
        %v4429 = vand.u32 %v4427, 31
        %v4430 = vsub.s32 32, %v4429
        %v4431 = vshrl.u32 683565275, %v4430
        %v4432 = vshll.u32 683565275, %v4429
        %v4433 = vshrl.u32 2475754826, %v4430
        %v4434 = vor.u32 %v4432, %v4433
        %v4435 = vshll.u32 2475754826, %v4429
        %v4436 = vshrl.u32 2131351028, %v4430
        %v4437 = vor.u32 %v4435, %v4436
        %v4438 = vshll.u32 2131351028, %v4429
        %v4439 = vshrl.u32 2102212464, %v4430
        %v4440 = vor.u32 %v4438, %v4439
        %v4441 = vshll.u32 2102212464, %v4429
        %v4442 = vshrl.u32 920167782, %v4430
        %v4443 = vor.u32 %v4441, %v4442
        %v4444 = vshll.u32 920167782, %v4429
        %v4445 = vshrl.u32 1326507024, %v4430
        %v4446 = vor.u32 %v4444, %v4445
        %vm4447 = vcmp.lt.s32.totalorder %v4428, 1
        %vm4448 = vcmp.lt.s32.totalorder %v4428, 2
        %vm4449 = vcmp.lt.s32.totalorder %v4428, 3
        %vm4450 = vcmp.lt.s32.totalorder %v4428, 4
        %v4451 = vsel %vm4447, %v4431, %v4434
        %v4452 = vsel %vm4450, %v4440, 2102212464
        %v4453 = vsel %vm4449, %v4437, %v4452
        %v4454 = vsel %vm4448, %v4451, %v4453
        %v4455 = vsel %vm4447, %v4434, %v4437
        %v4456 = vsel %vm4450, %v4443, 920167782
        %v4457 = vsel %vm4449, %v4440, %v4456
        %v4458 = vsel %vm4448, %v4455, %v4457
        %v4459 = vsel %vm4447, %v4437, %v4440
        %v4460 = vsel %vm4450, %v4446, 1326507024
        %v4461 = vsel %vm4449, %v4443, %v4460
        %v4462 = vsel %vm4448, %v4459, %v4461
        %v4463 = vshll.u32 %v4423, 8
        %v4464 = vand.u32 %v4463, 65535
        %v4465 = vshrl.u32 %v4463, 16
        %v4466 = vand.u32 %v4462, 65535
        %v4467 = vshrl.u32 %v4462, 16
        %v4468 = vmul.u32 %v4464, %v4466
        %v4469 = vmul.u32 %v4464, %v4467
        %v4470 = vmul.u32 %v4465, %v4466
        %v4471 = vmul.u32 %v4465, %v4467
        %v4472 = vshll.u32 %v4469, 16
        %v4473 = vshrl.u32 %v4469, 16
        %v4474 = vshll.u32 %v4470, 16
        %v4475 = vshrl.u32 %v4470, 16
        %vm4476 = vc.u32 %v4468, %v4472
        %v4477 = vsel %vm4476, 1, 0
        %v4478 = vadd.s32 %v4468, %v4472
        %v4479 = vadd.s32 %v4471, %v4477
        %vm4480 = vc.u32 %v4478, %v4474
        %v4481 = vsel %vm4480, 1, 0
        %v4482 = vadd.s32 %v4478, %v4474
        %v4483 = vadd.s32 %v4479, %v4481
        %v4484 = vadd.s32 %v4483, %v4473
        %v4485 = vadd.s32 %v4484, %v4475
        %v4486 = vand.u32 %v4463, 65535
        %v4487 = vshrl.u32 %v4463, 16
        %v4488 = vand.u32 %v4458, 65535
        %v4489 = vshrl.u32 %v4458, 16
        %v4490 = vmul.u32 %v4486, %v4488
        %v4491 = vmul.u32 %v4486, %v4489
        %v4492 = vmul.u32 %v4487, %v4488
        %v4493 = vmul.u32 %v4487, %v4489
        %v4494 = vshll.u32 %v4491, 16
        %v4495 = vshrl.u32 %v4491, 16
        %v4496 = vshll.u32 %v4492, 16
        %v4497 = vshrl.u32 %v4492, 16
        %vm4498 = vc.u32 %v4490, %v4494
        %v4499 = vsel %vm4498, 1, 0
        %v4500 = vadd.s32 %v4490, %v4494
        %v4501 = vadd.s32 %v4493, %v4499
        %vm4502 = vc.u32 %v4500, %v4496
        %v4503 = vsel %vm4502, 1, 0
        %v4504 = vadd.s32 %v4500, %v4496
        %v4505 = vadd.s32 %v4501, %v4503
        %v4506 = vadd.s32 %v4505, %v4495
        %v4507 = vadd.s32 %v4506, %v4497
        %v4508 = vmul.u32 %v4463, %v4454
        %v4509 = vadd.s32 %v4485, %v4504
        %vm4510 = vc.u32 %v4485, %v4504
        %v4511 = vadd.s32 %v4507, 1
        %v4512 = vsel %vm4510, %v4511, %v4507
        %v4513 = vadd.s32 %v4508, %v4512
        %v4514 = vadd.s32 %v4513, 536870912
        %v4515 = vshrl.u32 %v4514, 30
        %v4516 = vshll.u32 %v4515, 30
        %v4517 = vsub.s32 %v4513, %v4516
        %vm4518 = vcmp.lt.s32.totalorder %v4517, 0
        %v4519 = vsub.s32 0, %v4517
        %v4520 = vsel %vm4518, %v4519, %v4517
        %v4521 = vclz %v4520
        %v4522 = vsub.s32 %v4521, 2
        %vm4523 = vcmp.gt.s32.totalorder 0, %v4522
        %v4524 = vsel %vm4523, 0, %v4522
        %v4525 = vsub.s32 32, %v4524
        %v4526 = vshll.u32 %v4517, %v4524
        %v4527 = vshrl.u32 %v4509, %v4525
        %v4528 = vor.u32 %v4526, %v4527
        %v4529 = vsub.s32 4294967266, %v4524
        %v4530 = vadd.s32 %v4529, 127
        %v4531 = vshll.u32 %v4530, 23
        %v4532 = vor.u32 4788187, %v4531
        %v4533 = vand.u32 2147483647, %v4532
        %v4535 = vcvt.s32.f32 %v4528
        %v4536 = vmul.f32 %v4535, %v4533
        %v4537 = vxor.u32 %v4536, 2147483648
        %v4538 = vsel %vm4417, %v4537, %v4536
        %v4539 = vsub.s32 4, %v4515
        %v4540 = vsel %vm4417, %v4539, %v4515
        %v4541 = vsel %vm4416, %v2770, %v4538
        %v4542 = vsel %vm4416, 0, %v4540
        %v4543 = vmul.f32 %v4541, %v4541
        %v4544 = vmul.f32 %v4543, -0.001358992
        %v4545 = vadd.f32 %v4544, 0.041655596
        %v4546 = vmul.f32 %v4543, %v4545
        %v4547 = vadd.f32 %v4546, -0.4999988
        %v4548 = vmul.f32 %v4543, %v4547
        %v4549 = vadd.f32 1.0, %v4548
        %v4550 = vmul.f32 %v4541, %v4541
        %v4551 = vmul.f32 %v4550, -0.00019511016
        %v4552 = vadd.f32 %v4551, 0.008332121
        %v4553 = vmul.f32 %v4550, %v4552
        %v4554 = vadd.f32 %v4553, -0.16666654
        %v4555 = vmul.f32 %v4550, %v4554
        %v4556 = vadd.f32 %v4555, 1.0
        %v4557 = vmul.f32 %v4556, %v4541
        %vm4558 = vweird.f32 %v2770
        %v4559 = vadd.s32 %v4542, 3
        %v4560 = vand.u32 %v4559, 3
        %vm4561 = vcmp.lt.s32.totalorder %v4560, 2
        %vm4562 = vcmp.eq.s32.totalorder %v4560, 0
        %v4563 = vxor.u32 %v4557, 2147483648
        %v4564 = vsel %vm4562, %v4549, %v4563
        %vm4565 = vcmp.eq.s32.totalorder %v4560, 2
        %v4566 = vxor.u32 %v4549, 2147483648
        %v4567 = vsel %vm4565, %v4566, %v4557
        %v4568 = vsel %vm4561, %v4564, %v4567
        %v4569 = vsel %vm4558, nan, %v4568
        %v4570 = vand.u32 2147483647, %v2771
        %vm4571 = vcmp.le.f32.partialorder %v4570, 0.7853982
        %vm4572 = vcmp.lt.s32.totalorder %v2771, 0
        %v4573 = vand.u32 %v2771, 2139095040
        %v4574 = vshrl.u32 %v4573, 23
        %v4575 = vsub.s32 %v4574, 127
        %v4576 = vand.u32 2147483647, %v2771
        %v4577 = vand.u32 %v4576, 8388607
        %v4578 = vor.u32 %v4577, 8388608
        %v4579 = vsub.s32 0, %v4578
        %v4580 = vadd.s32 %v4575, 1
        %vm4581 = vcmp.gt.s32.totalorder %v4580, 0
        %v4582 = vsel %vm4581, %v4580, 0
        %v4583 = vshrl.u32 %v4582, 5
        %v4584 = vand.u32 %v4582, 31
        %v4585 = vsub.s32 32, %v4584
        %v4586 = vshrl.u32 683565275, %v4585
        %v4587 = vshll.u32 683565275, %v4584
        %v4588 = vshrl.u32 2475754826, %v4585
        %v4589 = vor.u32 %v4587, %v4588
        %v4590 = vshll.u32 2475754826, %v4584
        %v4591 = vshrl.u32 2131351028, %v4585
        %v4592 = vor.u32 %v4590, %v4591
        %v4593 = vshll.u32 2131351028, %v4584
        %v4594 = vshrl.u32 2102212464, %v4585
        %v4595 = vor.u32 %v4593, %v4594
        %v4596 = vshll.u32 2102212464, %v4584
        %v4597 = vshrl.u32 920167782, %v4585
        %v4598 = vor.u32 %v4596, %v4597
        %v4599 = vshll.u32 920167782, %v4584
        %v4600 = vshrl.u32 1326507024, %v4585
        %v4601 = vor.u32 %v4599, %v4600
        %vm4602 = vcmp.lt.s32.totalorder %v4583, 1
        %vm4603 = vcmp.lt.s32.totalorder %v4583, 2
        %vm4604 = vcmp.lt.s32.totalorder %v4583, 3
        %vm4605 = vcmp.lt.s32.totalorder %v4583, 4
        %v4606 = vsel %vm4602, %v4586, %v4589
        %v4607 = vsel %vm4605, %v4595, 2102212464
        %v4608 = vsel %vm4604, %v4592, %v4607
        %v4609 = vsel %vm4603, %v4606, %v4608
        %v4610 = vsel %vm4602, %v4589, %v4592
        %v4611 = vsel %vm4605, %v4598, 920167782
        %v4612 = vsel %vm4604, %v4595, %v4611
        %v4613 = vsel %vm4603, %v4610, %v4612
        %v4614 = vsel %vm4602, %v4592, %v4595
        %v4615 = vsel %vm4605, %v4601, 1326507024
        %v4616 = vsel %vm4604, %v4598, %v4615
        %v4617 = vsel %vm4603, %v4614, %v4616
        %v4618 = vshll.u32 %v4578, 8
        %v4619 = vand.u32 %v4618, 65535
        %v4620 = vshrl.u32 %v4618, 16
        %v4621 = vand.u32 %v4617, 65535
        %v4622 = vshrl.u32 %v4617, 16
        %v4623 = vmul.u32 %v4619, %v4621
        %v4624 = vmul.u32 %v4619, %v4622
        %v4625 = vmul.u32 %v4620, %v4621
        %v4626 = vmul.u32 %v4620, %v4622
        %v4627 = vshll.u32 %v4624, 16
        %v4628 = vshrl.u32 %v4624, 16
        %v4629 = vshll.u32 %v4625, 16
        %v4630 = vshrl.u32 %v4625, 16
        %vm4631 = vc.u32 %v4623, %v4627
        %v4632 = vsel %vm4631, 1, 0
        %v4633 = vadd.s32 %v4623, %v4627
        %v4634 = vadd.s32 %v4626, %v4632
        %vm4635 = vc.u32 %v4633, %v4629
        %v4636 = vsel %vm4635, 1, 0
        %v4637 = vadd.s32 %v4633, %v4629
        %v4638 = vadd.s32 %v4634, %v4636
        %v4639 = vadd.s32 %v4638, %v4628
        %v4640 = vadd.s32 %v4639, %v4630
        %v4641 = vand.u32 %v4618, 65535
        %v4642 = vshrl.u32 %v4618, 16
        %v4643 = vand.u32 %v4613, 65535
        %v4644 = vshrl.u32 %v4613, 16
        %v4645 = vmul.u32 %v4641, %v4643
        %v4646 = vmul.u32 %v4641, %v4644
        %v4647 = vmul.u32 %v4642, %v4643
        %v4648 = vmul.u32 %v4642, %v4644
        %v4649 = vshll.u32 %v4646, 16
        %v4650 = vshrl.u32 %v4646, 16
        %v4651 = vshll.u32 %v4647, 16
        %v4652 = vshrl.u32 %v4647, 16
        %vm4653 = vc.u32 %v4645, %v4649
        %v4654 = vsel %vm4653, 1, 0
        %v4655 = vadd.s32 %v4645, %v4649
        %v4656 = vadd.s32 %v4648, %v4654
        %vm4657 = vc.u32 %v4655, %v4651
        %v4658 = vsel %vm4657, 1, 0
        %v4659 = vadd.s32 %v4655, %v4651
        %v4660 = vadd.s32 %v4656, %v4658
        %v4661 = vadd.s32 %v4660, %v4650
        %v4662 = vadd.s32 %v4661, %v4652
        %v4663 = vmul.u32 %v4618, %v4609
        %v4664 = vadd.s32 %v4640, %v4659
        %vm4665 = vc.u32 %v4640, %v4659
        %v4666 = vadd.s32 %v4662, 1
        %v4667 = vsel %vm4665, %v4666, %v4662
        %v4668 = vadd.s32 %v4663, %v4667
        %v4669 = vadd.s32 %v4668, 536870912
        %v4670 = vshrl.u32 %v4669, 30
        %v4671 = vshll.u32 %v4670, 30
        %v4672 = vsub.s32 %v4668, %v4671
        %vm4673 = vcmp.lt.s32.totalorder %v4672, 0
        %v4674 = vsub.s32 0, %v4672
        %v4675 = vsel %vm4673, %v4674, %v4672
        %v4676 = vclz %v4675
        %v4677 = vsub.s32 %v4676, 2
        %vm4678 = vcmp.gt.s32.totalorder 0, %v4677
        %v4679 = vsel %vm4678, 0, %v4677
        %v4680 = vsub.s32 32, %v4679
        %v4681 = vshll.u32 %v4672, %v4679
        %v4682 = vshrl.u32 %v4664, %v4680
        %v4683 = vor.u32 %v4681, %v4682
        %v4684 = vsub.s32 4294967266, %v4679
        %v4685 = vadd.s32 %v4684, 127
        %v4686 = vshll.u32 %v4685, 23
        %v4687 = vor.u32 4788187, %v4686
        %v4688 = vand.u32 2147483647, %v4687
        %v4690 = vcvt.s32.f32 %v4683
        %v4691 = vmul.f32 %v4690, %v4688
        %v4692 = vxor.u32 %v4691, 2147483648
        %v4693 = vsel %vm4572, %v4692, %v4691
        %v4694 = vsub.s32 4, %v4670
        %v4695 = vsel %vm4572, %v4694, %v4670
        %v4696 = vsel %vm4571, %v2771, %v4693
        %v4697 = vsel %vm4571, 0, %v4695
        %v4698 = vmul.f32 %v4696, %v4696
        %v4699 = vmul.f32 %v4698, -0.001358992
        %v4700 = vadd.f32 %v4699, 0.041655596
        %v4701 = vmul.f32 %v4698, %v4700
        %v4702 = vadd.f32 %v4701, -0.4999988
        %v4703 = vmul.f32 %v4698, %v4702
        %v4704 = vadd.f32 1.0, %v4703
        %v4705 = vmul.f32 %v4696, %v4696
        %v4706 = vmul.f32 %v4705, -0.00019511016
        %v4707 = vadd.f32 %v4706, 0.008332121
        %v4708 = vmul.f32 %v4705, %v4707
        %v4709 = vadd.f32 %v4708, -0.16666654
        %v4710 = vmul.f32 %v4705, %v4709
        %v4711 = vadd.f32 %v4710, 1.0
        %v4712 = vmul.f32 %v4711, %v4696
        %vm4713 = vweird.f32 %v2771
        %v4714 = vadd.s32 %v4697, 3
        %v4715 = vand.u32 %v4714, 3
        %vm4716 = vcmp.lt.s32.totalorder %v4715, 2
        %vm4717 = vcmp.eq.s32.totalorder %v4715, 0
        %v4718 = vxor.u32 %v4712, 2147483648
        %v4719 = vsel %vm4717, %v4704, %v4718
        %vm4720 = vcmp.eq.s32.totalorder %v4715, 2
        %v4721 = vxor.u32 %v4704, 2147483648
        %v4722 = vsel %vm4720, %v4721, %v4712
        %v4723 = vsel %vm4716, %v4719, %v4722
        %v4724 = vsel %vm4713, nan, %v4723
        %v4725 = vand.u32 2147483647, %v2772
        %vm4726 = vcmp.le.f32.partialorder %v4725, 0.7853982
        %vm4727 = vcmp.lt.s32.totalorder %v2772, 0
        %v4728 = vand.u32 %v2772, 2139095040
        %v4729 = vshrl.u32 %v4728, 23
        %v4730 = vsub.s32 %v4729, 127
        %v4731 = vand.u32 2147483647, %v2772
        %v4732 = vand.u32 %v4731, 8388607
        %v4733 = vor.u32 %v4732, 8388608
        %v4734 = vsub.s32 0, %v4733
        %v4735 = vadd.s32 %v4730, 1
        %vm4736 = vcmp.gt.s32.totalorder %v4735, 0
        %v4737 = vsel %vm4736, %v4735, 0
        %v4738 = vshrl.u32 %v4737, 5
        %v4739 = vand.u32 %v4737, 31
        %v4740 = vsub.s32 32, %v4739
        %v4741 = vshrl.u32 683565275, %v4740
        %v4742 = vshll.u32 683565275, %v4739
        %v4743 = vshrl.u32 2475754826, %v4740
        %v4744 = vor.u32 %v4742, %v4743
        %v4745 = vshll.u32 2475754826, %v4739
        %v4746 = vshrl.u32 2131351028, %v4740
        %v4747 = vor.u32 %v4745, %v4746
        %v4748 = vshll.u32 2131351028, %v4739
        %v4749 = vshrl.u32 2102212464, %v4740
        %v4750 = vor.u32 %v4748, %v4749
        %v4751 = vshll.u32 2102212464, %v4739
        %v4752 = vshrl.u32 920167782, %v4740
        %v4753 = vor.u32 %v4751, %v4752
        %v4754 = vshll.u32 920167782, %v4739
        %v4755 = vshrl.u32 1326507024, %v4740
        %v4756 = vor.u32 %v4754, %v4755
        %vm4757 = vcmp.lt.s32.totalorder %v4738, 1
        %vm4758 = vcmp.lt.s32.totalorder %v4738, 2
        %vm4759 = vcmp.lt.s32.totalorder %v4738, 3
        %vm4760 = vcmp.lt.s32.totalorder %v4738, 4
        %v4761 = vsel %vm4757, %v4741, %v4744
        %v4762 = vsel %vm4760, %v4750, 2102212464
        %v4763 = vsel %vm4759, %v4747, %v4762
        %v4764 = vsel %vm4758, %v4761, %v4763
        %v4765 = vsel %vm4757, %v4744, %v4747
        %v4766 = vsel %vm4760, %v4753, 920167782
        %v4767 = vsel %vm4759, %v4750, %v4766
        %v4768 = vsel %vm4758, %v4765, %v4767
        %v4769 = vsel %vm4757, %v4747, %v4750
        %v4770 = vsel %vm4760, %v4756, 1326507024
        %v4771 = vsel %vm4759, %v4753, %v4770
        %v4772 = vsel %vm4758, %v4769, %v4771
        %v4773 = vshll.u32 %v4733, 8
        %v4774 = vand.u32 %v4773, 65535
        %v4775 = vshrl.u32 %v4773, 16
        %v4776 = vand.u32 %v4772, 65535
        %v4777 = vshrl.u32 %v4772, 16
        %v4778 = vmul.u32 %v4774, %v4776
        %v4779 = vmul.u32 %v4774, %v4777
        %v4780 = vmul.u32 %v4775, %v4776
        %v4781 = vmul.u32 %v4775, %v4777
        %v4782 = vshll.u32 %v4779, 16
        %v4783 = vshrl.u32 %v4779, 16
        %v4784 = vshll.u32 %v4780, 16
        %v4785 = vshrl.u32 %v4780, 16
        %vm4786 = vc.u32 %v4778, %v4782
        %v4787 = vsel %vm4786, 1, 0
        %v4788 = vadd.s32 %v4778, %v4782
        %v4789 = vadd.s32 %v4781, %v4787
        %vm4790 = vc.u32 %v4788, %v4784
        %v4791 = vsel %vm4790, 1, 0
        %v4792 = vadd.s32 %v4788, %v4784
        %v4793 = vadd.s32 %v4789, %v4791
        %v4794 = vadd.s32 %v4793, %v4783
        %v4795 = vadd.s32 %v4794, %v4785
        %v4796 = vand.u32 %v4773, 65535
        %v4797 = vshrl.u32 %v4773, 16
        %v4798 = vand.u32 %v4768, 65535
        %v4799 = vshrl.u32 %v4768, 16
        %v4800 = vmul.u32 %v4796, %v4798
        %v4801 = vmul.u32 %v4796, %v4799
        %v4802 = vmul.u32 %v4797, %v4798
        %v4803 = vmul.u32 %v4797, %v4799
        %v4804 = vshll.u32 %v4801, 16
        %v4805 = vshrl.u32 %v4801, 16
        %v4806 = vshll.u32 %v4802, 16
        %v4807 = vshrl.u32 %v4802, 16
        %vm4808 = vc.u32 %v4800, %v4804
        %v4809 = vsel %vm4808, 1, 0
        %v4810 = vadd.s32 %v4800, %v4804
        %v4811 = vadd.s32 %v4803, %v4809
        %vm4812 = vc.u32 %v4810, %v4806
        %v4813 = vsel %vm4812, 1, 0
        %v4814 = vadd.s32 %v4810, %v4806
        %v4815 = vadd.s32 %v4811, %v4813
        %v4816 = vadd.s32 %v4815, %v4805
        %v4817 = vadd.s32 %v4816, %v4807
        %v4818 = vmul.u32 %v4773, %v4764
        %v4819 = vadd.s32 %v4795, %v4814
        %vm4820 = vc.u32 %v4795, %v4814
        %v4821 = vadd.s32 %v4817, 1
        %v4822 = vsel %vm4820, %v4821, %v4817
        %v4823 = vadd.s32 %v4818, %v4822
        %v4824 = vadd.s32 %v4823, 536870912
        %v4825 = vshrl.u32 %v4824, 30
        %v4826 = vshll.u32 %v4825, 30
        %v4827 = vsub.s32 %v4823, %v4826
        %vm4828 = vcmp.lt.s32.totalorder %v4827, 0
        %v4829 = vsub.s32 0, %v4827
        %v4830 = vsel %vm4828, %v4829, %v4827
        %v4831 = vclz %v4830
        %v4832 = vsub.s32 %v4831, 2
        %vm4833 = vcmp.gt.s32.totalorder 0, %v4832
        %v4834 = vsel %vm4833, 0, %v4832
        %v4835 = vsub.s32 32, %v4834
        %v4836 = vshll.u32 %v4827, %v4834
        %v4837 = vshrl.u32 %v4819, %v4835
        %v4838 = vor.u32 %v4836, %v4837
        %v4839 = vsub.s32 4294967266, %v4834
        %v4840 = vadd.s32 %v4839, 127
        %v4841 = vshll.u32 %v4840, 23
        %v4842 = vor.u32 4788187, %v4841
        %v4843 = vand.u32 2147483647, %v4842
        %v4845 = vcvt.s32.f32 %v4838
        %v4846 = vmul.f32 %v4845, %v4843
        %v4847 = vxor.u32 %v4846, 2147483648
        %v4848 = vsel %vm4727, %v4847, %v4846
        %v4849 = vsub.s32 4, %v4825
        %v4850 = vsel %vm4727, %v4849, %v4825
        %v4851 = vsel %vm4726, %v2772, %v4848
        %v4852 = vsel %vm4726, 0, %v4850
        %v4853 = vmul.f32 %v4851, %v4851
        %v4854 = vmul.f32 %v4853, -0.001358992
        %v4855 = vadd.f32 %v4854, 0.041655596
        %v4856 = vmul.f32 %v4853, %v4855
        %v4857 = vadd.f32 %v4856, -0.4999988
        %v4858 = vmul.f32 %v4853, %v4857
        %v4859 = vadd.f32 1.0, %v4858
        %v4860 = vmul.f32 %v4851, %v4851
        %v4861 = vmul.f32 %v4860, -0.00019511016
        %v4862 = vadd.f32 %v4861, 0.008332121
        %v4863 = vmul.f32 %v4860, %v4862
        %v4864 = vadd.f32 %v4863, -0.16666654
        %v4865 = vmul.f32 %v4860, %v4864
        %v4866 = vadd.f32 %v4865, 1.0
        %v4867 = vmul.f32 %v4866, %v4851
        %vm4868 = vweird.f32 %v2772
        %v4869 = vadd.s32 %v4852, 3
        %v4870 = vand.u32 %v4869, 3
        %vm4871 = vcmp.lt.s32.totalorder %v4870, 2
        %vm4872 = vcmp.eq.s32.totalorder %v4870, 0
        %v4873 = vxor.u32 %v4867, 2147483648
        %v4874 = vsel %vm4872, %v4859, %v4873
        %vm4875 = vcmp.eq.s32.totalorder %v4870, 2
        %v4876 = vxor.u32 %v4859, 2147483648
        %v4877 = vsel %vm4875, %v4876, %v4867
        %v4878 = vsel %vm4871, %v4874, %v4877
        %v4879 = vsel %vm4868, nan, %v4878
        %v4880 = vand.u32 2147483647, %v2773
        %vm4881 = vcmp.le.f32.partialorder %v4880, 0.7853982
        %vm4882 = vcmp.lt.s32.totalorder %v2773, 0
        %v4883 = vand.u32 %v2773, 2139095040
        %v4884 = vshrl.u32 %v4883, 23
        %v4885 = vsub.s32 %v4884, 127
        %v4886 = vand.u32 2147483647, %v2773
        %v4887 = vand.u32 %v4886, 8388607
        %v4888 = vor.u32 %v4887, 8388608
        %v4889 = vsub.s32 0, %v4888
        %v4890 = vadd.s32 %v4885, 1
        %vm4891 = vcmp.gt.s32.totalorder %v4890, 0
        %v4892 = vsel %vm4891, %v4890, 0
        %v4893 = vshrl.u32 %v4892, 5
        %v4894 = vand.u32 %v4892, 31
        %v4895 = vsub.s32 32, %v4894
        %v4896 = vshrl.u32 683565275, %v4895
        %v4897 = vshll.u32 683565275, %v4894
        %v4898 = vshrl.u32 2475754826, %v4895
        %v4899 = vor.u32 %v4897, %v4898
        %v4900 = vshll.u32 2475754826, %v4894
        %v4901 = vshrl.u32 2131351028, %v4895
        %v4902 = vor.u32 %v4900, %v4901
        %v4903 = vshll.u32 2131351028, %v4894
        %v4904 = vshrl.u32 2102212464, %v4895
        %v4905 = vor.u32 %v4903, %v4904
        %v4906 = vshll.u32 2102212464, %v4894
        %v4907 = vshrl.u32 920167782, %v4895
        %v4908 = vor.u32 %v4906, %v4907
        %v4909 = vshll.u32 920167782, %v4894
        %v4910 = vshrl.u32 1326507024, %v4895
        %v4911 = vor.u32 %v4909, %v4910
        %vm4912 = vcmp.lt.s32.totalorder %v4893, 1
        %vm4913 = vcmp.lt.s32.totalorder %v4893, 2
        %vm4914 = vcmp.lt.s32.totalorder %v4893, 3
        %vm4915 = vcmp.lt.s32.totalorder %v4893, 4
        %v4916 = vsel %vm4912, %v4896, %v4899
        %v4917 = vsel %vm4915, %v4905, 2102212464
        %v4918 = vsel %vm4914, %v4902, %v4917
        %v4919 = vsel %vm4913, %v4916, %v4918
        %v4920 = vsel %vm4912, %v4899, %v4902
        %v4921 = vsel %vm4915, %v4908, 920167782
        %v4922 = vsel %vm4914, %v4905, %v4921
        %v4923 = vsel %vm4913, %v4920, %v4922
        %v4924 = vsel %vm4912, %v4902, %v4905
        %v4925 = vsel %vm4915, %v4911, 1326507024
        %v4926 = vsel %vm4914, %v4908, %v4925
        %v4927 = vsel %vm4913, %v4924, %v4926
        %v4928 = vshll.u32 %v4888, 8
        %v4929 = vand.u32 %v4928, 65535
        %v4930 = vshrl.u32 %v4928, 16
        %v4931 = vand.u32 %v4927, 65535
        %v4932 = vshrl.u32 %v4927, 16
        %v4933 = vmul.u32 %v4929, %v4931
        %v4934 = vmul.u32 %v4929, %v4932
        %v4935 = vmul.u32 %v4930, %v4931
        %v4936 = vmul.u32 %v4930, %v4932
        %v4937 = vshll.u32 %v4934, 16
        %v4938 = vshrl.u32 %v4934, 16
        %v4939 = vshll.u32 %v4935, 16
        %v4940 = vshrl.u32 %v4935, 16
        %vm4941 = vc.u32 %v4933, %v4937
        %v4942 = vsel %vm4941, 1, 0
        %v4943 = vadd.s32 %v4933, %v4937
        %v4944 = vadd.s32 %v4936, %v4942
        %vm4945 = vc.u32 %v4943, %v4939
        %v4946 = vsel %vm4945, 1, 0
        %v4947 = vadd.s32 %v4943, %v4939
        %v4948 = vadd.s32 %v4944, %v4946
        %v4949 = vadd.s32 %v4948, %v4938
        %v4950 = vadd.s32 %v4949, %v4940
        %v4951 = vand.u32 %v4928, 65535
        %v4952 = vshrl.u32 %v4928, 16
        %v4953 = vand.u32 %v4923, 65535
        %v4954 = vshrl.u32 %v4923, 16
        %v4955 = vmul.u32 %v4951, %v4953
        %v4956 = vmul.u32 %v4951, %v4954
        %v4957 = vmul.u32 %v4952, %v4953
        %v4958 = vmul.u32 %v4952, %v4954
        %v4959 = vshll.u32 %v4956, 16
        %v4960 = vshrl.u32 %v4956, 16
        %v4961 = vshll.u32 %v4957, 16
        %v4962 = vshrl.u32 %v4957, 16
        %vm4963 = vc.u32 %v4955, %v4959
        %v4964 = vsel %vm4963, 1, 0
        %v4965 = vadd.s32 %v4955, %v4959
        %v4966 = vadd.s32 %v4958, %v4964
        %vm4967 = vc.u32 %v4965, %v4961
        %v4968 = vsel %vm4967, 1, 0
        %v4969 = vadd.s32 %v4965, %v4961
        %v4970 = vadd.s32 %v4966, %v4968
        %v4971 = vadd.s32 %v4970, %v4960
        %v4972 = vadd.s32 %v4971, %v4962
        %v4973 = vmul.u32 %v4928, %v4919
        %v4974 = vadd.s32 %v4950, %v4969
        %vm4975 = vc.u32 %v4950, %v4969
        %v4976 = vadd.s32 %v4972, 1
        %v4977 = vsel %vm4975, %v4976, %v4972
        %v4978 = vadd.s32 %v4973, %v4977
        %v4979 = vadd.s32 %v4978, 536870912
        %v4980 = vshrl.u32 %v4979, 30
        %v4981 = vshll.u32 %v4980, 30
        %v4982 = vsub.s32 %v4978, %v4981
        %vm4983 = vcmp.lt.s32.totalorder %v4982, 0
        %v4984 = vsub.s32 0, %v4982
        %v4985 = vsel %vm4983, %v4984, %v4982
        %v4986 = vclz %v4985
        %v4987 = vsub.s32 %v4986, 2
        %vm4988 = vcmp.gt.s32.totalorder 0, %v4987
        %v4989 = vsel %vm4988, 0, %v4987
        %v4990 = vsub.s32 32, %v4989
        %v4991 = vshll.u32 %v4982, %v4989
        %v4992 = vshrl.u32 %v4974, %v4990
        %v4993 = vor.u32 %v4991, %v4992
        %v4994 = vsub.s32 4294967266, %v4989
        %v4995 = vadd.s32 %v4994, 127
        %v4996 = vshll.u32 %v4995, 23
        %v4997 = vor.u32 4788187, %v4996
        %v4998 = vand.u32 2147483647, %v4997
        %v5000 = vcvt.s32.f32 %v4993
        %v5001 = vmul.f32 %v5000, %v4998
        %v5002 = vxor.u32 %v5001, 2147483648
        %v5003 = vsel %vm4882, %v5002, %v5001
        %v5004 = vsub.s32 4, %v4980
        %v5005 = vsel %vm4882, %v5004, %v4980
        %v5006 = vsel %vm4881, %v2773, %v5003
        %v5007 = vsel %vm4881, 0, %v5005
        %v5008 = vmul.f32 %v5006, %v5006
        %v5009 = vmul.f32 %v5008, -0.001358992
        %v5010 = vadd.f32 %v5009, 0.041655596
        %v5011 = vmul.f32 %v5008, %v5010
        %v5012 = vadd.f32 %v5011, -0.4999988
        %v5013 = vmul.f32 %v5008, %v5012
        %v5014 = vadd.f32 1.0, %v5013
        %v5015 = vmul.f32 %v5006, %v5006
        %v5016 = vmul.f32 %v5015, -0.00019511016
        %v5017 = vadd.f32 %v5016, 0.008332121
        %v5018 = vmul.f32 %v5015, %v5017
        %v5019 = vadd.f32 %v5018, -0.16666654
        %v5020 = vmul.f32 %v5015, %v5019
        %v5021 = vadd.f32 %v5020, 1.0
        %v5022 = vmul.f32 %v5021, %v5006
        %vm5023 = vweird.f32 %v2773
        %v5024 = vadd.s32 %v5007, 3
        %v5025 = vand.u32 %v5024, 3
        %vm5026 = vcmp.lt.s32.totalorder %v5025, 2
        %vm5027 = vcmp.eq.s32.totalorder %v5025, 0
        %v5028 = vxor.u32 %v5022, 2147483648
        %v5029 = vsel %vm5027, %v5014, %v5028
        %vm5030 = vcmp.eq.s32.totalorder %v5025, 2
        %v5031 = vxor.u32 %v5014, 2147483648
        %v5032 = vsel %vm5030, %v5031, %v5022
        %v5033 = vsel %vm5026, %v5029, %v5032
        %v5034 = vsel %vm5023, nan, %v5033
        %v5035 = vand.u32 2147483647, %v2774
        %vm5036 = vcmp.le.f32.partialorder %v5035, 0.7853982
        %vm5037 = vcmp.lt.s32.totalorder %v2774, 0
        %v5038 = vand.u32 %v2774, 2139095040
        %v5039 = vshrl.u32 %v5038, 23
        %v5040 = vsub.s32 %v5039, 127
        %v5041 = vand.u32 2147483647, %v2774
        %v5042 = vand.u32 %v5041, 8388607
        %v5043 = vor.u32 %v5042, 8388608
        %v5044 = vsub.s32 0, %v5043
        %v5045 = vadd.s32 %v5040, 1
        %vm5046 = vcmp.gt.s32.totalorder %v5045, 0
        %v5047 = vsel %vm5046, %v5045, 0
        %v5048 = vshrl.u32 %v5047, 5
        %v5049 = vand.u32 %v5047, 31
        %v5050 = vsub.s32 32, %v5049
        %v5051 = vshrl.u32 683565275, %v5050
        %v5052 = vshll.u32 683565275, %v5049
        %v5053 = vshrl.u32 2475754826, %v5050
        %v5054 = vor.u32 %v5052, %v5053
        %v5055 = vshll.u32 2475754826, %v5049
        %v5056 = vshrl.u32 2131351028, %v5050
        %v5057 = vor.u32 %v5055, %v5056
        %v5058 = vshll.u32 2131351028, %v5049
        %v5059 = vshrl.u32 2102212464, %v5050
        %v5060 = vor.u32 %v5058, %v5059
        %v5061 = vshll.u32 2102212464, %v5049
        %v5062 = vshrl.u32 920167782, %v5050
        %v5063 = vor.u32 %v5061, %v5062
        %v5064 = vshll.u32 920167782, %v5049
        %v5065 = vshrl.u32 1326507024, %v5050
        %v5066 = vor.u32 %v5064, %v5065
        %vm5067 = vcmp.lt.s32.totalorder %v5048, 1
        %vm5068 = vcmp.lt.s32.totalorder %v5048, 2
        %vm5069 = vcmp.lt.s32.totalorder %v5048, 3
        %vm5070 = vcmp.lt.s32.totalorder %v5048, 4
        %v5071 = vsel %vm5067, %v5051, %v5054
        %v5072 = vsel %vm5070, %v5060, 2102212464
        %v5073 = vsel %vm5069, %v5057, %v5072
        %v5074 = vsel %vm5068, %v5071, %v5073
        %v5075 = vsel %vm5067, %v5054, %v5057
        %v5076 = vsel %vm5070, %v5063, 920167782
        %v5077 = vsel %vm5069, %v5060, %v5076
        %v5078 = vsel %vm5068, %v5075, %v5077
        %v5079 = vsel %vm5067, %v5057, %v5060
        %v5080 = vsel %vm5070, %v5066, 1326507024
        %v5081 = vsel %vm5069, %v5063, %v5080
        %v5082 = vsel %vm5068, %v5079, %v5081
        %v5083 = vshll.u32 %v5043, 8
        %v5084 = vand.u32 %v5083, 65535
        %v5085 = vshrl.u32 %v5083, 16
        %v5086 = vand.u32 %v5082, 65535
        %v5087 = vshrl.u32 %v5082, 16
        %v5088 = vmul.u32 %v5084, %v5086
        %v5089 = vmul.u32 %v5084, %v5087
        %v5090 = vmul.u32 %v5085, %v5086
        %v5091 = vmul.u32 %v5085, %v5087
        %v5092 = vshll.u32 %v5089, 16
        %v5093 = vshrl.u32 %v5089, 16
        %v5094 = vshll.u32 %v5090, 16
        %v5095 = vshrl.u32 %v5090, 16
        %vm5096 = vc.u32 %v5088, %v5092
        %v5097 = vsel %vm5096, 1, 0
        %v5098 = vadd.s32 %v5088, %v5092
        %v5099 = vadd.s32 %v5091, %v5097
        %vm5100 = vc.u32 %v5098, %v5094
        %v5101 = vsel %vm5100, 1, 0
        %v5102 = vadd.s32 %v5098, %v5094
        %v5103 = vadd.s32 %v5099, %v5101
        %v5104 = vadd.s32 %v5103, %v5093
        %v5105 = vadd.s32 %v5104, %v5095
        %v5106 = vand.u32 %v5083, 65535
        %v5107 = vshrl.u32 %v5083, 16
        %v5108 = vand.u32 %v5078, 65535
        %v5109 = vshrl.u32 %v5078, 16
        %v5110 = vmul.u32 %v5106, %v5108
        %v5111 = vmul.u32 %v5106, %v5109
        %v5112 = vmul.u32 %v5107, %v5108
        %v5113 = vmul.u32 %v5107, %v5109
        %v5114 = vshll.u32 %v5111, 16
        %v5115 = vshrl.u32 %v5111, 16
        %v5116 = vshll.u32 %v5112, 16
        %v5117 = vshrl.u32 %v5112, 16
        %vm5118 = vc.u32 %v5110, %v5114
        %v5119 = vsel %vm5118, 1, 0
        %v5120 = vadd.s32 %v5110, %v5114
        %v5121 = vadd.s32 %v5113, %v5119
        %vm5122 = vc.u32 %v5120, %v5116
        %v5123 = vsel %vm5122, 1, 0
        %v5124 = vadd.s32 %v5120, %v5116
        %v5125 = vadd.s32 %v5121, %v5123
        %v5126 = vadd.s32 %v5125, %v5115
        %v5127 = vadd.s32 %v5126, %v5117
        %v5128 = vmul.u32 %v5083, %v5074
        %v5129 = vadd.s32 %v5105, %v5124
        %vm5130 = vc.u32 %v5105, %v5124
        %v5131 = vadd.s32 %v5127, 1
        %v5132 = vsel %vm5130, %v5131, %v5127
        %v5133 = vadd.s32 %v5128, %v5132
        %v5134 = vadd.s32 %v5133, 536870912
        %v5135 = vshrl.u32 %v5134, 30
        %v5136 = vshll.u32 %v5135, 30
        %v5137 = vsub.s32 %v5133, %v5136
        %vm5138 = vcmp.lt.s32.totalorder %v5137, 0
        %v5139 = vsub.s32 0, %v5137
        %v5140 = vsel %vm5138, %v5139, %v5137
        %v5141 = vclz %v5140
        %v5142 = vsub.s32 %v5141, 2
        %vm5143 = vcmp.gt.s32.totalorder 0, %v5142
        %v5144 = vsel %vm5143, 0, %v5142
        %v5145 = vsub.s32 32, %v5144
        %v5146 = vshll.u32 %v5137, %v5144
        %v5147 = vshrl.u32 %v5129, %v5145
        %v5148 = vor.u32 %v5146, %v5147
        %v5149 = vsub.s32 4294967266, %v5144
        %v5150 = vadd.s32 %v5149, 127
        %v5151 = vshll.u32 %v5150, 23
        %v5152 = vor.u32 4788187, %v5151
        %v5153 = vand.u32 2147483647, %v5152
        %v5155 = vcvt.s32.f32 %v5148
        %v5156 = vmul.f32 %v5155, %v5153
        %v5157 = vxor.u32 %v5156, 2147483648
        %v5158 = vsel %vm5037, %v5157, %v5156
        %v5159 = vsub.s32 4, %v5135
        %v5160 = vsel %vm5037, %v5159, %v5135
        %v5161 = vsel %vm5036, %v2774, %v5158
        %v5162 = vsel %vm5036, 0, %v5160
        %v5163 = vmul.f32 %v5161, %v5161
        %v5164 = vmul.f32 %v5163, -0.001358992
        %v5165 = vadd.f32 %v5164, 0.041655596
        %v5166 = vmul.f32 %v5163, %v5165
        %v5167 = vadd.f32 %v5166, -0.4999988
        %v5168 = vmul.f32 %v5163, %v5167
        %v5169 = vadd.f32 1.0, %v5168
        %v5170 = vmul.f32 %v5161, %v5161
        %v5171 = vmul.f32 %v5170, -0.00019511016
        %v5172 = vadd.f32 %v5171, 0.008332121
        %v5173 = vmul.f32 %v5170, %v5172
        %v5174 = vadd.f32 %v5173, -0.16666654
        %v5175 = vmul.f32 %v5170, %v5174
        %v5176 = vadd.f32 %v5175, 1.0
        %v5177 = vmul.f32 %v5176, %v5161
        %vm5178 = vweird.f32 %v2774
        %v5179 = vadd.s32 %v5162, 3
        %v5180 = vand.u32 %v5179, 3
        %vm5181 = vcmp.lt.s32.totalorder %v5180, 2
        %vm5182 = vcmp.eq.s32.totalorder %v5180, 0
        %v5183 = vxor.u32 %v5177, 2147483648
        %v5184 = vsel %vm5182, %v5169, %v5183
        %vm5185 = vcmp.eq.s32.totalorder %v5180, 2
        %v5186 = vxor.u32 %v5169, 2147483648
        %v5187 = vsel %vm5185, %v5186, %v5177
        %v5188 = vsel %vm5181, %v5184, %v5187
        %v5189 = vsel %vm5178, nan, %v5188
        %v5190 = vand.u32 2147483647, %v2775
        %vm5191 = vcmp.le.f32.partialorder %v5190, 0.7853982
        %vm5192 = vcmp.lt.s32.totalorder %v2775, 0
        %v5193 = vand.u32 %v2775, 2139095040
        %v5194 = vshrl.u32 %v5193, 23
        %v5195 = vsub.s32 %v5194, 127
        %v5196 = vand.u32 2147483647, %v2775
        %v5197 = vand.u32 %v5196, 8388607
        %v5198 = vor.u32 %v5197, 8388608
        %v5199 = vsub.s32 0, %v5198
        %v5200 = vadd.s32 %v5195, 1
        %vm5201 = vcmp.gt.s32.totalorder %v5200, 0
        %v5202 = vsel %vm5201, %v5200, 0
        %v5203 = vshrl.u32 %v5202, 5
        %v5204 = vand.u32 %v5202, 31
        %v5205 = vsub.s32 32, %v5204
        %v5206 = vshrl.u32 683565275, %v5205
        %v5207 = vshll.u32 683565275, %v5204
        %v5208 = vshrl.u32 2475754826, %v5205
        %v5209 = vor.u32 %v5207, %v5208
        %v5210 = vshll.u32 2475754826, %v5204
        %v5211 = vshrl.u32 2131351028, %v5205
        %v5212 = vor.u32 %v5210, %v5211
        %v5213 = vshll.u32 2131351028, %v5204
        %v5214 = vshrl.u32 2102212464, %v5205
        %v5215 = vor.u32 %v5213, %v5214
        %v5216 = vshll.u32 2102212464, %v5204
        %v5217 = vshrl.u32 920167782, %v5205
        %v5218 = vor.u32 %v5216, %v5217
        %v5219 = vshll.u32 920167782, %v5204
        %v5220 = vshrl.u32 1326507024, %v5205
        %v5221 = vor.u32 %v5219, %v5220
        %vm5222 = vcmp.lt.s32.totalorder %v5203, 1
        %vm5223 = vcmp.lt.s32.totalorder %v5203, 2
        %vm5224 = vcmp.lt.s32.totalorder %v5203, 3
        %vm5225 = vcmp.lt.s32.totalorder %v5203, 4
        %v5226 = vsel %vm5222, %v5206, %v5209
        %v5227 = vsel %vm5225, %v5215, 2102212464
        %v5228 = vsel %vm5224, %v5212, %v5227
        %v5229 = vsel %vm5223, %v5226, %v5228
        %v5230 = vsel %vm5222, %v5209, %v5212
        %v5231 = vsel %vm5225, %v5218, 920167782
        %v5232 = vsel %vm5224, %v5215, %v5231
        %v5233 = vsel %vm5223, %v5230, %v5232
        %v5234 = vsel %vm5222, %v5212, %v5215
        %v5235 = vsel %vm5225, %v5221, 1326507024
        %v5236 = vsel %vm5224, %v5218, %v5235
        %v5237 = vsel %vm5223, %v5234, %v5236
        %v5238 = vshll.u32 %v5198, 8
        %v5239 = vand.u32 %v5238, 65535
        %v5240 = vshrl.u32 %v5238, 16
        %v5241 = vand.u32 %v5237, 65535
        %v5242 = vshrl.u32 %v5237, 16
        %v5243 = vmul.u32 %v5239, %v5241
        %v5244 = vmul.u32 %v5239, %v5242
        %v5245 = vmul.u32 %v5240, %v5241
        %v5246 = vmul.u32 %v5240, %v5242
        %v5247 = vshll.u32 %v5244, 16
        %v5248 = vshrl.u32 %v5244, 16
        %v5249 = vshll.u32 %v5245, 16
        %v5250 = vshrl.u32 %v5245, 16
        %vm5251 = vc.u32 %v5243, %v5247
        %v5252 = vsel %vm5251, 1, 0
        %v5253 = vadd.s32 %v5243, %v5247
        %v5254 = vadd.s32 %v5246, %v5252
        %vm5255 = vc.u32 %v5253, %v5249
        %v5256 = vsel %vm5255, 1, 0
        %v5257 = vadd.s32 %v5253, %v5249
        %v5258 = vadd.s32 %v5254, %v5256
        %v5259 = vadd.s32 %v5258, %v5248
        %v5260 = vadd.s32 %v5259, %v5250
        %v5261 = vand.u32 %v5238, 65535
        %v5262 = vshrl.u32 %v5238, 16
        %v5263 = vand.u32 %v5233, 65535
        %v5264 = vshrl.u32 %v5233, 16
        %v5265 = vmul.u32 %v5261, %v5263
        %v5266 = vmul.u32 %v5261, %v5264
        %v5267 = vmul.u32 %v5262, %v5263
        %v5268 = vmul.u32 %v5262, %v5264
        %v5269 = vshll.u32 %v5266, 16
        %v5270 = vshrl.u32 %v5266, 16
        %v5271 = vshll.u32 %v5267, 16
        %v5272 = vshrl.u32 %v5267, 16
        %vm5273 = vc.u32 %v5265, %v5269
        %v5274 = vsel %vm5273, 1, 0
        %v5275 = vadd.s32 %v5265, %v5269
        %v5276 = vadd.s32 %v5268, %v5274
        %vm5277 = vc.u32 %v5275, %v5271
        %v5278 = vsel %vm5277, 1, 0
        %v5279 = vadd.s32 %v5275, %v5271
        %v5280 = vadd.s32 %v5276, %v5278
        %v5281 = vadd.s32 %v5280, %v5270
        %v5282 = vadd.s32 %v5281, %v5272
        %v5283 = vmul.u32 %v5238, %v5229
        %v5284 = vadd.s32 %v5260, %v5279
        %vm5285 = vc.u32 %v5260, %v5279
        %v5286 = vadd.s32 %v5282, 1
        %v5287 = vsel %vm5285, %v5286, %v5282
        %v5288 = vadd.s32 %v5283, %v5287
        %v5289 = vadd.s32 %v5288, 536870912
        %v5290 = vshrl.u32 %v5289, 30
        %v5291 = vshll.u32 %v5290, 30
        %v5292 = vsub.s32 %v5288, %v5291
        %vm5293 = vcmp.lt.s32.totalorder %v5292, 0
        %v5294 = vsub.s32 0, %v5292
        %v5295 = vsel %vm5293, %v5294, %v5292
        %v5296 = vclz %v5295
        %v5297 = vsub.s32 %v5296, 2
        %vm5298 = vcmp.gt.s32.totalorder 0, %v5297
        %v5299 = vsel %vm5298, 0, %v5297
        %v5300 = vsub.s32 32, %v5299
        %v5301 = vshll.u32 %v5292, %v5299
        %v5302 = vshrl.u32 %v5284, %v5300
        %v5303 = vor.u32 %v5301, %v5302
        %v5304 = vsub.s32 4294967266, %v5299
        %v5305 = vadd.s32 %v5304, 127
        %v5306 = vshll.u32 %v5305, 23
        %v5307 = vor.u32 4788187, %v5306
        %v5308 = vand.u32 2147483647, %v5307
        %v5310 = vcvt.s32.f32 %v5303
        %v5311 = vmul.f32 %v5310, %v5308
        %v5312 = vxor.u32 %v5311, 2147483648
        %v5313 = vsel %vm5192, %v5312, %v5311
        %v5314 = vsub.s32 4, %v5290
        %v5315 = vsel %vm5192, %v5314, %v5290
        %v5316 = vsel %vm5191, %v2775, %v5313
        %v5317 = vsel %vm5191, 0, %v5315
        %v5318 = vmul.f32 %v5316, %v5316
        %v5319 = vmul.f32 %v5318, -0.001358992
        %v5320 = vadd.f32 %v5319, 0.041655596
        %v5321 = vmul.f32 %v5318, %v5320
        %v5322 = vadd.f32 %v5321, -0.4999988
        %v5323 = vmul.f32 %v5318, %v5322
        %v5324 = vadd.f32 1.0, %v5323
        %v5325 = vmul.f32 %v5316, %v5316
        %v5326 = vmul.f32 %v5325, -0.00019511016
        %v5327 = vadd.f32 %v5326, 0.008332121
        %v5328 = vmul.f32 %v5325, %v5327
        %v5329 = vadd.f32 %v5328, -0.16666654
        %v5330 = vmul.f32 %v5325, %v5329
        %v5331 = vadd.f32 %v5330, 1.0
        %v5332 = vmul.f32 %v5331, %v5316
        %vm5333 = vweird.f32 %v2775
        %v5334 = vadd.s32 %v5317, 3
        %v5335 = vand.u32 %v5334, 3
        %vm5336 = vcmp.lt.s32.totalorder %v5335, 2
        %vm5337 = vcmp.eq.s32.totalorder %v5335, 0
        %v5338 = vxor.u32 %v5332, 2147483648
        %v5339 = vsel %vm5337, %v5324, %v5338
        %vm5340 = vcmp.eq.s32.totalorder %v5335, 2
        %v5341 = vxor.u32 %v5324, 2147483648
        %v5342 = vsel %vm5340, %v5341, %v5332
        %v5343 = vsel %vm5336, %v5339, %v5342
        %v5344 = vsel %vm5333, nan, %v5343
        %v5345 = vmul.f32 %v2090, %v4259
        %v5346 = vmul.f32 %v2091, %v4414
        %v5347 = vmul.f32 %v2092, %v4569
        %v5348 = vmul.f32 %v2093, %v4724
        %v5349 = vmul.f32 %v2094, %v4879
        %v5350 = vmul.f32 %v2095, %v5034
        %v5351 = vmul.f32 %v2096, %v5189
        %v5352 = vmul.f32 %v2097, %v5344
        %5353 = vst [vmem:[%s557] sm:$0xff] %v5345
        %5354 = vst [vmem:[%s557 + $0x8] sm:$0xff] %v5346
        %5355 = vst [vmem:[%s557 + $0x10] sm:$0xff] %v5347
        %5356 = vst [vmem:[%s557 + $0x18] sm:$0xff] %v5348
        %5357 = vst [vmem:[%s557 + $0x20] sm:$0xff] %v5349
        %5358 = vst [vmem:[%s557 + $0x28] sm:$0xff] %v5350
        %5359 = vst [vmem:[%s557 + $0x30] sm:$0xff] %v5351
        %5360 = vst [vmem:[%s557 + $0x38] sm:$0xff] %v5352
        %s5361 = sand.u32 %s259, 1
        %s5362 = scalar_lea.sflag [#allocation6], %s5361
        %s5363 = sand.u32 %s259, 1
        %s5364 = smul.addr %s5363, 64
        %s5365 = scalar_lea.vmem [#allocation13], %s5364
        %s5366 = sand.u32 %s289, 1
        %s5367 = scalar_lea.sflag [#allocation15], %s5366
        %s5368 = sand.u32 %s289, 1
        %s5369 = smul.addr %s5368, 64
        %s5370 = scalar_lea.vmem [#allocation14], %s5369
        // Predicated region
        $region73: #{tpu_custom_call.1} parent=47 // pred_check
          %p5371 = pneg %p269
        $region74: #{tpu_custom_call.1} parent=47 // pred_check_branch
          %5373 = sbr.rel (%p5371) target = $region76
        $region75: #{tpu_custom_call.1} parent=47 // pred_region
          %s5374 = smul.u32 8, %s41
          %5376 = vsyncadd %s5362, 0
          %s5377 = sadd.s32 %s42, %s5374
          %s5378 = smul.addr %s40, 8
          %s5379 = sadd.s32 %s5377, %s5378
          %s5380 = smul.addr %s5379, 8
          %s5381 = scalar_lea.hbm %s7, %s5380
          %s5382 = sshll.u32 %s5365, 4
          %s5383 = int_to_ptr.vmem [resolvable:$true] %s5382
          %s5384 = sshll.u32 %s5381, 4
          %s5385 = int_to_ptr.hbm [resolvable:$true] %s5384
          %5390 = dma.vmem_to_hbm [thread:$0]  %s5383, 1024, %s5385, %s5362, 128, 128, 8
        $region76: #{tpu_custom_call.1} parent=47 // pred_fallthru
          _
        // Predicated region
        $region77: #{tpu_custom_call.1} parent=47 // pred_check
          %p5391 = pneg %p299
        $region78: #{tpu_custom_call.1} parent=47 // pred_check_branch
          %5393 = sbr.rel (%p5391) target = $region80
        $region79: #{tpu_custom_call.1} parent=47 // pred_region
          %s5394 = smul.u32 8, %s41
          %5396 = vsyncadd %s5367, 0
          %s5397 = sadd.s32 %s42, %s5394
          %s5398 = smul.addr %s40, 8
          %s5399 = sadd.s32 %s5397, %s5398
          %s5400 = smul.addr %s5399, 8
          %s5401 = scalar_lea.hbm %s8, %s5400
          %s5402 = sshll.u32 %s5370, 4
          %s5403 = int_to_ptr.vmem [resolvable:$true] %s5402
          %s5404 = sshll.u32 %s5401, 4
          %s5405 = int_to_ptr.hbm [resolvable:$true] %s5404
          %5410 = dma.vmem_to_hbm [thread:$0]  %s5403, 1024, %s5405, %s5367, 128, 128, 8
        $region80: #{tpu_custom_call.1} parent=47 // pred_fallthru
          _
      $region48: #{tpu_custom_call.1} parent=5 // pred_fallthru
        _
      %p5411 = scmp.le.s32.totalorder 2, %s30
      // Predicated region
      $region81: #{tpu_custom_call.1} parent=5 // pred_check
        %p5412 = pneg %p5411
      $region82: #{tpu_custom_call.1} parent=5 // pred_check_branch
        %5414 = sbr.rel (%p5412) target = $region84
      $region83: #{tpu_custom_call.1} parent=5 // pred_region
        %s5415 = ssub.s32 %s30, 2
        // Predicated region
        $region85: #{tpu_custom_call.1} parent=83 // pred_check
          %p5416 = pneg %p275
        $region86: #{tpu_custom_call.1} parent=83 // pred_check_branch
          %5418 = sbr.rel (%p5416) target = $region88
        $region87: #{tpu_custom_call.1} parent=83 // pred_region
          %s5419 = sand.u32 %s260, 1
          %s5420 = scalar_lea.sflag [#allocation6], %s5419
          %s5421 = sand.u32 %s260, 1
          %s5422 = smul.addr %s5421, 64
          %s5423 = scalar_lea.vmem [#allocation13], %s5422
          %5425 = dma.done %s5420, 1024
        $region88: #{tpu_custom_call.1} parent=83 // pred_fallthru
          _
        // Predicated region
        $region89: #{tpu_custom_call.1} parent=83 // pred_check
          %p5426 = pneg %p305
        $region90: #{tpu_custom_call.1} parent=83 // pred_check_branch
          %5428 = sbr.rel (%p5426) target = $region92
        $region91: #{tpu_custom_call.1} parent=83 // pred_region
          %s5429 = sand.u32 %s290, 1
          %s5430 = scalar_lea.sflag [#allocation15], %s5429
          %s5431 = sand.u32 %s290, 1
          %s5432 = smul.addr %s5431, 64
          %s5433 = scalar_lea.vmem [#allocation14], %s5432
          %5435 = dma.done %s5430, 1024
        $region92: #{tpu_custom_call.1} parent=83 // pred_fallthru
          _
      $region84: #{tpu_custom_call.1} parent=5 // pred_fallthru
        _
    $region6: #{tpu_custom_call.1} parent=1 // loop_footer
      %s34 = sadd.s32 1, %s30
    $region7: #{tpu_custom_call.1} parent=1 // loop_footer_branch
      %29 = sbr.rel target = $region3
    $region8: #{tpu_custom_call.1} parent=1 // loop_exit
      _
    %5436 = vsyncpa [#allocation5], 1
    %s5437 = scalar_lea.sflag [#allocation5], 1
    %5438 = vsyncpa %s5437, 1
    %5439 = vsyncpa [#allocation8], 1
    %s5440 = scalar_lea.sflag [#allocation8], 1
    %5441 = vsyncpa %s5440, 1
    %5442 = vsyncpa [#allocation11], 1
    %s5443 = scalar_lea.sflag [#allocation11], 1
    %5444 = vsyncpa %s5443, 1
    %5445 = vsyncpa [#allocation6], 1
    %s5446 = scalar_lea.sflag [#allocation6], 1
    %5447 = vsyncpa %s5446, 1
    %5448 = vsyncpa [#allocation15], 1
    %s5449 = scalar_lea.sflag [#allocation15], 1
    %5450 = vsyncpa %s5449, 1

</llo_original>
